<compile_context>
chip_gen: v6e
topology: v6e:2x2x1
jax: 0.10.0
libtpu: 0.0.40
codegen_flags: <defaults>
</compile_context>

<pallas_src>
import jax
import jax.numpy as jnp
from jax.experimental import pallas as pl
from jax.experimental.pallas import tpu as pltpu

# ---------------- problem sizes (small, deterministic) ----------------
N, H, W, C_IN = 2, 16, 16, 4
C_A, C_B = 8, 8
KH, KW = 3, 3
C_OUT = C_A + C_B              # 16
M = N * H * W                  # 512
KP = KH * KW * C_IN            # 36   (im2col contraction dim)
KP1 = KP + 1                   # 37   (+1 ones column carrying the bias)


def _split_and_merge_kernel(p_ref, w_ref, out_ref):
    """Single fused conv_A || conv_B (+bias) as one matmul.

    p_ref  : (M, KP1)     im2col patches + ones column, rows = (n, h, w)
    w_ref  : (KP1, C_OUT) fused [A; B] weights, last row = fused bias
    out_ref: (M, C_OUT)   merged output, reshapes straight to NHWC
    """
    out_ref[...] = jnp.dot(
        p_ref[...], w_ref[...],
        preferred_element_type=jnp.float32,
        precision=jax.lax.Precision.HIGHEST,
    ).astype(out_ref.dtype)


def prepare_params(wa, ba, wb, bb):
    """One-time parameter fusion (hoisted out of the per-call forward path)."""
    w = jnp.concatenate([wa, wb], axis=-1).reshape(KP, C_OUT)   # rows=(ky,kx,c_in)
    b = jnp.concatenate([ba, bb], axis=-1).reshape(1, C_OUT)
    return jnp.concatenate([w, b], axis=0)                      # (KP1, C_OUT)


@jax.jit
def split_and_merge(x, w_aug):
    """x: (N, H, W, C_IN) f32 -> (N, H, W, C_A + C_B) f32 == cat(A(x), B(x))."""
    # im2col, transpose-free (padding=1 == SAME for 3x3). Column order is
    # (ky, kx, c_in), matching w_aug's row order, so no relayout is needed.
    xp = jnp.pad(x, ((0, 0), (1, 1), (1, 1), (0, 0)))           # (N, H+2, W+2, C_IN)
    taps = [xp[:, ky:ky + H, kx:kx + W, :]
            for ky in range(KH) for kx in range(KW)]            # 9 x (N,H,W,C_IN)
    patches = jnp.stack(taps, axis=3).reshape(M, KP)            # (512, 36)
    patches = jnp.concatenate(
        [patches, jnp.ones((M, 1), patches.dtype)], axis=1)     # (512, 37) bias col
    # TODO(synk): optional further step — move im2col fully into the kernel
    # (pass padded x in VMEM, build/accumulate taps in scratch) to drop the
    # patches HBM round trip entirely.

    out = pl.pallas_call(
        _split_and_merge_kernel,
        out_shape=jax.ShapeDtypeStruct((M, C_OUT), jnp.float32),
        in_specs=[
            pl.BlockSpec(memory_space=pltpu.MemorySpace.VMEM),
            pl.BlockSpec(memory_space=pltpu.MemorySpace.VMEM),
        ],
        out_specs=pl.BlockSpec(memory_space=pltpu.MemorySpace.VMEM),
    )(patches, w_aug)

    # (N*H*W, C_OUT) -> (N, H, W, C_OUT): pure reshape, no transpose.
    return out.reshape(N, H, W, C_OUT)


def _reference(x, wa, ba, wb, bb):
    """Pure-JAX reference: cat(conv_A(x), conv_B(x)) on the channel axis."""
    dn = jax.lax.conv_dimension_numbers(x.shape, wa.shape,
                                        ("NHWC", "HWIO", "NHWC"))
    ya = jax.lax.conv_general_dilated(
        x, wa, (1, 1), "SAME", dimension_numbers=dn,
        precision=jax.lax.Precision.HIGHEST) + ba.reshape(1, 1, 1, -1)
    yb = jax.lax.conv_general_dilated(
        x, wb, (1, 1), "SAME", dimension_numbers=dn,
        precision=jax.lax.Precision.HIGHEST) + bb.reshape(1, 1, 1, -1)
    return jnp.concatenate([ya, yb], axis=-1)


if __name__ == "__main__":
    key = jax.random.PRNGKey(0)
    kx, kwa, kba, kwb, kbb = jax.random.split(key, 5)

    x = jax.random.normal(kx, (N, H, W, C_IN), jnp.float32)
    wa = jax.random.normal(kwa, (KH, KW, C_IN, C_A), jnp.float32) * 0.1
    ba = jax.random.normal(kba, (1, C_A), jnp.float32) * 0.1
    wb = jax.random.normal(kwb, (KH, KW, C_IN, C_B), jnp.float32) * 0.1
    bb = jax.random.normal(kbb, (1, C_B), jnp.float32) * 0.1

    # One-time parameter fusion (not part of the per-call forward).
    w_aug = prepare_params(wa, ba, wb, bb)
    jax.block_until_ready(w_aug)

    out = split_and_merge(x, w_aug)
    jax.block_until_ready(out)

    ref = _reference(x, wa, ba, wb, bb)
    assert out.shape == (N, H, W, C_OUT)
    assert jnp.allclose(out, ref, atol=1e-4, rtol=1e-4), "mismatch vs reference"

    print("KERNEL_OK")
</pallas_src>

<mosaic_0001>
module attributes {stable_mosaic.version = 11 : i64} {
  func.func @_split_and_merge_kernel(%arg0: memref<512x37xf32, #tpu.memory_space<vmem>>, %arg1: memref<37x16xf32, #tpu.memory_space<vmem>>, %arg2: memref<512x16xf32, #tpu.memory_space<vmem>>) attributes {dimension_semantics = [], scalar_prefetch = 0 : i64, scratch_operands = 0 : i64, tpu.core_type = #tpu.core_type<tc>} {
    %c0 = arith.constant 0 : index
    %c0_0 = arith.constant 0 : index
    %0 = vector.load %arg0[%c0, %c0_0] : memref<512x37xf32, #tpu.memory_space<vmem>>, vector<512x37xf32>
    %c0_1 = arith.constant 0 : index
    %c0_2 = arith.constant 0 : index
    %1 = vector.load %arg1[%c0_1, %c0_2] : memref<37x16xf32, #tpu.memory_space<vmem>>, vector<37x16xf32>
    %cst = arith.constant dense<0.000000e+00> : vector<512x16xf32>
    %2 = tpu.matmul %0, %1, %cst {dimension_numbers = #tpu.dot_dimension_numbers<[1], [0], [0], [1], [0, 0, 1, 1], [], []>, precision = #tpu.contract_precision<fp32>} : vector<512x37xf32>, vector<37x16xf32>, vector<512x16xf32> -> vector<512x16xf32>
    %c0_3 = arith.constant 0 : index
    %c0_4 = arith.constant 0 : index
    %3 = vector.load %arg2[%c0_3, %c0_4] : memref<512x16xf32, #tpu.memory_space<vmem>>, vector<512x16xf32>
    tpu.vector_store %arg2[%c0_3, %c0_4], %2 {strides = array<i32>} : memref<512x16xf32, #tpu.memory_space<vmem>>, vector<512x16xf32>,
    return
  }
}

</mosaic_0001>

<llo_original>
// kernel: split_and_merge.1
$region0: #{split_and_merge.1}
  #allocation0 [shape = 'u32[]', space=smem, size = 0x4, offset = 0x4, fixed_abs, tag = 'smem constant byte address 0x4 - core index']
  #allocation1 [shape = 'u32[144,128]{1,0:T(1,128)}', space=vmem, size = 0x12000, scoped, tag = 'internal scratch']
  %s0 = inlined_call_operand.vmem [shape: f32[512,37], index: 0, kind: input, shape index: {}]
  %s1 = inlined_call_operand.vmem [shape: f32[37,16], index: 1, kind: input, shape index: {}]
  %s2 = inlined_call_operand.hbm [shape: f32[512,16], index: 2, kind: output, shape index: {}]
  %s3 = sld [smem:[#allocation0]]
  $region18: #{split_and_merge.1} parent=0
    _
  %s5 = ssub.s32 1, %s3
  %s6 = scalar_select 0, %s5, %s3
  $region1: #{split_and_merge.1} parent=0
    #allocation2 [shape = 'u8[262144]{0}', space=vmem, size = 0x40000, scoped, tag = 'output window, operand 0, single buffered']
    #allocation3 [shape = 's32[1]{0}', space=sflag, size = 0x4, scoped, tag = 'scoped memory for split_and_merge.1']
    %7 = vsyncpa [#allocation3], 0
    // Predicated region
    $region2: #{split_and_merge.1} parent=1 // pred_check
      _
    $region3: #{split_and_merge.1} parent=1 // pred_check_branch
      %9 = sbr.rel (0) target = $region5
    $region4: #{split_and_merge.1} parent=1 // pred_region
      _
    $region5: #{split_and_merge.1} parent=1 // pred_fallthru
      _
    // Predicated region
    $region6: #{split_and_merge.1} parent=1 // pred_check
      _
    $region7: #{split_and_merge.1} parent=1 // pred_check_branch
      %11 = sbr.rel (0) target = $region9
    $region8: #{split_and_merge.1} parent=1 // pred_region
      _
    $region9: #{split_and_merge.1} parent=1 // pred_fallthru
      _
    %v12 = vld [vmem:[%s0] sm:$0xff]
    %v13 = vld [vmem:[%s0 + $0x8] sm:$0xff]
    %v14 = vld [vmem:[%s0 + $0x10] sm:$0xff]
    %v15 = vld [vmem:[%s0 + $0x18] sm:$0xff]
    %v16 = vld [vmem:[%s0 + $0x20] sm:$0xff]
    %v17 = vld [vmem:[%s0 + $0x28] sm:$0xff]
    %v18 = vld [vmem:[%s0 + $0x30] sm:$0xff]
    %v19 = vld [vmem:[%s0 + $0x38] sm:$0xff]
    %v20 = vld [vmem:[%s0 + $0x40] sm:$0xff]
    %v21 = vld [vmem:[%s0 + $0x48] sm:$0xff]
    %v22 = vld [vmem:[%s0 + $0x50] sm:$0xff]
    %v23 = vld [vmem:[%s0 + $0x58] sm:$0xff]
    %v24 = vld [vmem:[%s0 + $0x60] sm:$0xff]
    %v25 = vld [vmem:[%s0 + $0x68] sm:$0xff]
    %v26 = vld [vmem:[%s0 + $0x70] sm:$0xff]
    %v27 = vld [vmem:[%s0 + $0x78] sm:$0xff]
    %v28 = vld [vmem:[%s0 + $0x80] sm:$0xff]
    %v29 = vld [vmem:[%s0 + $0x88] sm:$0xff]
    %v30 = vld [vmem:[%s0 + $0x90] sm:$0xff]
    %v31 = vld [vmem:[%s0 + $0x98] sm:$0xff]
    %v32 = vld [vmem:[%s0 + $0xa0] sm:$0xff]
    %v33 = vld [vmem:[%s0 + $0xa8] sm:$0xff]
    %v34 = vld [vmem:[%s0 + $0xb0] sm:$0xff]
    %v35 = vld [vmem:[%s0 + $0xb8] sm:$0xff]
    %v36 = vld [vmem:[%s0 + $0xc0] sm:$0xff]
    %v37 = vld [vmem:[%s0 + $0xc8] sm:$0xff]
    %v38 = vld [vmem:[%s0 + $0xd0] sm:$0xff]
    %v39 = vld [vmem:[%s0 + $0xd8] sm:$0xff]
    %v40 = vld [vmem:[%s0 + $0xe0] sm:$0xff]
    %v41 = vld [vmem:[%s0 + $0xe8] sm:$0xff]
    %v42 = vld [vmem:[%s0 + $0xf0] sm:$0xff]
    %v43 = vld [vmem:[%s0 + $0xf8] sm:$0xff]
    %v44 = vld [vmem:[%s0 + $0x100] sm:$0xff]
    %v45 = vld [vmem:[%s0 + $0x108] sm:$0xff]
    %v46 = vld [vmem:[%s0 + $0x110] sm:$0xff]
    %v47 = vld [vmem:[%s0 + $0x118] sm:$0xff]
    %v48 = vld [vmem:[%s0 + $0x120] sm:$0xff]
    %v49 = vld [vmem:[%s0 + $0x128] sm:$0xff]
    %v50 = vld [vmem:[%s0 + $0x130] sm:$0xff]
    %v51 = vld [vmem:[%s0 + $0x138] sm:$0xff]
    %v52 = vld [vmem:[%s0 + $0x140] sm:$0xff]
    %v53 = vld [vmem:[%s0 + $0x148] sm:$0xff]
    %v54 = vld [vmem:[%s0 + $0x150] sm:$0xff]
    %v55 = vld [vmem:[%s0 + $0x158] sm:$0xff]
    %v56 = vld [vmem:[%s0 + $0x160] sm:$0xff]
    %v57 = vld [vmem:[%s0 + $0x168] sm:$0xff]
    %v58 = vld [vmem:[%s0 + $0x170] sm:$0xff]
    %v59 = vld [vmem:[%s0 + $0x178] sm:$0xff]
    %v60 = vld [vmem:[%s0 + $0x180] sm:$0xff]
    %v61 = vld [vmem:[%s0 + $0x188] sm:$0xff]
    %v62 = vld [vmem:[%s0 + $0x190] sm:$0xff]
    %v63 = vld [vmem:[%s0 + $0x198] sm:$0xff]
    %v64 = vld [vmem:[%s0 + $0x1a0] sm:$0xff]
    %v65 = vld [vmem:[%s0 + $0x1a8] sm:$0xff]
    %v66 = vld [vmem:[%s0 + $0x1b0] sm:$0xff]
    %v67 = vld [vmem:[%s0 + $0x1b8] sm:$0xff]
    %v68 = vld [vmem:[%s0 + $0x1c0] sm:$0xff]
    %v69 = vld [vmem:[%s0 + $0x1c8] sm:$0xff]
    %v70 = vld [vmem:[%s0 + $0x1d0] sm:$0xff]
    %v71 = vld [vmem:[%s0 + $0x1d8] sm:$0xff]
    %v72 = vld [vmem:[%s0 + $0x1e0] sm:$0xff]
    %v73 = vld [vmem:[%s0 + $0x1e8] sm:$0xff]
    %v74 = vld [vmem:[%s0 + $0x1f0] sm:$0xff]
    %v75 = vld [vmem:[%s0 + $0x1f8] sm:$0xff]
    %v76 = vld [vmem:[%s1] sm:$0xff]
    %v77 = vld [vmem:[%s1 + $0x8] sm:$0xff]
    %v78 = vld [vmem:[%s1 + $0x10] sm:$0xff]
    %v79 = vld [vmem:[%s1 + $0x18] sm:$0xff]
    %v80 = vld [vmem:[%s1 + $0x20] sm:$0x1f]
    %vm81 = vcmask 302080
    %v83 = vsel %vm81, %v12, 0
    %v86 = vsel %vm81, %v13, 0
    %v89 = vsel %vm81, %v14, 0
    %v92 = vsel %vm81, %v15, 0
    %v95 = vsel %vm81, %v16, 0
    %v98 = vsel %vm81, %v17, 0
    %v101 = vsel %vm81, %v18, 0
    %v104 = vsel %vm81, %v19, 0
    %v107 = vsel %vm81, %v20, 0
    %v110 = vsel %vm81, %v21, 0
    %v113 = vsel %vm81, %v22, 0
    %v116 = vsel %vm81, %v23, 0
    %v119 = vsel %vm81, %v24, 0
    %v122 = vsel %vm81, %v25, 0
    %v125 = vsel %vm81, %v26, 0
    %v128 = vsel %vm81, %v27, 0
    %v131 = vsel %vm81, %v28, 0
    %v134 = vsel %vm81, %v29, 0
    %v137 = vsel %vm81, %v30, 0
    %v140 = vsel %vm81, %v31, 0
    %v143 = vsel %vm81, %v32, 0
    %v146 = vsel %vm81, %v33, 0
    %v149 = vsel %vm81, %v34, 0
    %v152 = vsel %vm81, %v35, 0
    %v155 = vsel %vm81, %v36, 0
    %v158 = vsel %vm81, %v37, 0
    %v161 = vsel %vm81, %v38, 0
    %v164 = vsel %vm81, %v39, 0
    %v167 = vsel %vm81, %v40, 0
    %v170 = vsel %vm81, %v41, 0
    %v173 = vsel %vm81, %v42, 0
    %v176 = vsel %vm81, %v43, 0
    %v179 = vsel %vm81, %v44, 0
    %v182 = vsel %vm81, %v45, 0
    %v185 = vsel %vm81, %v46, 0
    %v188 = vsel %vm81, %v47, 0
    %v191 = vsel %vm81, %v48, 0
    %v194 = vsel %vm81, %v49, 0
    %v197 = vsel %vm81, %v50, 0
    %v200 = vsel %vm81, %v51, 0
    %v203 = vsel %vm81, %v52, 0
    %v206 = vsel %vm81, %v53, 0
    %v209 = vsel %vm81, %v54, 0
    %v212 = vsel %vm81, %v55, 0
    %v215 = vsel %vm81, %v56, 0
    %v218 = vsel %vm81, %v57, 0
    %v221 = vsel %vm81, %v58, 0
    %v224 = vsel %vm81, %v59, 0
    %v227 = vsel %vm81, %v60, 0
    %v230 = vsel %vm81, %v61, 0
    %v233 = vsel %vm81, %v62, 0
    %v236 = vsel %vm81, %v63, 0
    %v239 = vsel %vm81, %v64, 0
    %v242 = vsel %vm81, %v65, 0
    %v245 = vsel %vm81, %v66, 0
    %v248 = vsel %vm81, %v67, 0
    %v251 = vsel %vm81, %v68, 0
    %v254 = vsel %vm81, %v69, 0
    %v257 = vsel %vm81, %v70, 0
    %v260 = vsel %vm81, %v71, 0
    %v263 = vsel %vm81, %v72, 0
    %v266 = vsel %vm81, %v73, 0
    %v269 = vsel %vm81, %v74, 0
    %v272 = vsel %vm81, %v75, 0
    %vm274 = vcmask 1044480
    %v276 = vsel %vm274, %v80, 0
    %278 = vmatprep.subr.mxu0 0.0
    %279 = vmatpush1.msra.mxu0 0.0
    %280 = vmatprep.subr.mxu0 0.0
    %281 = vmatpush1.msra.mxu0 0.0
    %282 = vmatprep.subr.mxu0 0.0
    %283 = vmatpush1.msra.mxu0 0.0
    %284 = vmatprep.subr.mxu0 0.0
    %285 = vmatpush1.msra.mxu0 0.0
    %286 = vmatprep.subr.mxu0 0.0
    %287 = vmatpush1.msra.mxu0 0.0
    %288 = vmatprep.subr.mxu0 0.0
    %289 = vmatpush1.msra.mxu0 0.0
    %290 = vmatprep.subr.mxu0 0.0
    %291 = vmatpush1.msra.mxu0 0.0
    %292 = vmatprep.subr.mxu0 0.0
    %293 = vmatpush1.msra.mxu0 0.0
    %294 = vmatprep.subr.mxu0 0.0
    %295 = vmatpush1.msra.mxu0 0.0
    %296 = vmatprep.subr.mxu0 0.0
    %297 = vmatpush1.msra.mxu0 0.0
    %298 = vmatprep.subr.mxu0 0.0
    %299 = vmatpush1.msra.mxu0 0.0
    %300 = vmatprep.subr.mxu0 0.0
    %v301 = vand.u32 %v276, 4294901760
    %302 = vmatpush1.msra.mxu0 %v301
    %303 = vmatprep.subr.mxu0 0.0
    %v304 = vand.u32 %v79, 4294901760
    %305 = vmatpush1.msra.mxu0 %v304
    %306 = vmatprep.subr.mxu0 0.0
    %v307 = vand.u32 %v78, 4294901760
    %308 = vmatpush1.msra.mxu0 %v307
    %309 = vmatprep.subr.mxu0 0.0
    %v310 = vand.u32 %v77, 4294901760
    %311 = vmatpush1.msra.mxu0 %v310
    %312 = vmatprep.subr.mxu0 0.0
    %v313 = vand.u32 %v76, 4294901760
    %314 = vmatpush1.msra.mxu0 %v313
    %315 = vmatprep.subr.mxu0 0.0
    %316 = vmatpush2.msra.mxu0 0.0
    %317 = vmatprep.subr.mxu0 0.0
    %318 = vmatpush2.msra.mxu0 0.0
    %319 = vmatprep.subr.mxu0 0.0
    %320 = vmatpush2.msra.mxu0 0.0
    %321 = vmatprep.subr.mxu0 0.0
    %322 = vmatpush2.msra.mxu0 0.0
    %323 = vmatprep.subr.mxu0 0.0
    %324 = vmatpush2.msra.mxu0 0.0
    %325 = vmatprep.subr.mxu0 0.0
    %326 = vmatpush2.msra.mxu0 0.0
    %327 = vmatprep.subr.mxu0 0.0
    %328 = vmatpush2.msra.mxu0 0.0
    %329 = vmatprep.subr.mxu0 0.0
    %330 = vmatpush2.msra.mxu0 0.0
    %331 = vmatprep.subr.mxu0 0.0
    %332 = vmatpush2.msra.mxu0 0.0
    %333 = vmatprep.subr.mxu0 0.0
    %334 = vmatpush2.msra.mxu0 0.0
    %335 = vmatprep.subr.mxu0 0.0
    %336 = vmatpush2.msra.mxu0 0.0
    %337 = vmatprep.subr.mxu0 0.0
    %338 = vmatpush2.msra.mxu0 0.0
    %339 = vmatprep.subr.mxu0 0.0
    %340 = vmatpush2.msra.mxu0 0.0
    %341 = vmatprep.subr.mxu0 0.0
    %342 = vmatpush2.msra.mxu0 0.0
    %343 = vmatprep.subr.mxu0 0.0
    %344 = vmatpush2.msra.mxu0 0.0
    %345 = vmatprep.subr.mxu0 0.0
    %346 = vmatpush2.msra.mxu0 0.0
    %347 = vmatprep.mubr.f32.mxu0 0.0
    %v348 = vand.u32 %v83, 4294901760
    %v349 = vsub.f32 %v83, %v348
    %v350 = vand.u32 %v349, 4294901760
    %v351 = vsub.f32 %v349, %v350
    %v352 = vand.u32 %v351, 4294901760
    %353 = vmatmul.mubr.f32.gmra.mxu0 %v352
    %v354 = vpop.f32.mrf.mxu0
    %v355 = vadd.f32 0.0, %v354
    %v356 = vpop.f32.mrf.mxu0
    %357 = vmatprep.mubr.f32.mxu0 0.0
    %v358 = vand.u32 %v86, 4294901760
    %v359 = vsub.f32 %v86, %v358
    %v360 = vand.u32 %v359, 4294901760
    %v361 = vsub.f32 %v359, %v360
    %v362 = vand.u32 %v361, 4294901760
    %363 = vmatmul.mubr.f32.gmra.mxu0 %v362
    %v364 = vpop.f32.mrf.mxu0
    %v365 = vadd.f32 0.0, %v364
    %v366 = vpop.f32.mrf.mxu0
    %367 = vmatprep.mubr.f32.mxu0 0.0
    %v368 = vand.u32 %v89, 4294901760
    %v369 = vsub.f32 %v89, %v368
    %v370 = vand.u32 %v369, 4294901760
    %v371 = vsub.f32 %v369, %v370
    %v372 = vand.u32 %v371, 4294901760
    %373 = vmatmul.mubr.f32.gmra.mxu0 %v372
    %v374 = vpop.f32.mrf.mxu0
    %v375 = vadd.f32 0.0, %v374
    %v376 = vpop.f32.mrf.mxu0
    %377 = vmatprep.mubr.f32.mxu0 0.0
    %v378 = vand.u32 %v92, 4294901760
    %v379 = vsub.f32 %v92, %v378
    %v380 = vand.u32 %v379, 4294901760
    %v381 = vsub.f32 %v379, %v380
    %v382 = vand.u32 %v381, 4294901760
    %383 = vmatmul.mubr.f32.gmra.mxu0 %v382
    %v384 = vpop.f32.mrf.mxu0
    %v385 = vadd.f32 0.0, %v384
    %v386 = vpop.f32.mrf.mxu0
    %387 = vmatprep.mubr.f32.mxu0 0.0
    %v388 = vand.u32 %v95, 4294901760
    %v389 = vsub.f32 %v95, %v388
    %v390 = vand.u32 %v389, 4294901760
    %v391 = vsub.f32 %v389, %v390
    %v392 = vand.u32 %v391, 4294901760
    %393 = vmatmul.mubr.f32.gmra.mxu0 %v392
    %v394 = vpop.f32.mrf.mxu0
    %v395 = vadd.f32 0.0, %v394
    %v396 = vpop.f32.mrf.mxu0
    %397 = vmatprep.mubr.f32.mxu0 0.0
    %v398 = vand.u32 %v98, 4294901760
    %v399 = vsub.f32 %v98, %v398
    %v400 = vand.u32 %v399, 4294901760
    %v401 = vsub.f32 %v399, %v400
    %v402 = vand.u32 %v401, 4294901760
    %403 = vmatmul.mubr.f32.gmra.mxu0 %v402
    %v404 = vpop.f32.mrf.mxu0
    %v405 = vadd.f32 0.0, %v404
    %v406 = vpop.f32.mrf.mxu0
    %407 = vmatprep.mubr.f32.mxu0 0.0
    %v408 = vand.u32 %v101, 4294901760
    %v409 = vsub.f32 %v101, %v408
    %v410 = vand.u32 %v409, 4294901760
    %v411 = vsub.f32 %v409, %v410
    %v412 = vand.u32 %v411, 4294901760
    %413 = vmatmul.mubr.f32.gmra.mxu0 %v412
    %v414 = vpop.f32.mrf.mxu0
    %v415 = vadd.f32 0.0, %v414
    %v416 = vpop.f32.mrf.mxu0
    %417 = vmatprep.mubr.f32.mxu0 0.0
    %v418 = vand.u32 %v104, 4294901760
    %v419 = vsub.f32 %v104, %v418
    %v420 = vand.u32 %v419, 4294901760
    %v421 = vsub.f32 %v419, %v420
    %v422 = vand.u32 %v421, 4294901760
    %423 = vmatmul.mubr.f32.gmra.mxu0 %v422
    %v424 = vpop.f32.mrf.mxu0
    %v425 = vadd.f32 0.0, %v424
    %v426 = vpop.f32.mrf.mxu0
    %427 = vmatprep.mubr.f32.mxu0 0.0
    %v428 = vand.u32 %v107, 4294901760
    %v429 = vsub.f32 %v107, %v428
    %v430 = vand.u32 %v429, 4294901760
    %v431 = vsub.f32 %v429, %v430
    %v432 = vand.u32 %v431, 4294901760
    %433 = vmatmul.mubr.f32.gmra.mxu0 %v432
    %v434 = vpop.f32.mrf.mxu0
    %v435 = vadd.f32 0.0, %v434
    %v436 = vpop.f32.mrf.mxu0
    %437 = vmatprep.mubr.f32.mxu0 0.0
    %v438 = vand.u32 %v110, 4294901760
    %v439 = vsub.f32 %v110, %v438
    %v440 = vand.u32 %v439, 4294901760
    %v441 = vsub.f32 %v439, %v440
    %v442 = vand.u32 %v441, 4294901760
    %443 = vmatmul.mubr.f32.gmra.mxu0 %v442
    %v444 = vpop.f32.mrf.mxu0
    %v445 = vadd.f32 0.0, %v444
    %v446 = vpop.f32.mrf.mxu0
    %447 = vmatprep.mubr.f32.mxu0 0.0
    %v448 = vand.u32 %v113, 4294901760
    %v449 = vsub.f32 %v113, %v448
    %v450 = vand.u32 %v449, 4294901760
    %v451 = vsub.f32 %v449, %v450
    %v452 = vand.u32 %v451, 4294901760
    %453 = vmatmul.mubr.f32.gmra.mxu0 %v452
    %v454 = vpop.f32.mrf.mxu0
    %v455 = vadd.f32 0.0, %v454
    %v456 = vpop.f32.mrf.mxu0
    %457 = vmatprep.mubr.f32.mxu0 0.0
    %v458 = vand.u32 %v116, 4294901760
    %v459 = vsub.f32 %v116, %v458
    %v460 = vand.u32 %v459, 4294901760
    %v461 = vsub.f32 %v459, %v460
    %v462 = vand.u32 %v461, 4294901760
    %463 = vmatmul.mubr.f32.gmra.mxu0 %v462
    %v464 = vpop.f32.mrf.mxu0
    %v465 = vadd.f32 0.0, %v464
    %v466 = vpop.f32.mrf.mxu0
    %467 = vmatprep.mubr.f32.mxu0 0.0
    %v468 = vand.u32 %v119, 4294901760
    %v469 = vsub.f32 %v119, %v468
    %v470 = vand.u32 %v469, 4294901760
    %v471 = vsub.f32 %v469, %v470
    %v472 = vand.u32 %v471, 4294901760
    %473 = vmatmul.mubr.f32.gmra.mxu0 %v472
    %v474 = vpop.f32.mrf.mxu0
    %v475 = vadd.f32 0.0, %v474
    %v476 = vpop.f32.mrf.mxu0
    %477 = vmatprep.mubr.f32.mxu0 0.0
    %v478 = vand.u32 %v122, 4294901760
    %v479 = vsub.f32 %v122, %v478
    %v480 = vand.u32 %v479, 4294901760
    %v481 = vsub.f32 %v479, %v480
    %v482 = vand.u32 %v481, 4294901760
    %483 = vmatmul.mubr.f32.gmra.mxu0 %v482
    %v484 = vpop.f32.mrf.mxu0
    %v485 = vadd.f32 0.0, %v484
    %v486 = vpop.f32.mrf.mxu0
    %487 = vmatprep.mubr.f32.mxu0 0.0
    %v488 = vand.u32 %v125, 4294901760
    %v489 = vsub.f32 %v125, %v488
    %v490 = vand.u32 %v489, 4294901760
    %v491 = vsub.f32 %v489, %v490
    %v492 = vand.u32 %v491, 4294901760
    %493 = vmatmul.mubr.f32.gmra.mxu0 %v492
    %v494 = vpop.f32.mrf.mxu0
    %v495 = vadd.f32 0.0, %v494
    %v496 = vpop.f32.mrf.mxu0
    %497 = vmatprep.mubr.f32.mxu0 0.0
    %v498 = vand.u32 %v128, 4294901760
    %v499 = vsub.f32 %v128, %v498
    %v500 = vand.u32 %v499, 4294901760
    %v501 = vsub.f32 %v499, %v500
    %v502 = vand.u32 %v501, 4294901760
    %503 = vmatmul.mubr.f32.gmra.mxu0 %v502
    %v504 = vpop.f32.mrf.mxu0
    %v505 = vadd.f32 0.0, %v504
    %v506 = vpop.f32.mrf.mxu0
    %507 = vmatprep.mubr.f32.mxu0 0.0
    %v508 = vand.u32 %v131, 4294901760
    %v509 = vsub.f32 %v131, %v508
    %v510 = vand.u32 %v509, 4294901760
    %v511 = vsub.f32 %v509, %v510
    %v512 = vand.u32 %v511, 4294901760
    %513 = vmatmul.mubr.f32.gmra.mxu0 %v512
    %v514 = vpop.f32.mrf.mxu0
    %v515 = vadd.f32 0.0, %v514
    %v516 = vpop.f32.mrf.mxu0
    %517 = vmatprep.mubr.f32.mxu0 0.0
    %v518 = vand.u32 %v134, 4294901760
    %v519 = vsub.f32 %v134, %v518
    %v520 = vand.u32 %v519, 4294901760
    %v521 = vsub.f32 %v519, %v520
    %v522 = vand.u32 %v521, 4294901760
    %523 = vmatmul.mubr.f32.gmra.mxu0 %v522
    %v524 = vpop.f32.mrf.mxu0
    %v525 = vadd.f32 0.0, %v524
    %v526 = vpop.f32.mrf.mxu0
    %527 = vmatprep.mubr.f32.mxu0 0.0
    %v528 = vand.u32 %v137, 4294901760
    %v529 = vsub.f32 %v137, %v528
    %v530 = vand.u32 %v529, 4294901760
    %v531 = vsub.f32 %v529, %v530
    %v532 = vand.u32 %v531, 4294901760
    %533 = vmatmul.mubr.f32.gmra.mxu0 %v532
    %v534 = vpop.f32.mrf.mxu0
    %v535 = vadd.f32 0.0, %v534
    %v536 = vpop.f32.mrf.mxu0
    %537 = vmatprep.mubr.f32.mxu0 0.0
    %v538 = vand.u32 %v140, 4294901760
    %v539 = vsub.f32 %v140, %v538
    %v540 = vand.u32 %v539, 4294901760
    %v541 = vsub.f32 %v539, %v540
    %v542 = vand.u32 %v541, 4294901760
    %543 = vmatmul.mubr.f32.gmra.mxu0 %v542
    %v544 = vpop.f32.mrf.mxu0
    %v545 = vadd.f32 0.0, %v544
    %v546 = vpop.f32.mrf.mxu0
    %547 = vmatprep.mubr.f32.mxu0 0.0
    %v548 = vand.u32 %v143, 4294901760
    %v549 = vsub.f32 %v143, %v548
    %v550 = vand.u32 %v549, 4294901760
    %v551 = vsub.f32 %v549, %v550
    %v552 = vand.u32 %v551, 4294901760
    %553 = vmatmul.mubr.f32.gmra.mxu0 %v552
    %v554 = vpop.f32.mrf.mxu0
    %v555 = vadd.f32 0.0, %v554
    %v556 = vpop.f32.mrf.mxu0
    %557 = vmatprep.mubr.f32.mxu0 0.0
    %v558 = vand.u32 %v146, 4294901760
    %v559 = vsub.f32 %v146, %v558
    %v560 = vand.u32 %v559, 4294901760
    %v561 = vsub.f32 %v559, %v560
    %v562 = vand.u32 %v561, 4294901760
    %563 = vmatmul.mubr.f32.gmra.mxu0 %v562
    %v564 = vpop.f32.mrf.mxu0
    %v565 = vadd.f32 0.0, %v564
    %v566 = vpop.f32.mrf.mxu0
    %567 = vmatprep.mubr.f32.mxu0 0.0
    %v568 = vand.u32 %v149, 4294901760
    %v569 = vsub.f32 %v149, %v568
    %v570 = vand.u32 %v569, 4294901760
    %v571 = vsub.f32 %v569, %v570
    %v572 = vand.u32 %v571, 4294901760
    %573 = vmatmul.mubr.f32.gmra.mxu0 %v572
    %v574 = vpop.f32.mrf.mxu0
    %v575 = vadd.f32 0.0, %v574
    %v576 = vpop.f32.mrf.mxu0
    %577 = vmatprep.mubr.f32.mxu0 0.0
    %v578 = vand.u32 %v152, 4294901760
    %v579 = vsub.f32 %v152, %v578
    %v580 = vand.u32 %v579, 4294901760
    %v581 = vsub.f32 %v579, %v580
    %v582 = vand.u32 %v581, 4294901760
    %583 = vmatmul.mubr.f32.gmra.mxu0 %v582
    %v584 = vpop.f32.mrf.mxu0
    %v585 = vadd.f32 0.0, %v584
    %v586 = vpop.f32.mrf.mxu0
    %587 = vmatprep.mubr.f32.mxu0 0.0
    %v588 = vand.u32 %v155, 4294901760
    %v589 = vsub.f32 %v155, %v588
    %v590 = vand.u32 %v589, 4294901760
    %v591 = vsub.f32 %v589, %v590
    %v592 = vand.u32 %v591, 4294901760
    %593 = vmatmul.mubr.f32.gmra.mxu0 %v592
    %v594 = vpop.f32.mrf.mxu0
    %v595 = vadd.f32 0.0, %v594
    %v596 = vpop.f32.mrf.mxu0
    %597 = vmatprep.mubr.f32.mxu0 0.0
    %v598 = vand.u32 %v158, 4294901760
    %v599 = vsub.f32 %v158, %v598
    %v600 = vand.u32 %v599, 4294901760
    %v601 = vsub.f32 %v599, %v600
    %v602 = vand.u32 %v601, 4294901760
    %603 = vmatmul.mubr.f32.gmra.mxu0 %v602
    %v604 = vpop.f32.mrf.mxu0
    %v605 = vadd.f32 0.0, %v604
    %v606 = vpop.f32.mrf.mxu0
    %607 = vmatprep.mubr.f32.mxu0 0.0
    %v608 = vand.u32 %v161, 4294901760
    %v609 = vsub.f32 %v161, %v608
    %v610 = vand.u32 %v609, 4294901760
    %v611 = vsub.f32 %v609, %v610
    %v612 = vand.u32 %v611, 4294901760
    %613 = vmatmul.mubr.f32.gmra.mxu0 %v612
    %v614 = vpop.f32.mrf.mxu0
    %v615 = vadd.f32 0.0, %v614
    %v616 = vpop.f32.mrf.mxu0
    %617 = vmatprep.mubr.f32.mxu0 0.0
    %v618 = vand.u32 %v164, 4294901760
    %v619 = vsub.f32 %v164, %v618
    %v620 = vand.u32 %v619, 4294901760
    %v621 = vsub.f32 %v619, %v620
    %v622 = vand.u32 %v621, 4294901760
    %623 = vmatmul.mubr.f32.gmra.mxu0 %v622
    %v624 = vpop.f32.mrf.mxu0
    %v625 = vadd.f32 0.0, %v624
    %v626 = vpop.f32.mrf.mxu0
    %627 = vmatprep.mubr.f32.mxu0 0.0
    %v628 = vand.u32 %v167, 4294901760
    %v629 = vsub.f32 %v167, %v628
    %v630 = vand.u32 %v629, 4294901760
    %v631 = vsub.f32 %v629, %v630
    %v632 = vand.u32 %v631, 4294901760
    %633 = vmatmul.mubr.f32.gmra.mxu0 %v632
    %v634 = vpop.f32.mrf.mxu0
    %v635 = vadd.f32 0.0, %v634
    %v636 = vpop.f32.mrf.mxu0
    %637 = vmatprep.mubr.f32.mxu0 0.0
    %v638 = vand.u32 %v170, 4294901760
    %v639 = vsub.f32 %v170, %v638
    %v640 = vand.u32 %v639, 4294901760
    %v641 = vsub.f32 %v639, %v640
    %v642 = vand.u32 %v641, 4294901760
    %643 = vmatmul.mubr.f32.gmra.mxu0 %v642
    %v644 = vpop.f32.mrf.mxu0
    %v645 = vadd.f32 0.0, %v644
    %v646 = vpop.f32.mrf.mxu0
    %647 = vmatprep.mubr.f32.mxu0 0.0
    %v648 = vand.u32 %v173, 4294901760
    %v649 = vsub.f32 %v173, %v648
    %v650 = vand.u32 %v649, 4294901760
    %v651 = vsub.f32 %v649, %v650
    %v652 = vand.u32 %v651, 4294901760
    %653 = vmatmul.mubr.f32.gmra.mxu0 %v652
    %v654 = vpop.f32.mrf.mxu0
    %v655 = vadd.f32 0.0, %v654
    %v656 = vpop.f32.mrf.mxu0
    %657 = vmatprep.mubr.f32.mxu0 0.0
    %v658 = vand.u32 %v176, 4294901760
    %v659 = vsub.f32 %v176, %v658
    %v660 = vand.u32 %v659, 4294901760
    %v661 = vsub.f32 %v659, %v660
    %v662 = vand.u32 %v661, 4294901760
    %663 = vmatmul.mubr.f32.gmra.mxu0 %v662
    %v664 = vpop.f32.mrf.mxu0
    %v665 = vadd.f32 0.0, %v664
    %v666 = vpop.f32.mrf.mxu0
    %667 = vmatprep.mubr.f32.mxu0 0.0
    %v668 = vand.u32 %v179, 4294901760
    %v669 = vsub.f32 %v179, %v668
    %v670 = vand.u32 %v669, 4294901760
    %v671 = vsub.f32 %v669, %v670
    %v672 = vand.u32 %v671, 4294901760
    %673 = vmatmul.mubr.f32.gmra.mxu0 %v672
    %v674 = vpop.f32.mrf.mxu0
    %v675 = vadd.f32 0.0, %v674
    %v676 = vpop.f32.mrf.mxu0
    %677 = vmatprep.mubr.f32.mxu0 0.0
    %v678 = vand.u32 %v182, 4294901760
    %v679 = vsub.f32 %v182, %v678
    %v680 = vand.u32 %v679, 4294901760
    %v681 = vsub.f32 %v679, %v680
    %v682 = vand.u32 %v681, 4294901760
    %683 = vmatmul.mubr.f32.gmra.mxu0 %v682
    %v684 = vpop.f32.mrf.mxu0
    %v685 = vadd.f32 0.0, %v684
    %v686 = vpop.f32.mrf.mxu0
    %687 = vmatprep.mubr.f32.mxu0 0.0
    %v688 = vand.u32 %v185, 4294901760
    %v689 = vsub.f32 %v185, %v688
    %v690 = vand.u32 %v689, 4294901760
    %v691 = vsub.f32 %v689, %v690
    %v692 = vand.u32 %v691, 4294901760
    %693 = vmatmul.mubr.f32.gmra.mxu0 %v692
    %v694 = vpop.f32.mrf.mxu0
    %v695 = vadd.f32 0.0, %v694
    %v696 = vpop.f32.mrf.mxu0
    %697 = vmatprep.mubr.f32.mxu0 0.0
    %v698 = vand.u32 %v188, 4294901760
    %v699 = vsub.f32 %v188, %v698
    %v700 = vand.u32 %v699, 4294901760
    %v701 = vsub.f32 %v699, %v700
    %v702 = vand.u32 %v701, 4294901760
    %703 = vmatmul.mubr.f32.gmra.mxu0 %v702
    %v704 = vpop.f32.mrf.mxu0
    %v705 = vadd.f32 0.0, %v704
    %v706 = vpop.f32.mrf.mxu0
    %707 = vmatprep.mubr.f32.mxu0 0.0
    %v708 = vand.u32 %v191, 4294901760
    %v709 = vsub.f32 %v191, %v708
    %v710 = vand.u32 %v709, 4294901760
    %v711 = vsub.f32 %v709, %v710
    %v712 = vand.u32 %v711, 4294901760
    %713 = vmatmul.mubr.f32.gmra.mxu0 %v712
    %v714 = vpop.f32.mrf.mxu0
    %v715 = vadd.f32 0.0, %v714
    %v716 = vpop.f32.mrf.mxu0
    %717 = vmatprep.mubr.f32.mxu0 0.0
    %v718 = vand.u32 %v194, 4294901760
    %v719 = vsub.f32 %v194, %v718
    %v720 = vand.u32 %v719, 4294901760
    %v721 = vsub.f32 %v719, %v720
    %v722 = vand.u32 %v721, 4294901760
    %723 = vmatmul.mubr.f32.gmra.mxu0 %v722
    %v724 = vpop.f32.mrf.mxu0
    %v725 = vadd.f32 0.0, %v724
    %v726 = vpop.f32.mrf.mxu0
    %727 = vmatprep.mubr.f32.mxu0 0.0
    %v728 = vand.u32 %v197, 4294901760
    %v729 = vsub.f32 %v197, %v728
    %v730 = vand.u32 %v729, 4294901760
    %v731 = vsub.f32 %v729, %v730
    %v732 = vand.u32 %v731, 4294901760
    %733 = vmatmul.mubr.f32.gmra.mxu0 %v732
    %v734 = vpop.f32.mrf.mxu0
    %v735 = vadd.f32 0.0, %v734
    %v736 = vpop.f32.mrf.mxu0
    %737 = vmatprep.mubr.f32.mxu0 0.0
    %v738 = vand.u32 %v200, 4294901760
    %v739 = vsub.f32 %v200, %v738
    %v740 = vand.u32 %v739, 4294901760
    %v741 = vsub.f32 %v739, %v740
    %v742 = vand.u32 %v741, 4294901760
    %743 = vmatmul.mubr.f32.gmra.mxu0 %v742
    %v744 = vpop.f32.mrf.mxu0
    %v745 = vadd.f32 0.0, %v744
    %v746 = vpop.f32.mrf.mxu0
    %747 = vmatprep.mubr.f32.mxu0 0.0
    %v748 = vand.u32 %v203, 4294901760
    %v749 = vsub.f32 %v203, %v748
    %v750 = vand.u32 %v749, 4294901760
    %v751 = vsub.f32 %v749, %v750
    %v752 = vand.u32 %v751, 4294901760
    %753 = vmatmul.mubr.f32.gmra.mxu0 %v752
    %v754 = vpop.f32.mrf.mxu0
    %v755 = vadd.f32 0.0, %v754
    %v756 = vpop.f32.mrf.mxu0
    %757 = vmatprep.mubr.f32.mxu0 0.0
    %v758 = vand.u32 %v206, 4294901760
    %v759 = vsub.f32 %v206, %v758
    %v760 = vand.u32 %v759, 4294901760
    %v761 = vsub.f32 %v759, %v760
    %v762 = vand.u32 %v761, 4294901760
    %763 = vmatmul.mubr.f32.gmra.mxu0 %v762
    %v764 = vpop.f32.mrf.mxu0
    %v765 = vadd.f32 0.0, %v764
    %v766 = vpop.f32.mrf.mxu0
    %767 = vmatprep.mubr.f32.mxu0 0.0
    %v768 = vand.u32 %v209, 4294901760
    %v769 = vsub.f32 %v209, %v768
    %v770 = vand.u32 %v769, 4294901760
    %v771 = vsub.f32 %v769, %v770
    %v772 = vand.u32 %v771, 4294901760
    %773 = vmatmul.mubr.f32.gmra.mxu0 %v772
    %v774 = vpop.f32.mrf.mxu0
    %v775 = vadd.f32 0.0, %v774
    %v776 = vpop.f32.mrf.mxu0
    %777 = vmatprep.mubr.f32.mxu0 0.0
    %v778 = vand.u32 %v212, 4294901760
    %v779 = vsub.f32 %v212, %v778
    %v780 = vand.u32 %v779, 4294901760
    %v781 = vsub.f32 %v779, %v780
    %v782 = vand.u32 %v781, 4294901760
    %783 = vmatmul.mubr.f32.gmra.mxu0 %v782
    %v784 = vpop.f32.mrf.mxu0
    %v785 = vadd.f32 0.0, %v784
    %v786 = vpop.f32.mrf.mxu0
    %787 = vmatprep.mubr.f32.mxu0 0.0
    %v788 = vand.u32 %v215, 4294901760
    %v789 = vsub.f32 %v215, %v788
    %v790 = vand.u32 %v789, 4294901760
    %v791 = vsub.f32 %v789, %v790
    %v792 = vand.u32 %v791, 4294901760
    %793 = vmatmul.mubr.f32.gmra.mxu0 %v792
    %v794 = vpop.f32.mrf.mxu0
    %v795 = vadd.f32 0.0, %v794
    %v796 = vpop.f32.mrf.mxu0
    %797 = vmatprep.mubr.f32.mxu0 0.0
    %v798 = vand.u32 %v218, 4294901760
    %v799 = vsub.f32 %v218, %v798
    %v800 = vand.u32 %v799, 4294901760
    %v801 = vsub.f32 %v799, %v800
    %v802 = vand.u32 %v801, 4294901760
    %803 = vmatmul.mubr.f32.gmra.mxu0 %v802
    %v804 = vpop.f32.mrf.mxu0
    %v805 = vadd.f32 0.0, %v804
    %v806 = vpop.f32.mrf.mxu0
    %807 = vmatprep.mubr.f32.mxu0 0.0
    %v808 = vand.u32 %v221, 4294901760
    %v809 = vsub.f32 %v221, %v808
    %v810 = vand.u32 %v809, 4294901760
    %v811 = vsub.f32 %v809, %v810
    %v812 = vand.u32 %v811, 4294901760
    %813 = vmatmul.mubr.f32.gmra.mxu0 %v812
    %v814 = vpop.f32.mrf.mxu0
    %v815 = vadd.f32 0.0, %v814
    %v816 = vpop.f32.mrf.mxu0
    %817 = vmatprep.mubr.f32.mxu0 0.0
    %v818 = vand.u32 %v224, 4294901760
    %v819 = vsub.f32 %v224, %v818
    %v820 = vand.u32 %v819, 4294901760
    %v821 = vsub.f32 %v819, %v820
    %v822 = vand.u32 %v821, 4294901760
    %823 = vmatmul.mubr.f32.gmra.mxu0 %v822
    %v824 = vpop.f32.mrf.mxu0
    %v825 = vadd.f32 0.0, %v824
    %v826 = vpop.f32.mrf.mxu0
    %827 = vmatprep.mubr.f32.mxu0 0.0
    %v828 = vand.u32 %v227, 4294901760
    %v829 = vsub.f32 %v227, %v828
    %v830 = vand.u32 %v829, 4294901760
    %v831 = vsub.f32 %v829, %v830
    %v832 = vand.u32 %v831, 4294901760
    %833 = vmatmul.mubr.f32.gmra.mxu0 %v832
    %v834 = vpop.f32.mrf.mxu0
    %v835 = vadd.f32 0.0, %v834
    %v836 = vpop.f32.mrf.mxu0
    %837 = vmatprep.mubr.f32.mxu0 0.0
    %v838 = vand.u32 %v230, 4294901760
    %v839 = vsub.f32 %v230, %v838
    %v840 = vand.u32 %v839, 4294901760
    %v841 = vsub.f32 %v839, %v840
    %v842 = vand.u32 %v841, 4294901760
    %843 = vmatmul.mubr.f32.gmra.mxu0 %v842
    %v844 = vpop.f32.mrf.mxu0
    %v845 = vadd.f32 0.0, %v844
    %v846 = vpop.f32.mrf.mxu0
    %847 = vmatprep.mubr.f32.mxu0 0.0
    %v848 = vand.u32 %v233, 4294901760
    %v849 = vsub.f32 %v233, %v848
    %v850 = vand.u32 %v849, 4294901760
    %v851 = vsub.f32 %v849, %v850
    %v852 = vand.u32 %v851, 4294901760
    %853 = vmatmul.mubr.f32.gmra.mxu0 %v852
    %v854 = vpop.f32.mrf.mxu0
    %v855 = vadd.f32 0.0, %v854
    %v856 = vpop.f32.mrf.mxu0
    %857 = vmatprep.mubr.f32.mxu0 0.0
    %v858 = vand.u32 %v236, 4294901760
    %v859 = vsub.f32 %v236, %v858
    %v860 = vand.u32 %v859, 4294901760
    %v861 = vsub.f32 %v859, %v860
    %v862 = vand.u32 %v861, 4294901760
    %863 = vmatmul.mubr.f32.gmra.mxu0 %v862
    %v864 = vpop.f32.mrf.mxu0
    %v865 = vadd.f32 0.0, %v864
    %v866 = vpop.f32.mrf.mxu0
    %867 = vmatprep.mubr.f32.mxu0 0.0
    %v868 = vand.u32 %v239, 4294901760
    %v869 = vsub.f32 %v239, %v868
    %v870 = vand.u32 %v869, 4294901760
    %v871 = vsub.f32 %v869, %v870
    %v872 = vand.u32 %v871, 4294901760
    %873 = vmatmul.mubr.f32.gmra.mxu0 %v872
    %v874 = vpop.f32.mrf.mxu0
    %v875 = vadd.f32 0.0, %v874
    %v876 = vpop.f32.mrf.mxu0
    %877 = vmatprep.mubr.f32.mxu0 0.0
    %v878 = vand.u32 %v242, 4294901760
    %v879 = vsub.f32 %v242, %v878
    %v880 = vand.u32 %v879, 4294901760
    %v881 = vsub.f32 %v879, %v880
    %v882 = vand.u32 %v881, 4294901760
    %883 = vmatmul.mubr.f32.gmra.mxu0 %v882
    %v884 = vpop.f32.mrf.mxu0
    %v885 = vadd.f32 0.0, %v884
    %v886 = vpop.f32.mrf.mxu0
    %887 = vmatprep.mubr.f32.mxu0 0.0
    %v888 = vand.u32 %v245, 4294901760
    %v889 = vsub.f32 %v245, %v888
    %v890 = vand.u32 %v889, 4294901760
    %v891 = vsub.f32 %v889, %v890
    %v892 = vand.u32 %v891, 4294901760
    %893 = vmatmul.mubr.f32.gmra.mxu0 %v892
    %v894 = vpop.f32.mrf.mxu0
    %v895 = vadd.f32 0.0, %v894
    %v896 = vpop.f32.mrf.mxu0
    %897 = vmatprep.mubr.f32.mxu0 0.0
    %v898 = vand.u32 %v248, 4294901760
    %v899 = vsub.f32 %v248, %v898
    %v900 = vand.u32 %v899, 4294901760
    %v901 = vsub.f32 %v899, %v900
    %v902 = vand.u32 %v901, 4294901760
    %903 = vmatmul.mubr.f32.gmra.mxu0 %v902
    %v904 = vpop.f32.mrf.mxu0
    %v905 = vadd.f32 0.0, %v904
    %v906 = vpop.f32.mrf.mxu0
    %907 = vmatprep.mubr.f32.mxu0 0.0
    %v908 = vand.u32 %v251, 4294901760
    %v909 = vsub.f32 %v251, %v908
    %v910 = vand.u32 %v909, 4294901760
    %v911 = vsub.f32 %v909, %v910
    %v912 = vand.u32 %v911, 4294901760
    %913 = vmatmul.mubr.f32.gmra.mxu0 %v912
    %v914 = vpop.f32.mrf.mxu0
    %v915 = vadd.f32 0.0, %v914
    %v916 = vpop.f32.mrf.mxu0
    %917 = vmatprep.mubr.f32.mxu0 0.0
    %v918 = vand.u32 %v254, 4294901760
    %v919 = vsub.f32 %v254, %v918
    %v920 = vand.u32 %v919, 4294901760
    %v921 = vsub.f32 %v919, %v920
    %v922 = vand.u32 %v921, 4294901760
    %923 = vmatmul.mubr.f32.gmra.mxu0 %v922
    %v924 = vpop.f32.mrf.mxu0
    %v925 = vadd.f32 0.0, %v924
    %v926 = vpop.f32.mrf.mxu0
    %927 = vmatprep.mubr.f32.mxu0 0.0
    %v928 = vand.u32 %v257, 4294901760
    %v929 = vsub.f32 %v257, %v928
    %v930 = vand.u32 %v929, 4294901760
    %v931 = vsub.f32 %v929, %v930
    %v932 = vand.u32 %v931, 4294901760
    %933 = vmatmul.mubr.f32.gmra.mxu0 %v932
    %v934 = vpop.f32.mrf.mxu0
    %v935 = vadd.f32 0.0, %v934
    %v936 = vpop.f32.mrf.mxu0
    %937 = vmatprep.mubr.f32.mxu0 0.0
    %v938 = vand.u32 %v260, 4294901760
    %v939 = vsub.f32 %v260, %v938
    %v940 = vand.u32 %v939, 4294901760
    %v941 = vsub.f32 %v939, %v940
    %v942 = vand.u32 %v941, 4294901760
    %943 = vmatmul.mubr.f32.gmra.mxu0 %v942
    %v944 = vpop.f32.mrf.mxu0
    %v945 = vadd.f32 0.0, %v944
    %v946 = vpop.f32.mrf.mxu0
    %947 = vmatprep.mubr.f32.mxu0 0.0
    %v948 = vand.u32 %v263, 4294901760
    %v949 = vsub.f32 %v263, %v948
    %v950 = vand.u32 %v949, 4294901760
    %v951 = vsub.f32 %v949, %v950
    %v952 = vand.u32 %v951, 4294901760
    %953 = vmatmul.mubr.f32.gmra.mxu0 %v952
    %v954 = vpop.f32.mrf.mxu0
    %v955 = vadd.f32 0.0, %v954
    %v956 = vpop.f32.mrf.mxu0
    %957 = vmatprep.mubr.f32.mxu0 0.0
    %v958 = vand.u32 %v266, 4294901760
    %v959 = vsub.f32 %v266, %v958
    %v960 = vand.u32 %v959, 4294901760
    %v961 = vsub.f32 %v959, %v960
    %v962 = vand.u32 %v961, 4294901760
    %963 = vmatmul.mubr.f32.gmra.mxu0 %v962
    %v964 = vpop.f32.mrf.mxu0
    %v965 = vadd.f32 0.0, %v964
    %v966 = vpop.f32.mrf.mxu0
    %967 = vmatprep.mubr.f32.mxu0 0.0
    %v968 = vand.u32 %v269, 4294901760
    %v969 = vsub.f32 %v269, %v968
    %v970 = vand.u32 %v969, 4294901760
    %v971 = vsub.f32 %v969, %v970
    %v972 = vand.u32 %v971, 4294901760
    %973 = vmatmul.mubr.f32.gmra.mxu0 %v972
    %v974 = vpop.f32.mrf.mxu0
    %v975 = vadd.f32 0.0, %v974
    %v976 = vpop.f32.mrf.mxu0
    %977 = vmatprep.mubr.f32.mxu0 0.0
    %v978 = vand.u32 %v272, 4294901760
    %v979 = vsub.f32 %v272, %v978
    %v980 = vand.u32 %v979, 4294901760
    %v981 = vsub.f32 %v979, %v980
    %v982 = vand.u32 %v981, 4294901760
    %983 = vmatmul.mubr.f32.gmra.mxu0 %v982
    %v984 = vpop.f32.mrf.mxu0
    %v985 = vadd.f32 0.0, %v984
    %v986 = vpop.f32.mrf.mxu0
    %987 = vdwg.mxu0
    %988 = vmatprep.subr.mxu0 0.0
    %989 = vmatpush1.msra.mxu0 0.0
    %990 = vmatprep.subr.mxu0 0.0
    %991 = vmatpush1.msra.mxu0 0.0
    %992 = vmatprep.subr.mxu0 0.0
    %993 = vmatpush1.msra.mxu0 0.0
    %994 = vmatprep.subr.mxu0 0.0
    %995 = vmatpush1.msra.mxu0 0.0
    %996 = vmatprep.subr.mxu0 0.0
    %997 = vmatpush1.msra.mxu0 0.0
    %998 = vmatprep.subr.mxu0 0.0
    %999 = vmatpush1.msra.mxu0 0.0
    %1000 = vmatprep.subr.mxu0 0.0
    %1001 = vmatpush1.msra.mxu0 0.0
    %1002 = vmatprep.subr.mxu0 0.0
    %1003 = vmatpush1.msra.mxu0 0.0
    %1004 = vmatprep.subr.mxu0 0.0
    %1005 = vmatpush1.msra.mxu0 0.0
    %1006 = vmatprep.subr.mxu0 0.0
    %1007 = vmatpush1.msra.mxu0 0.0
    %1008 = vmatprep.subr.mxu0 0.0
    %1009 = vmatpush1.msra.mxu0 0.0
    %1010 = vmatprep.subr.mxu0 0.0
    %v1011 = vand.u32 %v276, 4294901760
    %v1012 = vsub.f32 %v276, %v1011
    %v1013 = vand.u32 %v1012, 4294901760
    %v1014 = vsub.f32 %v1012, %v1013
    %v1015 = vand.u32 %v1014, 4294901760
    %1016 = vmatpush1.msra.mxu0 %v1015
    %1017 = vmatprep.subr.mxu0 0.0
    %v1018 = vand.u32 %v79, 4294901760
    %v1019 = vsub.f32 %v79, %v1018
    %v1020 = vand.u32 %v1019, 4294901760
    %v1021 = vsub.f32 %v1019, %v1020
    %v1022 = vand.u32 %v1021, 4294901760
    %1023 = vmatpush1.msra.mxu0 %v1022
    %1024 = vmatprep.subr.mxu0 0.0
    %v1025 = vand.u32 %v78, 4294901760
    %v1026 = vsub.f32 %v78, %v1025
    %v1027 = vand.u32 %v1026, 4294901760
    %v1028 = vsub.f32 %v1026, %v1027
    %v1029 = vand.u32 %v1028, 4294901760
    %1030 = vmatpush1.msra.mxu0 %v1029
    %1031 = vmatprep.subr.mxu0 0.0
    %v1032 = vand.u32 %v77, 4294901760
    %v1033 = vsub.f32 %v77, %v1032
    %v1034 = vand.u32 %v1033, 4294901760
    %v1035 = vsub.f32 %v1033, %v1034
    %v1036 = vand.u32 %v1035, 4294901760
    %1037 = vmatpush1.msra.mxu0 %v1036
    %1038 = vmatprep.subr.mxu0 0.0
    %v1039 = vand.u32 %v76, 4294901760
    %v1040 = vsub.f32 %v76, %v1039
    %v1041 = vand.u32 %v1040, 4294901760
    %v1042 = vsub.f32 %v1040, %v1041
    %v1043 = vand.u32 %v1042, 4294901760
    %1044 = vmatpush1.msra.mxu0 %v1043
    %1045 = vmatprep.subr.mxu0 0.0
    %1046 = vmatpush2.msra.mxu0 0.0
    %1047 = vmatprep.subr.mxu0 0.0
    %1048 = vmatpush2.msra.mxu0 0.0
    %1049 = vmatprep.subr.mxu0 0.0
    %1050 = vmatpush2.msra.mxu0 0.0
    %1051 = vmatprep.subr.mxu0 0.0
    %1052 = vmatpush2.msra.mxu0 0.0
    %1053 = vmatprep.subr.mxu0 0.0
    %1054 = vmatpush2.msra.mxu0 0.0
    %1055 = vmatprep.subr.mxu0 0.0
    %1056 = vmatpush2.msra.mxu0 0.0
    %1057 = vmatprep.subr.mxu0 0.0
    %1058 = vmatpush2.msra.mxu0 0.0
    %1059 = vmatprep.subr.mxu0 0.0
    %1060 = vmatpush2.msra.mxu0 0.0
    %1061 = vmatprep.subr.mxu0 0.0
    %1062 = vmatpush2.msra.mxu0 0.0
    %1063 = vmatprep.subr.mxu0 0.0
    %1064 = vmatpush2.msra.mxu0 0.0
    %1065 = vmatprep.subr.mxu0 0.0
    %1066 = vmatpush2.msra.mxu0 0.0
    %1067 = vmatprep.subr.mxu0 0.0
    %1068 = vmatpush2.msra.mxu0 0.0
    %1069 = vmatprep.subr.mxu0 0.0
    %1070 = vmatpush2.msra.mxu0 0.0
    %1071 = vmatprep.subr.mxu0 0.0
    %1072 = vmatpush2.msra.mxu0 0.0
    %1073 = vmatprep.subr.mxu0 0.0
    %1074 = vmatpush2.msra.mxu0 0.0
    %1075 = vmatprep.subr.mxu0 0.0
    %1076 = vmatpush2.msra.mxu0 0.0
    %1077 = vmatprep.mubr.f32.mxu0 0.0
    %v1078 = vand.u32 %v83, 4294901760
    %1079 = vmatmul.mubr.f32.gmra.mxu0 %v1078
    %v1080 = vpop.f32.mrf.mxu0
    %v1081 = vadd.f32 %v355, %v1080
    %v1082 = vpop.f32.mrf.mxu0
    %1083 = vmatprep.mubr.f32.mxu0 0.0
    %v1084 = vand.u32 %v86, 4294901760
    %1085 = vmatmul.mubr.f32.gmra.mxu0 %v1084
    %v1086 = vpop.f32.mrf.mxu0
    %v1087 = vadd.f32 %v365, %v1086
    %v1088 = vpop.f32.mrf.mxu0
    %1089 = vmatprep.mubr.f32.mxu0 0.0
    %v1090 = vand.u32 %v89, 4294901760
    %1091 = vmatmul.mubr.f32.gmra.mxu0 %v1090
    %v1092 = vpop.f32.mrf.mxu0
    %v1093 = vadd.f32 %v375, %v1092
    %v1094 = vpop.f32.mrf.mxu0
    %1095 = vmatprep.mubr.f32.mxu0 0.0
    %v1096 = vand.u32 %v92, 4294901760
    %1097 = vmatmul.mubr.f32.gmra.mxu0 %v1096
    %v1098 = vpop.f32.mrf.mxu0
    %v1099 = vadd.f32 %v385, %v1098
    %v1100 = vpop.f32.mrf.mxu0
    %1101 = vmatprep.mubr.f32.mxu0 0.0
    %v1102 = vand.u32 %v95, 4294901760
    %1103 = vmatmul.mubr.f32.gmra.mxu0 %v1102
    %v1104 = vpop.f32.mrf.mxu0
    %v1105 = vadd.f32 %v395, %v1104
    %v1106 = vpop.f32.mrf.mxu0
    %1107 = vmatprep.mubr.f32.mxu0 0.0
    %v1108 = vand.u32 %v98, 4294901760
    %1109 = vmatmul.mubr.f32.gmra.mxu0 %v1108
    %v1110 = vpop.f32.mrf.mxu0
    %v1111 = vadd.f32 %v405, %v1110
    %v1112 = vpop.f32.mrf.mxu0
    %1113 = vmatprep.mubr.f32.mxu0 0.0
    %v1114 = vand.u32 %v101, 4294901760
    %1115 = vmatmul.mubr.f32.gmra.mxu0 %v1114
    %v1116 = vpop.f32.mrf.mxu0
    %v1117 = vadd.f32 %v415, %v1116
    %v1118 = vpop.f32.mrf.mxu0
    %1119 = vmatprep.mubr.f32.mxu0 0.0
    %v1120 = vand.u32 %v104, 4294901760
    %1121 = vmatmul.mubr.f32.gmra.mxu0 %v1120
    %v1122 = vpop.f32.mrf.mxu0
    %v1123 = vadd.f32 %v425, %v1122
    %v1124 = vpop.f32.mrf.mxu0
    %1125 = vmatprep.mubr.f32.mxu0 0.0
    %v1126 = vand.u32 %v107, 4294901760
    %1127 = vmatmul.mubr.f32.gmra.mxu0 %v1126
    %v1128 = vpop.f32.mrf.mxu0
    %v1129 = vadd.f32 %v435, %v1128
    %v1130 = vpop.f32.mrf.mxu0
    %1131 = vmatprep.mubr.f32.mxu0 0.0
    %v1132 = vand.u32 %v110, 4294901760
    %1133 = vmatmul.mubr.f32.gmra.mxu0 %v1132
    %v1134 = vpop.f32.mrf.mxu0
    %v1135 = vadd.f32 %v445, %v1134
    %v1136 = vpop.f32.mrf.mxu0
    %1137 = vmatprep.mubr.f32.mxu0 0.0
    %v1138 = vand.u32 %v113, 4294901760
    %1139 = vmatmul.mubr.f32.gmra.mxu0 %v1138
    %v1140 = vpop.f32.mrf.mxu0
    %v1141 = vadd.f32 %v455, %v1140
    %v1142 = vpop.f32.mrf.mxu0
    %1143 = vmatprep.mubr.f32.mxu0 0.0
    %v1144 = vand.u32 %v116, 4294901760
    %1145 = vmatmul.mubr.f32.gmra.mxu0 %v1144
    %v1146 = vpop.f32.mrf.mxu0
    %v1147 = vadd.f32 %v465, %v1146
    %v1148 = vpop.f32.mrf.mxu0
    %1149 = vmatprep.mubr.f32.mxu0 0.0
    %v1150 = vand.u32 %v119, 4294901760
    %1151 = vmatmul.mubr.f32.gmra.mxu0 %v1150
    %v1152 = vpop.f32.mrf.mxu0
    %v1153 = vadd.f32 %v475, %v1152
    %v1154 = vpop.f32.mrf.mxu0
    %1155 = vmatprep.mubr.f32.mxu0 0.0
    %v1156 = vand.u32 %v122, 4294901760
    %1157 = vmatmul.mubr.f32.gmra.mxu0 %v1156
    %v1158 = vpop.f32.mrf.mxu0
    %v1159 = vadd.f32 %v485, %v1158
    %v1160 = vpop.f32.mrf.mxu0
    %1161 = vmatprep.mubr.f32.mxu0 0.0
    %v1162 = vand.u32 %v125, 4294901760
    %1163 = vmatmul.mubr.f32.gmra.mxu0 %v1162
    %v1164 = vpop.f32.mrf.mxu0
    %v1165 = vadd.f32 %v495, %v1164
    %v1166 = vpop.f32.mrf.mxu0
    %1167 = vmatprep.mubr.f32.mxu0 0.0
    %v1168 = vand.u32 %v128, 4294901760
    %1169 = vmatmul.mubr.f32.gmra.mxu0 %v1168
    %v1170 = vpop.f32.mrf.mxu0
    %v1171 = vadd.f32 %v505, %v1170
    %v1172 = vpop.f32.mrf.mxu0
    %1173 = vmatprep.mubr.f32.mxu0 0.0
    %v1174 = vand.u32 %v131, 4294901760
    %1175 = vmatmul.mubr.f32.gmra.mxu0 %v1174
    %v1176 = vpop.f32.mrf.mxu0
    %v1177 = vadd.f32 %v515, %v1176
    %v1178 = vpop.f32.mrf.mxu0
    %1179 = vmatprep.mubr.f32.mxu0 0.0
    %v1180 = vand.u32 %v134, 4294901760
    %1181 = vmatmul.mubr.f32.gmra.mxu0 %v1180
    %v1182 = vpop.f32.mrf.mxu0
    %v1183 = vadd.f32 %v525, %v1182
    %v1184 = vpop.f32.mrf.mxu0
    %1185 = vmatprep.mubr.f32.mxu0 0.0
    %v1186 = vand.u32 %v137, 4294901760
    %1187 = vmatmul.mubr.f32.gmra.mxu0 %v1186
    %v1188 = vpop.f32.mrf.mxu0
    %v1189 = vadd.f32 %v535, %v1188
    %v1190 = vpop.f32.mrf.mxu0
    %1191 = vmatprep.mubr.f32.mxu0 0.0
    %v1192 = vand.u32 %v140, 4294901760
    %1193 = vmatmul.mubr.f32.gmra.mxu0 %v1192
    %v1194 = vpop.f32.mrf.mxu0
    %v1195 = vadd.f32 %v545, %v1194
    %v1196 = vpop.f32.mrf.mxu0
    %1197 = vmatprep.mubr.f32.mxu0 0.0
    %v1198 = vand.u32 %v143, 4294901760
    %1199 = vmatmul.mubr.f32.gmra.mxu0 %v1198
    %v1200 = vpop.f32.mrf.mxu0
    %v1201 = vadd.f32 %v555, %v1200
    %v1202 = vpop.f32.mrf.mxu0
    %1203 = vmatprep.mubr.f32.mxu0 0.0
    %v1204 = vand.u32 %v146, 4294901760
    %1205 = vmatmul.mubr.f32.gmra.mxu0 %v1204
    %v1206 = vpop.f32.mrf.mxu0
    %v1207 = vadd.f32 %v565, %v1206
    %v1208 = vpop.f32.mrf.mxu0
    %1209 = vmatprep.mubr.f32.mxu0 0.0
    %v1210 = vand.u32 %v149, 4294901760
    %1211 = vmatmul.mubr.f32.gmra.mxu0 %v1210
    %v1212 = vpop.f32.mrf.mxu0
    %v1213 = vadd.f32 %v575, %v1212
    %v1214 = vpop.f32.mrf.mxu0
    %1215 = vmatprep.mubr.f32.mxu0 0.0
    %v1216 = vand.u32 %v152, 4294901760
    %1217 = vmatmul.mubr.f32.gmra.mxu0 %v1216
    %v1218 = vpop.f32.mrf.mxu0
    %v1219 = vadd.f32 %v585, %v1218
    %v1220 = vpop.f32.mrf.mxu0
    %1221 = vmatprep.mubr.f32.mxu0 0.0
    %v1222 = vand.u32 %v155, 4294901760
    %1223 = vmatmul.mubr.f32.gmra.mxu0 %v1222
    %v1224 = vpop.f32.mrf.mxu0
    %v1225 = vadd.f32 %v595, %v1224
    %v1226 = vpop.f32.mrf.mxu0
    %1227 = vmatprep.mubr.f32.mxu0 0.0
    %v1228 = vand.u32 %v158, 4294901760
    %1229 = vmatmul.mubr.f32.gmra.mxu0 %v1228
    %v1230 = vpop.f32.mrf.mxu0
    %v1231 = vadd.f32 %v605, %v1230
    %v1232 = vpop.f32.mrf.mxu0
    %1233 = vmatprep.mubr.f32.mxu0 0.0
    %v1234 = vand.u32 %v161, 4294901760
    %1235 = vmatmul.mubr.f32.gmra.mxu0 %v1234
    %v1236 = vpop.f32.mrf.mxu0
    %v1237 = vadd.f32 %v615, %v1236
    %v1238 = vpop.f32.mrf.mxu0
    %1239 = vmatprep.mubr.f32.mxu0 0.0
    %v1240 = vand.u32 %v164, 4294901760
    %1241 = vmatmul.mubr.f32.gmra.mxu0 %v1240
    %v1242 = vpop.f32.mrf.mxu0
    %v1243 = vadd.f32 %v625, %v1242
    %v1244 = vpop.f32.mrf.mxu0
    %1245 = vmatprep.mubr.f32.mxu0 0.0
    %v1246 = vand.u32 %v167, 4294901760
    %1247 = vmatmul.mubr.f32.gmra.mxu0 %v1246
    %v1248 = vpop.f32.mrf.mxu0
    %v1249 = vadd.f32 %v635, %v1248
    %v1250 = vpop.f32.mrf.mxu0
    %1251 = vmatprep.mubr.f32.mxu0 0.0
    %v1252 = vand.u32 %v170, 4294901760
    %1253 = vmatmul.mubr.f32.gmra.mxu0 %v1252
    %v1254 = vpop.f32.mrf.mxu0
    %v1255 = vadd.f32 %v645, %v1254
    %v1256 = vpop.f32.mrf.mxu0
    %1257 = vmatprep.mubr.f32.mxu0 0.0
    %v1258 = vand.u32 %v173, 4294901760
    %1259 = vmatmul.mubr.f32.gmra.mxu0 %v1258
    %v1260 = vpop.f32.mrf.mxu0
    %v1261 = vadd.f32 %v655, %v1260
    %v1262 = vpop.f32.mrf.mxu0
    %1263 = vmatprep.mubr.f32.mxu0 0.0
    %v1264 = vand.u32 %v176, 4294901760
    %1265 = vmatmul.mubr.f32.gmra.mxu0 %v1264
    %v1266 = vpop.f32.mrf.mxu0
    %v1267 = vadd.f32 %v665, %v1266
    %v1268 = vpop.f32.mrf.mxu0
    %1269 = vmatprep.mubr.f32.mxu0 0.0
    %v1270 = vand.u32 %v179, 4294901760
    %1271 = vmatmul.mubr.f32.gmra.mxu0 %v1270
    %v1272 = vpop.f32.mrf.mxu0
    %v1273 = vadd.f32 %v675, %v1272
    %v1274 = vpop.f32.mrf.mxu0
    %1275 = vmatprep.mubr.f32.mxu0 0.0
    %v1276 = vand.u32 %v182, 4294901760
    %1277 = vmatmul.mubr.f32.gmra.mxu0 %v1276
    %v1278 = vpop.f32.mrf.mxu0
    %v1279 = vadd.f32 %v685, %v1278
    %v1280 = vpop.f32.mrf.mxu0
    %1281 = vmatprep.mubr.f32.mxu0 0.0
    %v1282 = vand.u32 %v185, 4294901760
    %1283 = vmatmul.mubr.f32.gmra.mxu0 %v1282
    %v1284 = vpop.f32.mrf.mxu0
    %v1285 = vadd.f32 %v695, %v1284
    %v1286 = vpop.f32.mrf.mxu0
    %1287 = vmatprep.mubr.f32.mxu0 0.0
    %v1288 = vand.u32 %v188, 4294901760
    %1289 = vmatmul.mubr.f32.gmra.mxu0 %v1288
    %v1290 = vpop.f32.mrf.mxu0
    %v1291 = vadd.f32 %v705, %v1290
    %v1292 = vpop.f32.mrf.mxu0
    %1293 = vmatprep.mubr.f32.mxu0 0.0
    %v1294 = vand.u32 %v191, 4294901760
    %1295 = vmatmul.mubr.f32.gmra.mxu0 %v1294
    %v1296 = vpop.f32.mrf.mxu0
    %v1297 = vadd.f32 %v715, %v1296
    %v1298 = vpop.f32.mrf.mxu0
    %1299 = vmatprep.mubr.f32.mxu0 0.0
    %v1300 = vand.u32 %v194, 4294901760
    %1301 = vmatmul.mubr.f32.gmra.mxu0 %v1300
    %v1302 = vpop.f32.mrf.mxu0
    %v1303 = vadd.f32 %v725, %v1302
    %v1304 = vpop.f32.mrf.mxu0
    %1305 = vmatprep.mubr.f32.mxu0 0.0
    %v1306 = vand.u32 %v197, 4294901760
    %1307 = vmatmul.mubr.f32.gmra.mxu0 %v1306
    %v1308 = vpop.f32.mrf.mxu0
    %v1309 = vadd.f32 %v735, %v1308
    %v1310 = vpop.f32.mrf.mxu0
    %1311 = vmatprep.mubr.f32.mxu0 0.0
    %v1312 = vand.u32 %v200, 4294901760
    %1313 = vmatmul.mubr.f32.gmra.mxu0 %v1312
    %v1314 = vpop.f32.mrf.mxu0
    %v1315 = vadd.f32 %v745, %v1314
    %v1316 = vpop.f32.mrf.mxu0
    %1317 = vmatprep.mubr.f32.mxu0 0.0
    %v1318 = vand.u32 %v203, 4294901760
    %1319 = vmatmul.mubr.f32.gmra.mxu0 %v1318
    %v1320 = vpop.f32.mrf.mxu0
    %v1321 = vadd.f32 %v755, %v1320
    %v1322 = vpop.f32.mrf.mxu0
    %1323 = vmatprep.mubr.f32.mxu0 0.0
    %v1324 = vand.u32 %v206, 4294901760
    %1325 = vmatmul.mubr.f32.gmra.mxu0 %v1324
    %v1326 = vpop.f32.mrf.mxu0
    %v1327 = vadd.f32 %v765, %v1326
    %v1328 = vpop.f32.mrf.mxu0
    %1329 = vmatprep.mubr.f32.mxu0 0.0
    %v1330 = vand.u32 %v209, 4294901760
    %1331 = vmatmul.mubr.f32.gmra.mxu0 %v1330
    %v1332 = vpop.f32.mrf.mxu0
    %v1333 = vadd.f32 %v775, %v1332
    %v1334 = vpop.f32.mrf.mxu0
    %1335 = vmatprep.mubr.f32.mxu0 0.0
    %v1336 = vand.u32 %v212, 4294901760
    %1337 = vmatmul.mubr.f32.gmra.mxu0 %v1336
    %v1338 = vpop.f32.mrf.mxu0
    %v1339 = vadd.f32 %v785, %v1338
    %v1340 = vpop.f32.mrf.mxu0
    %1341 = vmatprep.mubr.f32.mxu0 0.0
    %v1342 = vand.u32 %v215, 4294901760
    %1343 = vmatmul.mubr.f32.gmra.mxu0 %v1342
    %v1344 = vpop.f32.mrf.mxu0
    %v1345 = vadd.f32 %v795, %v1344
    %v1346 = vpop.f32.mrf.mxu0
    %1347 = vmatprep.mubr.f32.mxu0 0.0
    %v1348 = vand.u32 %v218, 4294901760
    %1349 = vmatmul.mubr.f32.gmra.mxu0 %v1348
    %v1350 = vpop.f32.mrf.mxu0
    %v1351 = vadd.f32 %v805, %v1350
    %v1352 = vpop.f32.mrf.mxu0
    %1353 = vmatprep.mubr.f32.mxu0 0.0
    %v1354 = vand.u32 %v221, 4294901760
    %1355 = vmatmul.mubr.f32.gmra.mxu0 %v1354
    %v1356 = vpop.f32.mrf.mxu0
    %v1357 = vadd.f32 %v815, %v1356
    %v1358 = vpop.f32.mrf.mxu0
    %1359 = vmatprep.mubr.f32.mxu0 0.0
    %v1360 = vand.u32 %v224, 4294901760
    %1361 = vmatmul.mubr.f32.gmra.mxu0 %v1360
    %v1362 = vpop.f32.mrf.mxu0
    %v1363 = vadd.f32 %v825, %v1362
    %v1364 = vpop.f32.mrf.mxu0
    %1365 = vmatprep.mubr.f32.mxu0 0.0
    %v1366 = vand.u32 %v227, 4294901760
    %1367 = vmatmul.mubr.f32.gmra.mxu0 %v1366
    %v1368 = vpop.f32.mrf.mxu0
    %v1369 = vadd.f32 %v835, %v1368
    %v1370 = vpop.f32.mrf.mxu0
    %1371 = vmatprep.mubr.f32.mxu0 0.0
    %v1372 = vand.u32 %v230, 4294901760
    %1373 = vmatmul.mubr.f32.gmra.mxu0 %v1372
    %v1374 = vpop.f32.mrf.mxu0
    %v1375 = vadd.f32 %v845, %v1374
    %v1376 = vpop.f32.mrf.mxu0
    %1377 = vmatprep.mubr.f32.mxu0 0.0
    %v1378 = vand.u32 %v233, 4294901760
    %1379 = vmatmul.mubr.f32.gmra.mxu0 %v1378
    %v1380 = vpop.f32.mrf.mxu0
    %v1381 = vadd.f32 %v855, %v1380
    %v1382 = vpop.f32.mrf.mxu0
    %1383 = vmatprep.mubr.f32.mxu0 0.0
    %v1384 = vand.u32 %v236, 4294901760
    %1385 = vmatmul.mubr.f32.gmra.mxu0 %v1384
    %v1386 = vpop.f32.mrf.mxu0
    %v1387 = vadd.f32 %v865, %v1386
    %v1388 = vpop.f32.mrf.mxu0
    %1389 = vmatprep.mubr.f32.mxu0 0.0
    %v1390 = vand.u32 %v239, 4294901760
    %1391 = vmatmul.mubr.f32.gmra.mxu0 %v1390
    %v1392 = vpop.f32.mrf.mxu0
    %v1393 = vadd.f32 %v875, %v1392
    %v1394 = vpop.f32.mrf.mxu0
    %1395 = vmatprep.mubr.f32.mxu0 0.0
    %v1396 = vand.u32 %v242, 4294901760
    %1397 = vmatmul.mubr.f32.gmra.mxu0 %v1396
    %v1398 = vpop.f32.mrf.mxu0
    %v1399 = vadd.f32 %v885, %v1398
    %v1400 = vpop.f32.mrf.mxu0
    %1401 = vmatprep.mubr.f32.mxu0 0.0
    %v1402 = vand.u32 %v245, 4294901760
    %1403 = vmatmul.mubr.f32.gmra.mxu0 %v1402
    %v1404 = vpop.f32.mrf.mxu0
    %v1405 = vadd.f32 %v895, %v1404
    %v1406 = vpop.f32.mrf.mxu0
    %1407 = vmatprep.mubr.f32.mxu0 0.0
    %v1408 = vand.u32 %v248, 4294901760
    %1409 = vmatmul.mubr.f32.gmra.mxu0 %v1408
    %v1410 = vpop.f32.mrf.mxu0
    %v1411 = vadd.f32 %v905, %v1410
    %v1412 = vpop.f32.mrf.mxu0
    %1413 = vmatprep.mubr.f32.mxu0 0.0
    %v1414 = vand.u32 %v251, 4294901760
    %1415 = vmatmul.mubr.f32.gmra.mxu0 %v1414
    %v1416 = vpop.f32.mrf.mxu0
    %v1417 = vadd.f32 %v915, %v1416
    %v1418 = vpop.f32.mrf.mxu0
    %1419 = vmatprep.mubr.f32.mxu0 0.0
    %v1420 = vand.u32 %v254, 4294901760
    %1421 = vmatmul.mubr.f32.gmra.mxu0 %v1420
    %v1422 = vpop.f32.mrf.mxu0
    %v1423 = vadd.f32 %v925, %v1422
    %v1424 = vpop.f32.mrf.mxu0
    %1425 = vmatprep.mubr.f32.mxu0 0.0
    %v1426 = vand.u32 %v257, 4294901760
    %1427 = vmatmul.mubr.f32.gmra.mxu0 %v1426
    %v1428 = vpop.f32.mrf.mxu0
    %v1429 = vadd.f32 %v935, %v1428
    %v1430 = vpop.f32.mrf.mxu0
    %1431 = vmatprep.mubr.f32.mxu0 0.0
    %v1432 = vand.u32 %v260, 4294901760
    %1433 = vmatmul.mubr.f32.gmra.mxu0 %v1432
    %v1434 = vpop.f32.mrf.mxu0
    %v1435 = vadd.f32 %v945, %v1434
    %v1436 = vpop.f32.mrf.mxu0
    %1437 = vmatprep.mubr.f32.mxu0 0.0
    %v1438 = vand.u32 %v263, 4294901760
    %1439 = vmatmul.mubr.f32.gmra.mxu0 %v1438
    %v1440 = vpop.f32.mrf.mxu0
    %v1441 = vadd.f32 %v955, %v1440
    %v1442 = vpop.f32.mrf.mxu0
    %1443 = vmatprep.mubr.f32.mxu0 0.0
    %v1444 = vand.u32 %v266, 4294901760
    %1445 = vmatmul.mubr.f32.gmra.mxu0 %v1444
    %v1446 = vpop.f32.mrf.mxu0
    %v1447 = vadd.f32 %v965, %v1446
    %v1448 = vpop.f32.mrf.mxu0
    %1449 = vmatprep.mubr.f32.mxu0 0.0
    %v1450 = vand.u32 %v269, 4294901760
    %1451 = vmatmul.mubr.f32.gmra.mxu0 %v1450
    %v1452 = vpop.f32.mrf.mxu0
    %v1453 = vadd.f32 %v975, %v1452
    %v1454 = vpop.f32.mrf.mxu0
    %1455 = vmatprep.mubr.f32.mxu0 0.0
    %v1456 = vand.u32 %v272, 4294901760
    %1457 = vmatmul.mubr.f32.gmra.mxu0 %v1456
    %v1458 = vpop.f32.mrf.mxu0
    %v1459 = vadd.f32 %v985, %v1458
    %v1460 = vpop.f32.mrf.mxu0
    %1461 = vdwg.mxu0
    %1462 = vmatprep.subr.mxu0 0.0
    %1463 = vmatpush1.msra.mxu0 0.0
    %1464 = vmatprep.subr.mxu0 0.0
    %1465 = vmatpush1.msra.mxu0 0.0
    %1466 = vmatprep.subr.mxu0 0.0
    %1467 = vmatpush1.msra.mxu0 0.0
    %1468 = vmatprep.subr.mxu0 0.0
    %1469 = vmatpush1.msra.mxu0 0.0
    %1470 = vmatprep.subr.mxu0 0.0
    %1471 = vmatpush1.msra.mxu0 0.0
    %1472 = vmatprep.subr.mxu0 0.0
    %1473 = vmatpush1.msra.mxu0 0.0
    %1474 = vmatprep.subr.mxu0 0.0
    %1475 = vmatpush1.msra.mxu0 0.0
    %1476 = vmatprep.subr.mxu0 0.0
    %1477 = vmatpush1.msra.mxu0 0.0
    %1478 = vmatprep.subr.mxu0 0.0
    %1479 = vmatpush1.msra.mxu0 0.0
    %1480 = vmatprep.subr.mxu0 0.0
    %1481 = vmatpush1.msra.mxu0 0.0
    %1482 = vmatprep.subr.mxu0 0.0
    %1483 = vmatpush1.msra.mxu0 0.0
    %1484 = vmatprep.subr.mxu0 0.0
    %v1485 = vand.u32 %v276, 4294901760
    %v1486 = vsub.f32 %v276, %v1485
    %1487 = vmatpush1.msra.mxu0 %v1486
    %1488 = vmatprep.subr.mxu0 0.0
    %v1489 = vand.u32 %v79, 4294901760
    %v1490 = vsub.f32 %v79, %v1489
    %1491 = vmatpush1.msra.mxu0 %v1490
    %1492 = vmatprep.subr.mxu0 0.0
    %v1493 = vand.u32 %v78, 4294901760
    %v1494 = vsub.f32 %v78, %v1493
    %1495 = vmatpush1.msra.mxu0 %v1494
    %1496 = vmatprep.subr.mxu0 0.0
    %v1497 = vand.u32 %v77, 4294901760
    %v1498 = vsub.f32 %v77, %v1497
    %1499 = vmatpush1.msra.mxu0 %v1498
    %1500 = vmatprep.subr.mxu0 0.0
    %v1501 = vand.u32 %v76, 4294901760
    %v1502 = vsub.f32 %v76, %v1501
    %1503 = vmatpush1.msra.mxu0 %v1502
    %1504 = vmatprep.subr.mxu0 0.0
    %1505 = vmatpush2.msra.mxu0 0.0
    %1506 = vmatprep.subr.mxu0 0.0
    %1507 = vmatpush2.msra.mxu0 0.0
    %1508 = vmatprep.subr.mxu0 0.0
    %1509 = vmatpush2.msra.mxu0 0.0
    %1510 = vmatprep.subr.mxu0 0.0
    %1511 = vmatpush2.msra.mxu0 0.0
    %1512 = vmatprep.subr.mxu0 0.0
    %1513 = vmatpush2.msra.mxu0 0.0
    %1514 = vmatprep.subr.mxu0 0.0
    %1515 = vmatpush2.msra.mxu0 0.0
    %1516 = vmatprep.subr.mxu0 0.0
    %1517 = vmatpush2.msra.mxu0 0.0
    %1518 = vmatprep.subr.mxu0 0.0
    %1519 = vmatpush2.msra.mxu0 0.0
    %1520 = vmatprep.subr.mxu0 0.0
    %1521 = vmatpush2.msra.mxu0 0.0
    %1522 = vmatprep.subr.mxu0 0.0
    %1523 = vmatpush2.msra.mxu0 0.0
    %1524 = vmatprep.subr.mxu0 0.0
    %1525 = vmatpush2.msra.mxu0 0.0
    %1526 = vmatprep.subr.mxu0 0.0
    %1527 = vmatpush2.msra.mxu0 0.0
    %1528 = vmatprep.subr.mxu0 0.0
    %1529 = vmatpush2.msra.mxu0 0.0
    %1530 = vmatprep.subr.mxu0 0.0
    %1531 = vmatpush2.msra.mxu0 0.0
    %1532 = vmatprep.subr.mxu0 0.0
    %1533 = vmatpush2.msra.mxu0 0.0
    %1534 = vmatprep.subr.mxu0 0.0
    %1535 = vmatpush2.msra.mxu0 0.0
    %1536 = vmatprep.mubr.f32.mxu0 0.0
    %v1537 = vand.u32 %v83, 4294901760
    %v1538 = vsub.f32 %v83, %v1537
    %1539 = vmatmul.mubr.f32.gmra.mxu0 %v1538
    %v1540 = vpop.f32.mrf.mxu0
    %v1541 = vadd.f32 %v1081, %v1540
    %v1542 = vpop.f32.mrf.mxu0
    %1543 = vmatprep.mubr.f32.mxu0 0.0
    %v1544 = vand.u32 %v86, 4294901760
    %v1545 = vsub.f32 %v86, %v1544
    %1546 = vmatmul.mubr.f32.gmra.mxu0 %v1545
    %v1547 = vpop.f32.mrf.mxu0
    %v1548 = vadd.f32 %v1087, %v1547
    %v1549 = vpop.f32.mrf.mxu0
    %1550 = vmatprep.mubr.f32.mxu0 0.0
    %v1551 = vand.u32 %v89, 4294901760
    %v1552 = vsub.f32 %v89, %v1551
    %1553 = vmatmul.mubr.f32.gmra.mxu0 %v1552
    %v1554 = vpop.f32.mrf.mxu0
    %v1555 = vadd.f32 %v1093, %v1554
    %v1556 = vpop.f32.mrf.mxu0
    %1557 = vmatprep.mubr.f32.mxu0 0.0
    %v1558 = vand.u32 %v92, 4294901760
    %v1559 = vsub.f32 %v92, %v1558
    %1560 = vmatmul.mubr.f32.gmra.mxu0 %v1559
    %v1561 = vpop.f32.mrf.mxu0
    %v1562 = vadd.f32 %v1099, %v1561
    %v1563 = vpop.f32.mrf.mxu0
    %1564 = vmatprep.mubr.f32.mxu0 0.0
    %v1565 = vand.u32 %v95, 4294901760
    %v1566 = vsub.f32 %v95, %v1565
    %1567 = vmatmul.mubr.f32.gmra.mxu0 %v1566
    %v1568 = vpop.f32.mrf.mxu0
    %v1569 = vadd.f32 %v1105, %v1568
    %v1570 = vpop.f32.mrf.mxu0
    %1571 = vmatprep.mubr.f32.mxu0 0.0
    %v1572 = vand.u32 %v98, 4294901760
    %v1573 = vsub.f32 %v98, %v1572
    %1574 = vmatmul.mubr.f32.gmra.mxu0 %v1573
    %v1575 = vpop.f32.mrf.mxu0
    %v1576 = vadd.f32 %v1111, %v1575
    %v1577 = vpop.f32.mrf.mxu0
    %1578 = vmatprep.mubr.f32.mxu0 0.0
    %v1579 = vand.u32 %v101, 4294901760
    %v1580 = vsub.f32 %v101, %v1579
    %1581 = vmatmul.mubr.f32.gmra.mxu0 %v1580
    %v1582 = vpop.f32.mrf.mxu0
    %v1583 = vadd.f32 %v1117, %v1582
    %v1584 = vpop.f32.mrf.mxu0
    %1585 = vmatprep.mubr.f32.mxu0 0.0
    %v1586 = vand.u32 %v104, 4294901760
    %v1587 = vsub.f32 %v104, %v1586
    %1588 = vmatmul.mubr.f32.gmra.mxu0 %v1587
    %v1589 = vpop.f32.mrf.mxu0
    %v1590 = vadd.f32 %v1123, %v1589
    %v1591 = vpop.f32.mrf.mxu0
    %1592 = vmatprep.mubr.f32.mxu0 0.0
    %v1593 = vand.u32 %v107, 4294901760
    %v1594 = vsub.f32 %v107, %v1593
    %1595 = vmatmul.mubr.f32.gmra.mxu0 %v1594
    %v1596 = vpop.f32.mrf.mxu0
    %v1597 = vadd.f32 %v1129, %v1596
    %v1598 = vpop.f32.mrf.mxu0
    %1599 = vmatprep.mubr.f32.mxu0 0.0
    %v1600 = vand.u32 %v110, 4294901760
    %v1601 = vsub.f32 %v110, %v1600
    %1602 = vmatmul.mubr.f32.gmra.mxu0 %v1601
    %v1603 = vpop.f32.mrf.mxu0
    %v1604 = vadd.f32 %v1135, %v1603
    %v1605 = vpop.f32.mrf.mxu0
    %1606 = vmatprep.mubr.f32.mxu0 0.0
    %v1607 = vand.u32 %v113, 4294901760
    %v1608 = vsub.f32 %v113, %v1607
    %1609 = vmatmul.mubr.f32.gmra.mxu0 %v1608
    %v1610 = vpop.f32.mrf.mxu0
    %v1611 = vadd.f32 %v1141, %v1610
    %v1612 = vpop.f32.mrf.mxu0
    %1613 = vmatprep.mubr.f32.mxu0 0.0
    %v1614 = vand.u32 %v116, 4294901760
    %v1615 = vsub.f32 %v116, %v1614
    %1616 = vmatmul.mubr.f32.gmra.mxu0 %v1615
    %v1617 = vpop.f32.mrf.mxu0
    %v1618 = vadd.f32 %v1147, %v1617
    %v1619 = vpop.f32.mrf.mxu0
    %1620 = vmatprep.mubr.f32.mxu0 0.0
    %v1621 = vand.u32 %v119, 4294901760
    %v1622 = vsub.f32 %v119, %v1621
    %1623 = vmatmul.mubr.f32.gmra.mxu0 %v1622
    %v1624 = vpop.f32.mrf.mxu0
    %v1625 = vadd.f32 %v1153, %v1624
    %v1626 = vpop.f32.mrf.mxu0
    %1627 = vmatprep.mubr.f32.mxu0 0.0
    %v1628 = vand.u32 %v122, 4294901760
    %v1629 = vsub.f32 %v122, %v1628
    %1630 = vmatmul.mubr.f32.gmra.mxu0 %v1629
    %v1631 = vpop.f32.mrf.mxu0
    %v1632 = vadd.f32 %v1159, %v1631
    %v1633 = vpop.f32.mrf.mxu0
    %1634 = vmatprep.mubr.f32.mxu0 0.0
    %v1635 = vand.u32 %v125, 4294901760
    %v1636 = vsub.f32 %v125, %v1635
    %1637 = vmatmul.mubr.f32.gmra.mxu0 %v1636
    %v1638 = vpop.f32.mrf.mxu0
    %v1639 = vadd.f32 %v1165, %v1638
    %v1640 = vpop.f32.mrf.mxu0
    %1641 = vmatprep.mubr.f32.mxu0 0.0
    %v1642 = vand.u32 %v128, 4294901760
    %v1643 = vsub.f32 %v128, %v1642
    %1644 = vmatmul.mubr.f32.gmra.mxu0 %v1643
    %v1645 = vpop.f32.mrf.mxu0
    %v1646 = vadd.f32 %v1171, %v1645
    %v1647 = vpop.f32.mrf.mxu0
    %1648 = vmatprep.mubr.f32.mxu0 0.0
    %v1649 = vand.u32 %v131, 4294901760
    %v1650 = vsub.f32 %v131, %v1649
    %1651 = vmatmul.mubr.f32.gmra.mxu0 %v1650
    %v1652 = vpop.f32.mrf.mxu0
    %v1653 = vadd.f32 %v1177, %v1652
    %v1654 = vpop.f32.mrf.mxu0
    %1655 = vmatprep.mubr.f32.mxu0 0.0
    %v1656 = vand.u32 %v134, 4294901760
    %v1657 = vsub.f32 %v134, %v1656
    %1658 = vmatmul.mubr.f32.gmra.mxu0 %v1657
    %v1659 = vpop.f32.mrf.mxu0
    %v1660 = vadd.f32 %v1183, %v1659
    %v1661 = vpop.f32.mrf.mxu0
    %1662 = vmatprep.mubr.f32.mxu0 0.0
    %v1663 = vand.u32 %v137, 4294901760
    %v1664 = vsub.f32 %v137, %v1663
    %1665 = vmatmul.mubr.f32.gmra.mxu0 %v1664
    %v1666 = vpop.f32.mrf.mxu0
    %v1667 = vadd.f32 %v1189, %v1666
    %v1668 = vpop.f32.mrf.mxu0
    %1669 = vmatprep.mubr.f32.mxu0 0.0
    %v1670 = vand.u32 %v140, 4294901760
    %v1671 = vsub.f32 %v140, %v1670
    %1672 = vmatmul.mubr.f32.gmra.mxu0 %v1671
    %v1673 = vpop.f32.mrf.mxu0
    %v1674 = vadd.f32 %v1195, %v1673
    %v1675 = vpop.f32.mrf.mxu0
    %1676 = vmatprep.mubr.f32.mxu0 0.0
    %v1677 = vand.u32 %v143, 4294901760
    %v1678 = vsub.f32 %v143, %v1677
    %1679 = vmatmul.mubr.f32.gmra.mxu0 %v1678
    %v1680 = vpop.f32.mrf.mxu0
    %v1681 = vadd.f32 %v1201, %v1680
    %v1682 = vpop.f32.mrf.mxu0
    %1683 = vmatprep.mubr.f32.mxu0 0.0
    %v1684 = vand.u32 %v146, 4294901760
    %v1685 = vsub.f32 %v146, %v1684
    %1686 = vmatmul.mubr.f32.gmra.mxu0 %v1685
    %v1687 = vpop.f32.mrf.mxu0
    %v1688 = vadd.f32 %v1207, %v1687
    %v1689 = vpop.f32.mrf.mxu0
    %1690 = vmatprep.mubr.f32.mxu0 0.0
    %v1691 = vand.u32 %v149, 4294901760
    %v1692 = vsub.f32 %v149, %v1691
    %1693 = vmatmul.mubr.f32.gmra.mxu0 %v1692
    %v1694 = vpop.f32.mrf.mxu0
    %v1695 = vadd.f32 %v1213, %v1694
    %v1696 = vpop.f32.mrf.mxu0
    %1697 = vmatprep.mubr.f32.mxu0 0.0
    %v1698 = vand.u32 %v152, 4294901760
    %v1699 = vsub.f32 %v152, %v1698
    %1700 = vmatmul.mubr.f32.gmra.mxu0 %v1699
    %v1701 = vpop.f32.mrf.mxu0
    %v1702 = vadd.f32 %v1219, %v1701
    %v1703 = vpop.f32.mrf.mxu0
    %1704 = vmatprep.mubr.f32.mxu0 0.0
    %v1705 = vand.u32 %v155, 4294901760
    %v1706 = vsub.f32 %v155, %v1705
    %1707 = vmatmul.mubr.f32.gmra.mxu0 %v1706
    %v1708 = vpop.f32.mrf.mxu0
    %v1709 = vadd.f32 %v1225, %v1708
    %v1710 = vpop.f32.mrf.mxu0
    %1711 = vmatprep.mubr.f32.mxu0 0.0
    %v1712 = vand.u32 %v158, 4294901760
    %v1713 = vsub.f32 %v158, %v1712
    %1714 = vmatmul.mubr.f32.gmra.mxu0 %v1713
    %v1715 = vpop.f32.mrf.mxu0
    %v1716 = vadd.f32 %v1231, %v1715
    %v1717 = vpop.f32.mrf.mxu0
    %1718 = vmatprep.mubr.f32.mxu0 0.0
    %v1719 = vand.u32 %v161, 4294901760
    %v1720 = vsub.f32 %v161, %v1719
    %1721 = vmatmul.mubr.f32.gmra.mxu0 %v1720
    %v1722 = vpop.f32.mrf.mxu0
    %v1723 = vadd.f32 %v1237, %v1722
    %v1724 = vpop.f32.mrf.mxu0
    %1725 = vmatprep.mubr.f32.mxu0 0.0
    %v1726 = vand.u32 %v164, 4294901760
    %v1727 = vsub.f32 %v164, %v1726
    %1728 = vmatmul.mubr.f32.gmra.mxu0 %v1727
    %v1729 = vpop.f32.mrf.mxu0
    %v1730 = vadd.f32 %v1243, %v1729
    %v1731 = vpop.f32.mrf.mxu0
    %1732 = vmatprep.mubr.f32.mxu0 0.0
    %v1733 = vand.u32 %v167, 4294901760
    %v1734 = vsub.f32 %v167, %v1733
    %1735 = vmatmul.mubr.f32.gmra.mxu0 %v1734
    %v1736 = vpop.f32.mrf.mxu0
    %v1737 = vadd.f32 %v1249, %v1736
    %v1738 = vpop.f32.mrf.mxu0
    %1739 = vmatprep.mubr.f32.mxu0 0.0
    %v1740 = vand.u32 %v170, 4294901760
    %v1741 = vsub.f32 %v170, %v1740
    %1742 = vmatmul.mubr.f32.gmra.mxu0 %v1741
    %v1743 = vpop.f32.mrf.mxu0
    %v1744 = vadd.f32 %v1255, %v1743
    %v1745 = vpop.f32.mrf.mxu0
    %1746 = vmatprep.mubr.f32.mxu0 0.0
    %v1747 = vand.u32 %v173, 4294901760
    %v1748 = vsub.f32 %v173, %v1747
    %1749 = vmatmul.mubr.f32.gmra.mxu0 %v1748
    %v1750 = vpop.f32.mrf.mxu0
    %v1751 = vadd.f32 %v1261, %v1750
    %v1752 = vpop.f32.mrf.mxu0
    %1753 = vmatprep.mubr.f32.mxu0 0.0
    %v1754 = vand.u32 %v176, 4294901760
    %v1755 = vsub.f32 %v176, %v1754
    %1756 = vmatmul.mubr.f32.gmra.mxu0 %v1755
    %v1757 = vpop.f32.mrf.mxu0
    %v1758 = vadd.f32 %v1267, %v1757
    %v1759 = vpop.f32.mrf.mxu0
    %1760 = vmatprep.mubr.f32.mxu0 0.0
    %v1761 = vand.u32 %v179, 4294901760
    %v1762 = vsub.f32 %v179, %v1761
    %1763 = vmatmul.mubr.f32.gmra.mxu0 %v1762
    %v1764 = vpop.f32.mrf.mxu0
    %v1765 = vadd.f32 %v1273, %v1764
    %v1766 = vpop.f32.mrf.mxu0
    %1767 = vmatprep.mubr.f32.mxu0 0.0
    %v1768 = vand.u32 %v182, 4294901760
    %v1769 = vsub.f32 %v182, %v1768
    %1770 = vmatmul.mubr.f32.gmra.mxu0 %v1769
    %v1771 = vpop.f32.mrf.mxu0
    %v1772 = vadd.f32 %v1279, %v1771
    %v1773 = vpop.f32.mrf.mxu0
    %1774 = vmatprep.mubr.f32.mxu0 0.0
    %v1775 = vand.u32 %v185, 4294901760
    %v1776 = vsub.f32 %v185, %v1775
    %1777 = vmatmul.mubr.f32.gmra.mxu0 %v1776
    %v1778 = vpop.f32.mrf.mxu0
    %v1779 = vadd.f32 %v1285, %v1778
    %v1780 = vpop.f32.mrf.mxu0
    %1781 = vmatprep.mubr.f32.mxu0 0.0
    %v1782 = vand.u32 %v188, 4294901760
    %v1783 = vsub.f32 %v188, %v1782
    %1784 = vmatmul.mubr.f32.gmra.mxu0 %v1783
    %v1785 = vpop.f32.mrf.mxu0
    %v1786 = vadd.f32 %v1291, %v1785
    %v1787 = vpop.f32.mrf.mxu0
    %1788 = vmatprep.mubr.f32.mxu0 0.0
    %v1789 = vand.u32 %v191, 4294901760
    %v1790 = vsub.f32 %v191, %v1789
    %1791 = vmatmul.mubr.f32.gmra.mxu0 %v1790
    %v1792 = vpop.f32.mrf.mxu0
    %v1793 = vadd.f32 %v1297, %v1792
    %v1794 = vpop.f32.mrf.mxu0
    %1795 = vmatprep.mubr.f32.mxu0 0.0
    %v1796 = vand.u32 %v194, 4294901760
    %v1797 = vsub.f32 %v194, %v1796
    %1798 = vmatmul.mubr.f32.gmra.mxu0 %v1797
    %v1799 = vpop.f32.mrf.mxu0
    %v1800 = vadd.f32 %v1303, %v1799
    %v1801 = vpop.f32.mrf.mxu0
    %1802 = vmatprep.mubr.f32.mxu0 0.0
    %v1803 = vand.u32 %v197, 4294901760
    %v1804 = vsub.f32 %v197, %v1803
    %1805 = vmatmul.mubr.f32.gmra.mxu0 %v1804
    %v1806 = vpop.f32.mrf.mxu0
    %v1807 = vadd.f32 %v1309, %v1806
    %v1808 = vpop.f32.mrf.mxu0
    %1809 = vmatprep.mubr.f32.mxu0 0.0
    %v1810 = vand.u32 %v200, 4294901760
    %v1811 = vsub.f32 %v200, %v1810
    %1812 = vmatmul.mubr.f32.gmra.mxu0 %v1811
    %v1813 = vpop.f32.mrf.mxu0
    %v1814 = vadd.f32 %v1315, %v1813
    %v1815 = vpop.f32.mrf.mxu0
    %1816 = vmatprep.mubr.f32.mxu0 0.0
    %v1817 = vand.u32 %v203, 4294901760
    %v1818 = vsub.f32 %v203, %v1817
    %1819 = vmatmul.mubr.f32.gmra.mxu0 %v1818
    %v1820 = vpop.f32.mrf.mxu0
    %v1821 = vadd.f32 %v1321, %v1820
    %v1822 = vpop.f32.mrf.mxu0
    %1823 = vmatprep.mubr.f32.mxu0 0.0
    %v1824 = vand.u32 %v206, 4294901760
    %v1825 = vsub.f32 %v206, %v1824
    %1826 = vmatmul.mubr.f32.gmra.mxu0 %v1825
    %v1827 = vpop.f32.mrf.mxu0
    %v1828 = vadd.f32 %v1327, %v1827
    %v1829 = vpop.f32.mrf.mxu0
    %1830 = vmatprep.mubr.f32.mxu0 0.0
    %v1831 = vand.u32 %v209, 4294901760
    %v1832 = vsub.f32 %v209, %v1831
    %1833 = vmatmul.mubr.f32.gmra.mxu0 %v1832
    %v1834 = vpop.f32.mrf.mxu0
    %v1835 = vadd.f32 %v1333, %v1834
    %v1836 = vpop.f32.mrf.mxu0
    %1837 = vmatprep.mubr.f32.mxu0 0.0
    %v1838 = vand.u32 %v212, 4294901760
    %v1839 = vsub.f32 %v212, %v1838
    %1840 = vmatmul.mubr.f32.gmra.mxu0 %v1839
    %v1841 = vpop.f32.mrf.mxu0
    %v1842 = vadd.f32 %v1339, %v1841
    %v1843 = vpop.f32.mrf.mxu0
    %1844 = vmatprep.mubr.f32.mxu0 0.0
    %v1845 = vand.u32 %v215, 4294901760
    %v1846 = vsub.f32 %v215, %v1845
    %1847 = vmatmul.mubr.f32.gmra.mxu0 %v1846
    %v1848 = vpop.f32.mrf.mxu0
    %v1849 = vadd.f32 %v1345, %v1848
    %v1850 = vpop.f32.mrf.mxu0
    %1851 = vmatprep.mubr.f32.mxu0 0.0
    %v1852 = vand.u32 %v218, 4294901760
    %v1853 = vsub.f32 %v218, %v1852
    %1854 = vmatmul.mubr.f32.gmra.mxu0 %v1853
    %v1855 = vpop.f32.mrf.mxu0
    %v1856 = vadd.f32 %v1351, %v1855
    %v1857 = vpop.f32.mrf.mxu0
    %1858 = vmatprep.mubr.f32.mxu0 0.0
    %v1859 = vand.u32 %v221, 4294901760
    %v1860 = vsub.f32 %v221, %v1859
    %1861 = vmatmul.mubr.f32.gmra.mxu0 %v1860
    %v1862 = vpop.f32.mrf.mxu0
    %v1863 = vadd.f32 %v1357, %v1862
    %v1864 = vpop.f32.mrf.mxu0
    %1865 = vmatprep.mubr.f32.mxu0 0.0
    %v1866 = vand.u32 %v224, 4294901760
    %v1867 = vsub.f32 %v224, %v1866
    %1868 = vmatmul.mubr.f32.gmra.mxu0 %v1867
    %v1869 = vpop.f32.mrf.mxu0
    %v1870 = vadd.f32 %v1363, %v1869
    %v1871 = vpop.f32.mrf.mxu0
    %1872 = vmatprep.mubr.f32.mxu0 0.0
    %v1873 = vand.u32 %v227, 4294901760
    %v1874 = vsub.f32 %v227, %v1873
    %1875 = vmatmul.mubr.f32.gmra.mxu0 %v1874
    %v1876 = vpop.f32.mrf.mxu0
    %v1877 = vadd.f32 %v1369, %v1876
    %v1878 = vpop.f32.mrf.mxu0
    %1879 = vmatprep.mubr.f32.mxu0 0.0
    %v1880 = vand.u32 %v230, 4294901760
    %v1881 = vsub.f32 %v230, %v1880
    %1882 = vmatmul.mubr.f32.gmra.mxu0 %v1881
    %v1883 = vpop.f32.mrf.mxu0
    %v1884 = vadd.f32 %v1375, %v1883
    %v1885 = vpop.f32.mrf.mxu0
    %1886 = vmatprep.mubr.f32.mxu0 0.0
    %v1887 = vand.u32 %v233, 4294901760
    %v1888 = vsub.f32 %v233, %v1887
    %1889 = vmatmul.mubr.f32.gmra.mxu0 %v1888
    %v1890 = vpop.f32.mrf.mxu0
    %v1891 = vadd.f32 %v1381, %v1890
    %v1892 = vpop.f32.mrf.mxu0
    %1893 = vmatprep.mubr.f32.mxu0 0.0
    %v1894 = vand.u32 %v236, 4294901760
    %v1895 = vsub.f32 %v236, %v1894
    %1896 = vmatmul.mubr.f32.gmra.mxu0 %v1895
    %v1897 = vpop.f32.mrf.mxu0
    %v1898 = vadd.f32 %v1387, %v1897
    %v1899 = vpop.f32.mrf.mxu0
    %1900 = vmatprep.mubr.f32.mxu0 0.0
    %v1901 = vand.u32 %v239, 4294901760
    %v1902 = vsub.f32 %v239, %v1901
    %1903 = vmatmul.mubr.f32.gmra.mxu0 %v1902
    %v1904 = vpop.f32.mrf.mxu0
    %v1905 = vadd.f32 %v1393, %v1904
    %v1906 = vpop.f32.mrf.mxu0
    %1907 = vmatprep.mubr.f32.mxu0 0.0
    %v1908 = vand.u32 %v242, 4294901760
    %v1909 = vsub.f32 %v242, %v1908
    %1910 = vmatmul.mubr.f32.gmra.mxu0 %v1909
    %v1911 = vpop.f32.mrf.mxu0
    %v1912 = vadd.f32 %v1399, %v1911
    %v1913 = vpop.f32.mrf.mxu0
    %1914 = vmatprep.mubr.f32.mxu0 0.0
    %v1915 = vand.u32 %v245, 4294901760
    %v1916 = vsub.f32 %v245, %v1915
    %1917 = vmatmul.mubr.f32.gmra.mxu0 %v1916
    %v1918 = vpop.f32.mrf.mxu0
    %v1919 = vadd.f32 %v1405, %v1918
    %v1920 = vpop.f32.mrf.mxu0
    %1921 = vmatprep.mubr.f32.mxu0 0.0
    %v1922 = vand.u32 %v248, 4294901760
    %v1923 = vsub.f32 %v248, %v1922
    %1924 = vmatmul.mubr.f32.gmra.mxu0 %v1923
    %v1925 = vpop.f32.mrf.mxu0
    %v1926 = vadd.f32 %v1411, %v1925
    %v1927 = vpop.f32.mrf.mxu0
    %1928 = vmatprep.mubr.f32.mxu0 0.0
    %v1929 = vand.u32 %v251, 4294901760
    %v1930 = vsub.f32 %v251, %v1929
    %1931 = vmatmul.mubr.f32.gmra.mxu0 %v1930
    %v1932 = vpop.f32.mrf.mxu0
    %v1933 = vadd.f32 %v1417, %v1932
    %v1934 = vpop.f32.mrf.mxu0
    %1935 = vmatprep.mubr.f32.mxu0 0.0
    %v1936 = vand.u32 %v254, 4294901760
    %v1937 = vsub.f32 %v254, %v1936
    %1938 = vmatmul.mubr.f32.gmra.mxu0 %v1937
    %v1939 = vpop.f32.mrf.mxu0
    %v1940 = vadd.f32 %v1423, %v1939
    %v1941 = vpop.f32.mrf.mxu0
    %1942 = vmatprep.mubr.f32.mxu0 0.0
    %v1943 = vand.u32 %v257, 4294901760
    %v1944 = vsub.f32 %v257, %v1943
    %1945 = vmatmul.mubr.f32.gmra.mxu0 %v1944
    %v1946 = vpop.f32.mrf.mxu0
    %v1947 = vadd.f32 %v1429, %v1946
    %v1948 = vpop.f32.mrf.mxu0
    %1949 = vmatprep.mubr.f32.mxu0 0.0
    %v1950 = vand.u32 %v260, 4294901760
    %v1951 = vsub.f32 %v260, %v1950
    %1952 = vmatmul.mubr.f32.gmra.mxu0 %v1951
    %v1953 = vpop.f32.mrf.mxu0
    %v1954 = vadd.f32 %v1435, %v1953
    %v1955 = vpop.f32.mrf.mxu0
    %1956 = vmatprep.mubr.f32.mxu0 0.0
    %v1957 = vand.u32 %v263, 4294901760
    %v1958 = vsub.f32 %v263, %v1957
    %1959 = vmatmul.mubr.f32.gmra.mxu0 %v1958
    %v1960 = vpop.f32.mrf.mxu0
    %v1961 = vadd.f32 %v1441, %v1960
    %v1962 = vpop.f32.mrf.mxu0
    %1963 = vmatprep.mubr.f32.mxu0 0.0
    %v1964 = vand.u32 %v266, 4294901760
    %v1965 = vsub.f32 %v266, %v1964
    %1966 = vmatmul.mubr.f32.gmra.mxu0 %v1965
    %v1967 = vpop.f32.mrf.mxu0
    %v1968 = vadd.f32 %v1447, %v1967
    %v1969 = vpop.f32.mrf.mxu0
    %1970 = vmatprep.mubr.f32.mxu0 0.0
    %v1971 = vand.u32 %v269, 4294901760
    %v1972 = vsub.f32 %v269, %v1971
    %1973 = vmatmul.mubr.f32.gmra.mxu0 %v1972
    %v1974 = vpop.f32.mrf.mxu0
    %v1975 = vadd.f32 %v1453, %v1974
    %v1976 = vpop.f32.mrf.mxu0
    %1977 = vmatprep.mubr.f32.mxu0 0.0
    %v1978 = vand.u32 %v272, 4294901760
    %v1979 = vsub.f32 %v272, %v1978
    %1980 = vmatmul.mubr.f32.gmra.mxu0 %v1979
    %v1981 = vpop.f32.mrf.mxu0
    %v1982 = vadd.f32 %v1459, %v1981
    %v1983 = vpop.f32.mrf.mxu0
    %1984 = vdwg.mxu0
    %1985 = vmatprep.subr.mxu0 0.0
    %1986 = vmatpush1.msra.mxu0 0.0
    %1987 = vmatprep.subr.mxu0 0.0
    %1988 = vmatpush1.msra.mxu0 0.0
    %1989 = vmatprep.subr.mxu0 0.0
    %1990 = vmatpush1.msra.mxu0 0.0
    %1991 = vmatprep.subr.mxu0 0.0
    %1992 = vmatpush1.msra.mxu0 0.0
    %1993 = vmatprep.subr.mxu0 0.0
    %1994 = vmatpush1.msra.mxu0 0.0
    %1995 = vmatprep.subr.mxu0 0.0
    %1996 = vmatpush1.msra.mxu0 0.0
    %1997 = vmatprep.subr.mxu0 0.0
    %1998 = vmatpush1.msra.mxu0 0.0
    %1999 = vmatprep.subr.mxu0 0.0
    %2000 = vmatpush1.msra.mxu0 0.0
    %2001 = vmatprep.subr.mxu0 0.0
    %2002 = vmatpush1.msra.mxu0 0.0
    %2003 = vmatprep.subr.mxu0 0.0
    %2004 = vmatpush1.msra.mxu0 0.0
    %2005 = vmatprep.subr.mxu0 0.0
    %2006 = vmatpush1.msra.mxu0 0.0
    %2007 = vmatprep.subr.mxu0 0.0
    %v2008 = vand.u32 %v276, 4294901760
    %2009 = vmatpush1.msra.mxu0 %v2008
    %2010 = vmatprep.subr.mxu0 0.0
    %v2011 = vand.u32 %v79, 4294901760
    %2012 = vmatpush1.msra.mxu0 %v2011
    %2013 = vmatprep.subr.mxu0 0.0
    %v2014 = vand.u32 %v78, 4294901760
    %2015 = vmatpush1.msra.mxu0 %v2014
    %2016 = vmatprep.subr.mxu0 0.0
    %v2017 = vand.u32 %v77, 4294901760
    %2018 = vmatpush1.msra.mxu0 %v2017
    %2019 = vmatprep.subr.mxu0 0.0
    %v2020 = vand.u32 %v76, 4294901760
    %2021 = vmatpush1.msra.mxu0 %v2020
    %2022 = vmatprep.subr.mxu0 0.0
    %2023 = vmatpush2.msra.mxu0 0.0
    %2024 = vmatprep.subr.mxu0 0.0
    %2025 = vmatpush2.msra.mxu0 0.0
    %2026 = vmatprep.subr.mxu0 0.0
    %2027 = vmatpush2.msra.mxu0 0.0
    %2028 = vmatprep.subr.mxu0 0.0
    %2029 = vmatpush2.msra.mxu0 0.0
    %2030 = vmatprep.subr.mxu0 0.0
    %2031 = vmatpush2.msra.mxu0 0.0
    %2032 = vmatprep.subr.mxu0 0.0
    %2033 = vmatpush2.msra.mxu0 0.0
    %2034 = vmatprep.subr.mxu0 0.0
    %2035 = vmatpush2.msra.mxu0 0.0
    %2036 = vmatprep.subr.mxu0 0.0
    %2037 = vmatpush2.msra.mxu0 0.0
    %2038 = vmatprep.subr.mxu0 0.0
    %2039 = vmatpush2.msra.mxu0 0.0
    %2040 = vmatprep.subr.mxu0 0.0
    %2041 = vmatpush2.msra.mxu0 0.0
    %2042 = vmatprep.subr.mxu0 0.0
    %2043 = vmatpush2.msra.mxu0 0.0
    %2044 = vmatprep.subr.mxu0 0.0
    %2045 = vmatpush2.msra.mxu0 0.0
    %2046 = vmatprep.subr.mxu0 0.0
    %2047 = vmatpush2.msra.mxu0 0.0
    %2048 = vmatprep.subr.mxu0 0.0
    %2049 = vmatpush2.msra.mxu0 0.0
    %2050 = vmatprep.subr.mxu0 0.0
    %2051 = vmatpush2.msra.mxu0 0.0
    %2052 = vmatprep.subr.mxu0 0.0
    %2053 = vmatpush2.msra.mxu0 0.0
    %2054 = vmatprep.mubr.f32.mxu0 0.0
    %v2055 = vand.u32 %v83, 4294901760
    %v2056 = vsub.f32 %v83, %v2055
    %v2057 = vand.u32 %v2056, 4294901760
    %2058 = vmatmul.mubr.f32.gmra.mxu0 %v2057
    %v2059 = vpop.f32.mrf.mxu0
    %v2060 = vadd.f32 %v1541, %v2059
    %v2061 = vpop.f32.mrf.mxu0
    %2062 = vmatprep.mubr.f32.mxu0 0.0
    %v2063 = vand.u32 %v86, 4294901760
    %v2064 = vsub.f32 %v86, %v2063
    %v2065 = vand.u32 %v2064, 4294901760
    %2066 = vmatmul.mubr.f32.gmra.mxu0 %v2065
    %v2067 = vpop.f32.mrf.mxu0
    %v2068 = vadd.f32 %v1548, %v2067
    %v2069 = vpop.f32.mrf.mxu0
    %2070 = vmatprep.mubr.f32.mxu0 0.0
    %v2071 = vand.u32 %v89, 4294901760
    %v2072 = vsub.f32 %v89, %v2071
    %v2073 = vand.u32 %v2072, 4294901760
    %2074 = vmatmul.mubr.f32.gmra.mxu0 %v2073
    %v2075 = vpop.f32.mrf.mxu0
    %v2076 = vadd.f32 %v1555, %v2075
    %v2077 = vpop.f32.mrf.mxu0
    %2078 = vmatprep.mubr.f32.mxu0 0.0
    %v2079 = vand.u32 %v92, 4294901760
    %v2080 = vsub.f32 %v92, %v2079
    %v2081 = vand.u32 %v2080, 4294901760
    %2082 = vmatmul.mubr.f32.gmra.mxu0 %v2081
    %v2083 = vpop.f32.mrf.mxu0
    %v2084 = vadd.f32 %v1562, %v2083
    %v2085 = vpop.f32.mrf.mxu0
    %2086 = vmatprep.mubr.f32.mxu0 0.0
    %v2087 = vand.u32 %v95, 4294901760
    %v2088 = vsub.f32 %v95, %v2087
    %v2089 = vand.u32 %v2088, 4294901760
    %2090 = vmatmul.mubr.f32.gmra.mxu0 %v2089
    %v2091 = vpop.f32.mrf.mxu0
    %v2092 = vadd.f32 %v1569, %v2091
    %v2093 = vpop.f32.mrf.mxu0
    %2094 = vmatprep.mubr.f32.mxu0 0.0
    %v2095 = vand.u32 %v98, 4294901760
    %v2096 = vsub.f32 %v98, %v2095
    %v2097 = vand.u32 %v2096, 4294901760
    %2098 = vmatmul.mubr.f32.gmra.mxu0 %v2097
    %v2099 = vpop.f32.mrf.mxu0
    %v2100 = vadd.f32 %v1576, %v2099
    %v2101 = vpop.f32.mrf.mxu0
    %2102 = vmatprep.mubr.f32.mxu0 0.0
    %v2103 = vand.u32 %v101, 4294901760
    %v2104 = vsub.f32 %v101, %v2103
    %v2105 = vand.u32 %v2104, 4294901760
    %2106 = vmatmul.mubr.f32.gmra.mxu0 %v2105
    %v2107 = vpop.f32.mrf.mxu0
    %v2108 = vadd.f32 %v1583, %v2107
    %v2109 = vpop.f32.mrf.mxu0
    %2110 = vmatprep.mubr.f32.mxu0 0.0
    %v2111 = vand.u32 %v104, 4294901760
    %v2112 = vsub.f32 %v104, %v2111
    %v2113 = vand.u32 %v2112, 4294901760
    %2114 = vmatmul.mubr.f32.gmra.mxu0 %v2113
    %v2115 = vpop.f32.mrf.mxu0
    %v2116 = vadd.f32 %v1590, %v2115
    %v2117 = vpop.f32.mrf.mxu0
    %2118 = vmatprep.mubr.f32.mxu0 0.0
    %v2119 = vand.u32 %v107, 4294901760
    %v2120 = vsub.f32 %v107, %v2119
    %v2121 = vand.u32 %v2120, 4294901760
    %2122 = vmatmul.mubr.f32.gmra.mxu0 %v2121
    %v2123 = vpop.f32.mrf.mxu0
    %v2124 = vadd.f32 %v1597, %v2123
    %v2125 = vpop.f32.mrf.mxu0
    %2126 = vmatprep.mubr.f32.mxu0 0.0
    %v2127 = vand.u32 %v110, 4294901760
    %v2128 = vsub.f32 %v110, %v2127
    %v2129 = vand.u32 %v2128, 4294901760
    %2130 = vmatmul.mubr.f32.gmra.mxu0 %v2129
    %v2131 = vpop.f32.mrf.mxu0
    %v2132 = vadd.f32 %v1604, %v2131
    %v2133 = vpop.f32.mrf.mxu0
    %2134 = vmatprep.mubr.f32.mxu0 0.0
    %v2135 = vand.u32 %v113, 4294901760
    %v2136 = vsub.f32 %v113, %v2135
    %v2137 = vand.u32 %v2136, 4294901760
    %2138 = vmatmul.mubr.f32.gmra.mxu0 %v2137
    %v2139 = vpop.f32.mrf.mxu0
    %v2140 = vadd.f32 %v1611, %v2139
    %v2141 = vpop.f32.mrf.mxu0
    %2142 = vmatprep.mubr.f32.mxu0 0.0
    %v2143 = vand.u32 %v116, 4294901760
    %v2144 = vsub.f32 %v116, %v2143
    %v2145 = vand.u32 %v2144, 4294901760
    %2146 = vmatmul.mubr.f32.gmra.mxu0 %v2145
    %v2147 = vpop.f32.mrf.mxu0
    %v2148 = vadd.f32 %v1618, %v2147
    %v2149 = vpop.f32.mrf.mxu0
    %2150 = vmatprep.mubr.f32.mxu0 0.0
    %v2151 = vand.u32 %v119, 4294901760
    %v2152 = vsub.f32 %v119, %v2151
    %v2153 = vand.u32 %v2152, 4294901760
    %2154 = vmatmul.mubr.f32.gmra.mxu0 %v2153
    %v2155 = vpop.f32.mrf.mxu0
    %v2156 = vadd.f32 %v1625, %v2155
    %v2157 = vpop.f32.mrf.mxu0
    %2158 = vmatprep.mubr.f32.mxu0 0.0
    %v2159 = vand.u32 %v122, 4294901760
    %v2160 = vsub.f32 %v122, %v2159
    %v2161 = vand.u32 %v2160, 4294901760
    %2162 = vmatmul.mubr.f32.gmra.mxu0 %v2161
    %v2163 = vpop.f32.mrf.mxu0
    %v2164 = vadd.f32 %v1632, %v2163
    %v2165 = vpop.f32.mrf.mxu0
    %2166 = vmatprep.mubr.f32.mxu0 0.0
    %v2167 = vand.u32 %v125, 4294901760
    %v2168 = vsub.f32 %v125, %v2167
    %v2169 = vand.u32 %v2168, 4294901760
    %2170 = vmatmul.mubr.f32.gmra.mxu0 %v2169
    %v2171 = vpop.f32.mrf.mxu0
    %v2172 = vadd.f32 %v1639, %v2171
    %v2173 = vpop.f32.mrf.mxu0
    %2174 = vmatprep.mubr.f32.mxu0 0.0
    %v2175 = vand.u32 %v128, 4294901760
    %v2176 = vsub.f32 %v128, %v2175
    %v2177 = vand.u32 %v2176, 4294901760
    %2178 = vmatmul.mubr.f32.gmra.mxu0 %v2177
    %v2179 = vpop.f32.mrf.mxu0
    %v2180 = vadd.f32 %v1646, %v2179
    %v2181 = vpop.f32.mrf.mxu0
    %2182 = vmatprep.mubr.f32.mxu0 0.0
    %v2183 = vand.u32 %v131, 4294901760
    %v2184 = vsub.f32 %v131, %v2183
    %v2185 = vand.u32 %v2184, 4294901760
    %2186 = vmatmul.mubr.f32.gmra.mxu0 %v2185
    %v2187 = vpop.f32.mrf.mxu0
    %v2188 = vadd.f32 %v1653, %v2187
    %v2189 = vpop.f32.mrf.mxu0
    %2190 = vmatprep.mubr.f32.mxu0 0.0
    %v2191 = vand.u32 %v134, 4294901760
    %v2192 = vsub.f32 %v134, %v2191
    %v2193 = vand.u32 %v2192, 4294901760
    %2194 = vmatmul.mubr.f32.gmra.mxu0 %v2193
    %v2195 = vpop.f32.mrf.mxu0
    %v2196 = vadd.f32 %v1660, %v2195
    %v2197 = vpop.f32.mrf.mxu0
    %2198 = vmatprep.mubr.f32.mxu0 0.0
    %v2199 = vand.u32 %v137, 4294901760
    %v2200 = vsub.f32 %v137, %v2199
    %v2201 = vand.u32 %v2200, 4294901760
    %2202 = vmatmul.mubr.f32.gmra.mxu0 %v2201
    %v2203 = vpop.f32.mrf.mxu0
    %v2204 = vadd.f32 %v1667, %v2203
    %v2205 = vpop.f32.mrf.mxu0
    %2206 = vmatprep.mubr.f32.mxu0 0.0
    %v2207 = vand.u32 %v140, 4294901760
    %v2208 = vsub.f32 %v140, %v2207
    %v2209 = vand.u32 %v2208, 4294901760
    %2210 = vmatmul.mubr.f32.gmra.mxu0 %v2209
    %v2211 = vpop.f32.mrf.mxu0
    %v2212 = vadd.f32 %v1674, %v2211
    %v2213 = vpop.f32.mrf.mxu0
    %2214 = vmatprep.mubr.f32.mxu0 0.0
    %v2215 = vand.u32 %v143, 4294901760
    %v2216 = vsub.f32 %v143, %v2215
    %v2217 = vand.u32 %v2216, 4294901760
    %2218 = vmatmul.mubr.f32.gmra.mxu0 %v2217
    %v2219 = vpop.f32.mrf.mxu0
    %v2220 = vadd.f32 %v1681, %v2219
    %v2221 = vpop.f32.mrf.mxu0
    %2222 = vmatprep.mubr.f32.mxu0 0.0
    %v2223 = vand.u32 %v146, 4294901760
    %v2224 = vsub.f32 %v146, %v2223
    %v2225 = vand.u32 %v2224, 4294901760
    %2226 = vmatmul.mubr.f32.gmra.mxu0 %v2225
    %v2227 = vpop.f32.mrf.mxu0
    %v2228 = vadd.f32 %v1688, %v2227
    %v2229 = vpop.f32.mrf.mxu0
    %2230 = vmatprep.mubr.f32.mxu0 0.0
    %v2231 = vand.u32 %v149, 4294901760
    %v2232 = vsub.f32 %v149, %v2231
    %v2233 = vand.u32 %v2232, 4294901760
    %2234 = vmatmul.mubr.f32.gmra.mxu0 %v2233
    %v2235 = vpop.f32.mrf.mxu0
    %v2236 = vadd.f32 %v1695, %v2235
    %v2237 = vpop.f32.mrf.mxu0
    %2238 = vmatprep.mubr.f32.mxu0 0.0
    %v2239 = vand.u32 %v152, 4294901760
    %v2240 = vsub.f32 %v152, %v2239
    %v2241 = vand.u32 %v2240, 4294901760
    %2242 = vmatmul.mubr.f32.gmra.mxu0 %v2241
    %v2243 = vpop.f32.mrf.mxu0
    %v2244 = vadd.f32 %v1702, %v2243
    %v2245 = vpop.f32.mrf.mxu0
    %2246 = vmatprep.mubr.f32.mxu0 0.0
    %v2247 = vand.u32 %v155, 4294901760
    %v2248 = vsub.f32 %v155, %v2247
    %v2249 = vand.u32 %v2248, 4294901760
    %2250 = vmatmul.mubr.f32.gmra.mxu0 %v2249
    %v2251 = vpop.f32.mrf.mxu0
    %v2252 = vadd.f32 %v1709, %v2251
    %v2253 = vpop.f32.mrf.mxu0
    %2254 = vmatprep.mubr.f32.mxu0 0.0
    %v2255 = vand.u32 %v158, 4294901760
    %v2256 = vsub.f32 %v158, %v2255
    %v2257 = vand.u32 %v2256, 4294901760
    %2258 = vmatmul.mubr.f32.gmra.mxu0 %v2257
    %v2259 = vpop.f32.mrf.mxu0
    %v2260 = vadd.f32 %v1716, %v2259
    %v2261 = vpop.f32.mrf.mxu0
    %2262 = vmatprep.mubr.f32.mxu0 0.0
    %v2263 = vand.u32 %v161, 4294901760
    %v2264 = vsub.f32 %v161, %v2263
    %v2265 = vand.u32 %v2264, 4294901760
    %2266 = vmatmul.mubr.f32.gmra.mxu0 %v2265
    %v2267 = vpop.f32.mrf.mxu0
    %v2268 = vadd.f32 %v1723, %v2267
    %v2269 = vpop.f32.mrf.mxu0
    %2270 = vmatprep.mubr.f32.mxu0 0.0
    %v2271 = vand.u32 %v164, 4294901760
    %v2272 = vsub.f32 %v164, %v2271
    %v2273 = vand.u32 %v2272, 4294901760
    %2274 = vmatmul.mubr.f32.gmra.mxu0 %v2273
    %v2275 = vpop.f32.mrf.mxu0
    %v2276 = vadd.f32 %v1730, %v2275
    %v2277 = vpop.f32.mrf.mxu0
    %2278 = vmatprep.mubr.f32.mxu0 0.0
    %v2279 = vand.u32 %v167, 4294901760
    %v2280 = vsub.f32 %v167, %v2279
    %v2281 = vand.u32 %v2280, 4294901760
    %2282 = vmatmul.mubr.f32.gmra.mxu0 %v2281
    %v2283 = vpop.f32.mrf.mxu0
    %v2284 = vadd.f32 %v1737, %v2283
    %v2285 = vpop.f32.mrf.mxu0
    %2286 = vmatprep.mubr.f32.mxu0 0.0
    %v2287 = vand.u32 %v170, 4294901760
    %v2288 = vsub.f32 %v170, %v2287
    %v2289 = vand.u32 %v2288, 4294901760
    %2290 = vmatmul.mubr.f32.gmra.mxu0 %v2289
    %v2291 = vpop.f32.mrf.mxu0
    %v2292 = vadd.f32 %v1744, %v2291
    %v2293 = vpop.f32.mrf.mxu0
    %2294 = vmatprep.mubr.f32.mxu0 0.0
    %v2295 = vand.u32 %v173, 4294901760
    %v2296 = vsub.f32 %v173, %v2295
    %v2297 = vand.u32 %v2296, 4294901760
    %2298 = vmatmul.mubr.f32.gmra.mxu0 %v2297
    %v2299 = vpop.f32.mrf.mxu0
    %v2300 = vadd.f32 %v1751, %v2299
    %v2301 = vpop.f32.mrf.mxu0
    %2302 = vmatprep.mubr.f32.mxu0 0.0
    %v2303 = vand.u32 %v176, 4294901760
    %v2304 = vsub.f32 %v176, %v2303
    %v2305 = vand.u32 %v2304, 4294901760
    %2306 = vmatmul.mubr.f32.gmra.mxu0 %v2305
    %v2307 = vpop.f32.mrf.mxu0
    %v2308 = vadd.f32 %v1758, %v2307
    %v2309 = vpop.f32.mrf.mxu0
    %2310 = vmatprep.mubr.f32.mxu0 0.0
    %v2311 = vand.u32 %v179, 4294901760
    %v2312 = vsub.f32 %v179, %v2311
    %v2313 = vand.u32 %v2312, 4294901760
    %2314 = vmatmul.mubr.f32.gmra.mxu0 %v2313
    %v2315 = vpop.f32.mrf.mxu0
    %v2316 = vadd.f32 %v1765, %v2315
    %v2317 = vpop.f32.mrf.mxu0
    %2318 = vmatprep.mubr.f32.mxu0 0.0
    %v2319 = vand.u32 %v182, 4294901760
    %v2320 = vsub.f32 %v182, %v2319
    %v2321 = vand.u32 %v2320, 4294901760
    %2322 = vmatmul.mubr.f32.gmra.mxu0 %v2321
    %v2323 = vpop.f32.mrf.mxu0
    %v2324 = vadd.f32 %v1772, %v2323
    %v2325 = vpop.f32.mrf.mxu0
    %2326 = vmatprep.mubr.f32.mxu0 0.0
    %v2327 = vand.u32 %v185, 4294901760
    %v2328 = vsub.f32 %v185, %v2327
    %v2329 = vand.u32 %v2328, 4294901760
    %2330 = vmatmul.mubr.f32.gmra.mxu0 %v2329
    %v2331 = vpop.f32.mrf.mxu0
    %v2332 = vadd.f32 %v1779, %v2331
    %v2333 = vpop.f32.mrf.mxu0
    %2334 = vmatprep.mubr.f32.mxu0 0.0
    %v2335 = vand.u32 %v188, 4294901760
    %v2336 = vsub.f32 %v188, %v2335
    %v2337 = vand.u32 %v2336, 4294901760
    %2338 = vmatmul.mubr.f32.gmra.mxu0 %v2337
    %v2339 = vpop.f32.mrf.mxu0
    %v2340 = vadd.f32 %v1786, %v2339
    %v2341 = vpop.f32.mrf.mxu0
    %2342 = vmatprep.mubr.f32.mxu0 0.0
    %v2343 = vand.u32 %v191, 4294901760
    %v2344 = vsub.f32 %v191, %v2343
    %v2345 = vand.u32 %v2344, 4294901760
    %2346 = vmatmul.mubr.f32.gmra.mxu0 %v2345
    %v2347 = vpop.f32.mrf.mxu0
    %v2348 = vadd.f32 %v1793, %v2347
    %v2349 = vpop.f32.mrf.mxu0
    %2350 = vmatprep.mubr.f32.mxu0 0.0
    %v2351 = vand.u32 %v194, 4294901760
    %v2352 = vsub.f32 %v194, %v2351
    %v2353 = vand.u32 %v2352, 4294901760
    %2354 = vmatmul.mubr.f32.gmra.mxu0 %v2353
    %v2355 = vpop.f32.mrf.mxu0
    %v2356 = vadd.f32 %v1800, %v2355
    %v2357 = vpop.f32.mrf.mxu0
    %2358 = vmatprep.mubr.f32.mxu0 0.0
    %v2359 = vand.u32 %v197, 4294901760
    %v2360 = vsub.f32 %v197, %v2359
    %v2361 = vand.u32 %v2360, 4294901760
    %2362 = vmatmul.mubr.f32.gmra.mxu0 %v2361
    %v2363 = vpop.f32.mrf.mxu0
    %v2364 = vadd.f32 %v1807, %v2363
    %v2365 = vpop.f32.mrf.mxu0
    %2366 = vmatprep.mubr.f32.mxu0 0.0
    %v2367 = vand.u32 %v200, 4294901760
    %v2368 = vsub.f32 %v200, %v2367
    %v2369 = vand.u32 %v2368, 4294901760
    %2370 = vmatmul.mubr.f32.gmra.mxu0 %v2369
    %v2371 = vpop.f32.mrf.mxu0
    %v2372 = vadd.f32 %v1814, %v2371
    %v2373 = vpop.f32.mrf.mxu0
    %2374 = vmatprep.mubr.f32.mxu0 0.0
    %v2375 = vand.u32 %v203, 4294901760
    %v2376 = vsub.f32 %v203, %v2375
    %v2377 = vand.u32 %v2376, 4294901760
    %2378 = vmatmul.mubr.f32.gmra.mxu0 %v2377
    %v2379 = vpop.f32.mrf.mxu0
    %v2380 = vadd.f32 %v1821, %v2379
    %v2381 = vpop.f32.mrf.mxu0
    %2382 = vmatprep.mubr.f32.mxu0 0.0
    %v2383 = vand.u32 %v206, 4294901760
    %v2384 = vsub.f32 %v206, %v2383
    %v2385 = vand.u32 %v2384, 4294901760
    %2386 = vmatmul.mubr.f32.gmra.mxu0 %v2385
    %v2387 = vpop.f32.mrf.mxu0
    %v2388 = vadd.f32 %v1828, %v2387
    %v2389 = vpop.f32.mrf.mxu0
    %2390 = vmatprep.mubr.f32.mxu0 0.0
    %v2391 = vand.u32 %v209, 4294901760
    %v2392 = vsub.f32 %v209, %v2391
    %v2393 = vand.u32 %v2392, 4294901760
    %2394 = vmatmul.mubr.f32.gmra.mxu0 %v2393
    %v2395 = vpop.f32.mrf.mxu0
    %v2396 = vadd.f32 %v1835, %v2395
    %v2397 = vpop.f32.mrf.mxu0
    %2398 = vmatprep.mubr.f32.mxu0 0.0
    %v2399 = vand.u32 %v212, 4294901760
    %v2400 = vsub.f32 %v212, %v2399
    %v2401 = vand.u32 %v2400, 4294901760
    %2402 = vmatmul.mubr.f32.gmra.mxu0 %v2401
    %v2403 = vpop.f32.mrf.mxu0
    %v2404 = vadd.f32 %v1842, %v2403
    %v2405 = vpop.f32.mrf.mxu0
    %2406 = vmatprep.mubr.f32.mxu0 0.0
    %v2407 = vand.u32 %v215, 4294901760
    %v2408 = vsub.f32 %v215, %v2407
    %v2409 = vand.u32 %v2408, 4294901760
    %2410 = vmatmul.mubr.f32.gmra.mxu0 %v2409
    %v2411 = vpop.f32.mrf.mxu0
    %v2412 = vadd.f32 %v1849, %v2411
    %v2413 = vpop.f32.mrf.mxu0
    %2414 = vmatprep.mubr.f32.mxu0 0.0
    %v2415 = vand.u32 %v218, 4294901760
    %v2416 = vsub.f32 %v218, %v2415
    %v2417 = vand.u32 %v2416, 4294901760
    %2418 = vmatmul.mubr.f32.gmra.mxu0 %v2417
    %v2419 = vpop.f32.mrf.mxu0
    %v2420 = vadd.f32 %v1856, %v2419
    %v2421 = vpop.f32.mrf.mxu0
    %2422 = vmatprep.mubr.f32.mxu0 0.0
    %v2423 = vand.u32 %v221, 4294901760
    %v2424 = vsub.f32 %v221, %v2423
    %v2425 = vand.u32 %v2424, 4294901760
    %2426 = vmatmul.mubr.f32.gmra.mxu0 %v2425
    %v2427 = vpop.f32.mrf.mxu0
    %v2428 = vadd.f32 %v1863, %v2427
    %v2429 = vpop.f32.mrf.mxu0
    %2430 = vmatprep.mubr.f32.mxu0 0.0
    %v2431 = vand.u32 %v224, 4294901760
    %v2432 = vsub.f32 %v224, %v2431
    %v2433 = vand.u32 %v2432, 4294901760
    %2434 = vmatmul.mubr.f32.gmra.mxu0 %v2433
    %v2435 = vpop.f32.mrf.mxu0
    %v2436 = vadd.f32 %v1870, %v2435
    %v2437 = vpop.f32.mrf.mxu0
    %2438 = vmatprep.mubr.f32.mxu0 0.0
    %v2439 = vand.u32 %v227, 4294901760
    %v2440 = vsub.f32 %v227, %v2439
    %v2441 = vand.u32 %v2440, 4294901760
    %2442 = vmatmul.mubr.f32.gmra.mxu0 %v2441
    %v2443 = vpop.f32.mrf.mxu0
    %v2444 = vadd.f32 %v1877, %v2443
    %v2445 = vpop.f32.mrf.mxu0
    %2446 = vmatprep.mubr.f32.mxu0 0.0
    %v2447 = vand.u32 %v230, 4294901760
    %v2448 = vsub.f32 %v230, %v2447
    %v2449 = vand.u32 %v2448, 4294901760
    %2450 = vmatmul.mubr.f32.gmra.mxu0 %v2449
    %v2451 = vpop.f32.mrf.mxu0
    %v2452 = vadd.f32 %v1884, %v2451
    %v2453 = vpop.f32.mrf.mxu0
    %2454 = vmatprep.mubr.f32.mxu0 0.0
    %v2455 = vand.u32 %v233, 4294901760
    %v2456 = vsub.f32 %v233, %v2455
    %v2457 = vand.u32 %v2456, 4294901760
    %2458 = vmatmul.mubr.f32.gmra.mxu0 %v2457
    %v2459 = vpop.f32.mrf.mxu0
    %v2460 = vadd.f32 %v1891, %v2459
    %v2461 = vpop.f32.mrf.mxu0
    %2462 = vmatprep.mubr.f32.mxu0 0.0
    %v2463 = vand.u32 %v236, 4294901760
    %v2464 = vsub.f32 %v236, %v2463
    %v2465 = vand.u32 %v2464, 4294901760
    %2466 = vmatmul.mubr.f32.gmra.mxu0 %v2465
    %v2467 = vpop.f32.mrf.mxu0
    %v2468 = vadd.f32 %v1898, %v2467
    %v2469 = vpop.f32.mrf.mxu0
    %2470 = vmatprep.mubr.f32.mxu0 0.0
    %v2471 = vand.u32 %v239, 4294901760
    %v2472 = vsub.f32 %v239, %v2471
    %v2473 = vand.u32 %v2472, 4294901760
    %2474 = vmatmul.mubr.f32.gmra.mxu0 %v2473
    %v2475 = vpop.f32.mrf.mxu0
    %v2476 = vadd.f32 %v1905, %v2475
    %v2477 = vpop.f32.mrf.mxu0
    %2478 = vmatprep.mubr.f32.mxu0 0.0
    %v2479 = vand.u32 %v242, 4294901760
    %v2480 = vsub.f32 %v242, %v2479
    %v2481 = vand.u32 %v2480, 4294901760
    %2482 = vmatmul.mubr.f32.gmra.mxu0 %v2481
    %v2483 = vpop.f32.mrf.mxu0
    %v2484 = vadd.f32 %v1912, %v2483
    %v2485 = vpop.f32.mrf.mxu0
    %2486 = vmatprep.mubr.f32.mxu0 0.0
    %v2487 = vand.u32 %v245, 4294901760
    %v2488 = vsub.f32 %v245, %v2487
    %v2489 = vand.u32 %v2488, 4294901760
    %2490 = vmatmul.mubr.f32.gmra.mxu0 %v2489
    %v2491 = vpop.f32.mrf.mxu0
    %v2492 = vadd.f32 %v1919, %v2491
    %v2493 = vpop.f32.mrf.mxu0
    %2494 = vmatprep.mubr.f32.mxu0 0.0
    %v2495 = vand.u32 %v248, 4294901760
    %v2496 = vsub.f32 %v248, %v2495
    %v2497 = vand.u32 %v2496, 4294901760
    %2498 = vmatmul.mubr.f32.gmra.mxu0 %v2497
    %v2499 = vpop.f32.mrf.mxu0
    %v2500 = vadd.f32 %v1926, %v2499
    %v2501 = vpop.f32.mrf.mxu0
    %2502 = vmatprep.mubr.f32.mxu0 0.0
    %v2503 = vand.u32 %v251, 4294901760
    %v2504 = vsub.f32 %v251, %v2503
    %v2505 = vand.u32 %v2504, 4294901760
    %2506 = vmatmul.mubr.f32.gmra.mxu0 %v2505
    %v2507 = vpop.f32.mrf.mxu0
    %v2508 = vadd.f32 %v1933, %v2507
    %v2509 = vpop.f32.mrf.mxu0
    %2510 = vmatprep.mubr.f32.mxu0 0.0
    %v2511 = vand.u32 %v254, 4294901760
    %v2512 = vsub.f32 %v254, %v2511
    %v2513 = vand.u32 %v2512, 4294901760
    %2514 = vmatmul.mubr.f32.gmra.mxu0 %v2513
    %v2515 = vpop.f32.mrf.mxu0
    %v2516 = vadd.f32 %v1940, %v2515
    %v2517 = vpop.f32.mrf.mxu0
    %2518 = vmatprep.mubr.f32.mxu0 0.0
    %v2519 = vand.u32 %v257, 4294901760
    %v2520 = vsub.f32 %v257, %v2519
    %v2521 = vand.u32 %v2520, 4294901760
    %2522 = vmatmul.mubr.f32.gmra.mxu0 %v2521
    %v2523 = vpop.f32.mrf.mxu0
    %v2524 = vadd.f32 %v1947, %v2523
    %v2525 = vpop.f32.mrf.mxu0
    %2526 = vmatprep.mubr.f32.mxu0 0.0
    %v2527 = vand.u32 %v260, 4294901760
    %v2528 = vsub.f32 %v260, %v2527
    %v2529 = vand.u32 %v2528, 4294901760
    %2530 = vmatmul.mubr.f32.gmra.mxu0 %v2529
    %v2531 = vpop.f32.mrf.mxu0
    %v2532 = vadd.f32 %v1954, %v2531
    %v2533 = vpop.f32.mrf.mxu0
    %2534 = vmatprep.mubr.f32.mxu0 0.0
    %v2535 = vand.u32 %v263, 4294901760
    %v2536 = vsub.f32 %v263, %v2535
    %v2537 = vand.u32 %v2536, 4294901760
    %2538 = vmatmul.mubr.f32.gmra.mxu0 %v2537
    %v2539 = vpop.f32.mrf.mxu0
    %v2540 = vadd.f32 %v1961, %v2539
    %v2541 = vpop.f32.mrf.mxu0
    %2542 = vmatprep.mubr.f32.mxu0 0.0
    %v2543 = vand.u32 %v266, 4294901760
    %v2544 = vsub.f32 %v266, %v2543
    %v2545 = vand.u32 %v2544, 4294901760
    %2546 = vmatmul.mubr.f32.gmra.mxu0 %v2545
    %v2547 = vpop.f32.mrf.mxu0
    %v2548 = vadd.f32 %v1968, %v2547
    %v2549 = vpop.f32.mrf.mxu0
    %2550 = vmatprep.mubr.f32.mxu0 0.0
    %v2551 = vand.u32 %v269, 4294901760
    %v2552 = vsub.f32 %v269, %v2551
    %v2553 = vand.u32 %v2552, 4294901760
    %2554 = vmatmul.mubr.f32.gmra.mxu0 %v2553
    %v2555 = vpop.f32.mrf.mxu0
    %v2556 = vadd.f32 %v1975, %v2555
    %v2557 = vpop.f32.mrf.mxu0
    %2558 = vmatprep.mubr.f32.mxu0 0.0
    %v2559 = vand.u32 %v272, 4294901760
    %v2560 = vsub.f32 %v272, %v2559
    %v2561 = vand.u32 %v2560, 4294901760
    %2562 = vmatmul.mubr.f32.gmra.mxu0 %v2561
    %v2563 = vpop.f32.mrf.mxu0
    %v2564 = vadd.f32 %v1982, %v2563
    %v2565 = vpop.f32.mrf.mxu0
    %2566 = vdwg.mxu0
    %2567 = vmatprep.subr.mxu0 0.0
    %2568 = vmatpush1.msra.mxu0 0.0
    %2569 = vmatprep.subr.mxu0 0.0
    %2570 = vmatpush1.msra.mxu0 0.0
    %2571 = vmatprep.subr.mxu0 0.0
    %2572 = vmatpush1.msra.mxu0 0.0
    %2573 = vmatprep.subr.mxu0 0.0
    %2574 = vmatpush1.msra.mxu0 0.0
    %2575 = vmatprep.subr.mxu0 0.0
    %2576 = vmatpush1.msra.mxu0 0.0
    %2577 = vmatprep.subr.mxu0 0.0
    %2578 = vmatpush1.msra.mxu0 0.0
    %2579 = vmatprep.subr.mxu0 0.0
    %2580 = vmatpush1.msra.mxu0 0.0
    %2581 = vmatprep.subr.mxu0 0.0
    %2582 = vmatpush1.msra.mxu0 0.0
    %2583 = vmatprep.subr.mxu0 0.0
    %2584 = vmatpush1.msra.mxu0 0.0
    %2585 = vmatprep.subr.mxu0 0.0
    %2586 = vmatpush1.msra.mxu0 0.0
    %2587 = vmatprep.subr.mxu0 0.0
    %2588 = vmatpush1.msra.mxu0 0.0
    %2589 = vmatprep.subr.mxu0 0.0
    %v2590 = vand.u32 %v276, 4294901760
    %v2591 = vsub.f32 %v276, %v2590
    %v2592 = vand.u32 %v2591, 4294901760
    %2593 = vmatpush1.msra.mxu0 %v2592
    %2594 = vmatprep.subr.mxu0 0.0
    %v2595 = vand.u32 %v79, 4294901760
    %v2596 = vsub.f32 %v79, %v2595
    %v2597 = vand.u32 %v2596, 4294901760
    %2598 = vmatpush1.msra.mxu0 %v2597
    %2599 = vmatprep.subr.mxu0 0.0
    %v2600 = vand.u32 %v78, 4294901760
    %v2601 = vsub.f32 %v78, %v2600
    %v2602 = vand.u32 %v2601, 4294901760
    %2603 = vmatpush1.msra.mxu0 %v2602
    %2604 = vmatprep.subr.mxu0 0.0
    %v2605 = vand.u32 %v77, 4294901760
    %v2606 = vsub.f32 %v77, %v2605
    %v2607 = vand.u32 %v2606, 4294901760
    %2608 = vmatpush1.msra.mxu0 %v2607
    %2609 = vmatprep.subr.mxu0 0.0
    %v2610 = vand.u32 %v76, 4294901760
    %v2611 = vsub.f32 %v76, %v2610
    %v2612 = vand.u32 %v2611, 4294901760
    %2613 = vmatpush1.msra.mxu0 %v2612
    %2614 = vmatprep.subr.mxu0 0.0
    %2615 = vmatpush2.msra.mxu0 0.0
    %2616 = vmatprep.subr.mxu0 0.0
    %2617 = vmatpush2.msra.mxu0 0.0
    %2618 = vmatprep.subr.mxu0 0.0
    %2619 = vmatpush2.msra.mxu0 0.0
    %2620 = vmatprep.subr.mxu0 0.0
    %2621 = vmatpush2.msra.mxu0 0.0
    %2622 = vmatprep.subr.mxu0 0.0
    %2623 = vmatpush2.msra.mxu0 0.0
    %2624 = vmatprep.subr.mxu0 0.0
    %2625 = vmatpush2.msra.mxu0 0.0
    %2626 = vmatprep.subr.mxu0 0.0
    %2627 = vmatpush2.msra.mxu0 0.0
    %2628 = vmatprep.subr.mxu0 0.0
    %2629 = vmatpush2.msra.mxu0 0.0
    %2630 = vmatprep.subr.mxu0 0.0
    %2631 = vmatpush2.msra.mxu0 0.0
    %2632 = vmatprep.subr.mxu0 0.0
    %2633 = vmatpush2.msra.mxu0 0.0
    %2634 = vmatprep.subr.mxu0 0.0
    %2635 = vmatpush2.msra.mxu0 0.0
    %2636 = vmatprep.subr.mxu0 0.0
    %2637 = vmatpush2.msra.mxu0 0.0
    %2638 = vmatprep.subr.mxu0 0.0
    %2639 = vmatpush2.msra.mxu0 0.0
    %2640 = vmatprep.subr.mxu0 0.0
    %2641 = vmatpush2.msra.mxu0 0.0
    %2642 = vmatprep.subr.mxu0 0.0
    %2643 = vmatpush2.msra.mxu0 0.0
    %2644 = vmatprep.subr.mxu0 0.0
    %2645 = vmatpush2.msra.mxu0 0.0
    %2646 = vmatprep.mubr.f32.mxu0 0.0
    %v2647 = vand.u32 %v83, 4294901760
    %2648 = vmatmul.mubr.f32.gmra.mxu0 %v2647
    %v2649 = vpop.f32.mrf.mxu0
    %v2650 = vadd.f32 %v2060, %v2649
    %v2651 = vpop.f32.mrf.mxu0
    %2652 = vmatprep.mubr.f32.mxu0 0.0
    %v2653 = vand.u32 %v86, 4294901760
    %2654 = vmatmul.mubr.f32.gmra.mxu0 %v2653
    %v2655 = vpop.f32.mrf.mxu0
    %v2656 = vadd.f32 %v2068, %v2655
    %v2657 = vpop.f32.mrf.mxu0
    %2658 = vmatprep.mubr.f32.mxu0 0.0
    %v2659 = vand.u32 %v89, 4294901760
    %2660 = vmatmul.mubr.f32.gmra.mxu0 %v2659
    %v2661 = vpop.f32.mrf.mxu0
    %v2662 = vadd.f32 %v2076, %v2661
    %v2663 = vpop.f32.mrf.mxu0
    %2664 = vmatprep.mubr.f32.mxu0 0.0
    %v2665 = vand.u32 %v92, 4294901760
    %2666 = vmatmul.mubr.f32.gmra.mxu0 %v2665
    %v2667 = vpop.f32.mrf.mxu0
    %v2668 = vadd.f32 %v2084, %v2667
    %v2669 = vpop.f32.mrf.mxu0
    %2670 = vmatprep.mubr.f32.mxu0 0.0
    %v2671 = vand.u32 %v95, 4294901760
    %2672 = vmatmul.mubr.f32.gmra.mxu0 %v2671
    %v2673 = vpop.f32.mrf.mxu0
    %v2674 = vadd.f32 %v2092, %v2673
    %v2675 = vpop.f32.mrf.mxu0
    %2676 = vmatprep.mubr.f32.mxu0 0.0
    %v2677 = vand.u32 %v98, 4294901760
    %2678 = vmatmul.mubr.f32.gmra.mxu0 %v2677
    %v2679 = vpop.f32.mrf.mxu0
    %v2680 = vadd.f32 %v2100, %v2679
    %v2681 = vpop.f32.mrf.mxu0
    %2682 = vmatprep.mubr.f32.mxu0 0.0
    %v2683 = vand.u32 %v101, 4294901760
    %2684 = vmatmul.mubr.f32.gmra.mxu0 %v2683
    %v2685 = vpop.f32.mrf.mxu0
    %v2686 = vadd.f32 %v2108, %v2685
    %v2687 = vpop.f32.mrf.mxu0
    %2688 = vmatprep.mubr.f32.mxu0 0.0
    %v2689 = vand.u32 %v104, 4294901760
    %2690 = vmatmul.mubr.f32.gmra.mxu0 %v2689
    %v2691 = vpop.f32.mrf.mxu0
    %v2692 = vadd.f32 %v2116, %v2691
    %v2693 = vpop.f32.mrf.mxu0
    %2694 = vmatprep.mubr.f32.mxu0 0.0
    %v2695 = vand.u32 %v107, 4294901760
    %2696 = vmatmul.mubr.f32.gmra.mxu0 %v2695
    %v2697 = vpop.f32.mrf.mxu0
    %v2698 = vadd.f32 %v2124, %v2697
    %v2699 = vpop.f32.mrf.mxu0
    %2700 = vmatprep.mubr.f32.mxu0 0.0
    %v2701 = vand.u32 %v110, 4294901760
    %2702 = vmatmul.mubr.f32.gmra.mxu0 %v2701
    %v2703 = vpop.f32.mrf.mxu0
    %v2704 = vadd.f32 %v2132, %v2703
    %v2705 = vpop.f32.mrf.mxu0
    %2706 = vmatprep.mubr.f32.mxu0 0.0
    %v2707 = vand.u32 %v113, 4294901760
    %2708 = vmatmul.mubr.f32.gmra.mxu0 %v2707
    %v2709 = vpop.f32.mrf.mxu0
    %v2710 = vadd.f32 %v2140, %v2709
    %v2711 = vpop.f32.mrf.mxu0
    %2712 = vmatprep.mubr.f32.mxu0 0.0
    %v2713 = vand.u32 %v116, 4294901760
    %2714 = vmatmul.mubr.f32.gmra.mxu0 %v2713
    %v2715 = vpop.f32.mrf.mxu0
    %v2716 = vadd.f32 %v2148, %v2715
    %v2717 = vpop.f32.mrf.mxu0
    %2718 = vmatprep.mubr.f32.mxu0 0.0
    %v2719 = vand.u32 %v119, 4294901760
    %2720 = vmatmul.mubr.f32.gmra.mxu0 %v2719
    %v2721 = vpop.f32.mrf.mxu0
    %v2722 = vadd.f32 %v2156, %v2721
    %v2723 = vpop.f32.mrf.mxu0
    %2724 = vmatprep.mubr.f32.mxu0 0.0
    %v2725 = vand.u32 %v122, 4294901760
    %2726 = vmatmul.mubr.f32.gmra.mxu0 %v2725
    %v2727 = vpop.f32.mrf.mxu0
    %v2728 = vadd.f32 %v2164, %v2727
    %v2729 = vpop.f32.mrf.mxu0
    %2730 = vmatprep.mubr.f32.mxu0 0.0
    %v2731 = vand.u32 %v125, 4294901760
    %2732 = vmatmul.mubr.f32.gmra.mxu0 %v2731
    %v2733 = vpop.f32.mrf.mxu0
    %v2734 = vadd.f32 %v2172, %v2733
    %v2735 = vpop.f32.mrf.mxu0
    %2736 = vmatprep.mubr.f32.mxu0 0.0
    %v2737 = vand.u32 %v128, 4294901760
    %2738 = vmatmul.mubr.f32.gmra.mxu0 %v2737
    %v2739 = vpop.f32.mrf.mxu0
    %v2740 = vadd.f32 %v2180, %v2739
    %v2741 = vpop.f32.mrf.mxu0
    %2742 = vmatprep.mubr.f32.mxu0 0.0
    %v2743 = vand.u32 %v131, 4294901760
    %2744 = vmatmul.mubr.f32.gmra.mxu0 %v2743
    %v2745 = vpop.f32.mrf.mxu0
    %v2746 = vadd.f32 %v2188, %v2745
    %v2747 = vpop.f32.mrf.mxu0
    %2748 = vmatprep.mubr.f32.mxu0 0.0
    %v2749 = vand.u32 %v134, 4294901760
    %2750 = vmatmul.mubr.f32.gmra.mxu0 %v2749
    %v2751 = vpop.f32.mrf.mxu0
    %v2752 = vadd.f32 %v2196, %v2751
    %v2753 = vpop.f32.mrf.mxu0
    %2754 = vmatprep.mubr.f32.mxu0 0.0
    %v2755 = vand.u32 %v137, 4294901760
    %2756 = vmatmul.mubr.f32.gmra.mxu0 %v2755
    %v2757 = vpop.f32.mrf.mxu0
    %v2758 = vadd.f32 %v2204, %v2757
    %v2759 = vpop.f32.mrf.mxu0
    %2760 = vmatprep.mubr.f32.mxu0 0.0
    %v2761 = vand.u32 %v140, 4294901760
    %2762 = vmatmul.mubr.f32.gmra.mxu0 %v2761
    %v2763 = vpop.f32.mrf.mxu0
    %v2764 = vadd.f32 %v2212, %v2763
    %v2765 = vpop.f32.mrf.mxu0
    %2766 = vmatprep.mubr.f32.mxu0 0.0
    %v2767 = vand.u32 %v143, 4294901760
    %2768 = vmatmul.mubr.f32.gmra.mxu0 %v2767
    %v2769 = vpop.f32.mrf.mxu0
    %v2770 = vadd.f32 %v2220, %v2769
    %v2771 = vpop.f32.mrf.mxu0
    %2772 = vmatprep.mubr.f32.mxu0 0.0
    %v2773 = vand.u32 %v146, 4294901760
    %2774 = vmatmul.mubr.f32.gmra.mxu0 %v2773
    %v2775 = vpop.f32.mrf.mxu0
    %v2776 = vadd.f32 %v2228, %v2775
    %v2777 = vpop.f32.mrf.mxu0
    %2778 = vmatprep.mubr.f32.mxu0 0.0
    %v2779 = vand.u32 %v149, 4294901760
    %2780 = vmatmul.mubr.f32.gmra.mxu0 %v2779
    %v2781 = vpop.f32.mrf.mxu0
    %v2782 = vadd.f32 %v2236, %v2781
    %v2783 = vpop.f32.mrf.mxu0
    %2784 = vmatprep.mubr.f32.mxu0 0.0
    %v2785 = vand.u32 %v152, 4294901760
    %2786 = vmatmul.mubr.f32.gmra.mxu0 %v2785
    %v2787 = vpop.f32.mrf.mxu0
    %v2788 = vadd.f32 %v2244, %v2787
    %v2789 = vpop.f32.mrf.mxu0
    %2790 = vmatprep.mubr.f32.mxu0 0.0
    %v2791 = vand.u32 %v155, 4294901760
    %2792 = vmatmul.mubr.f32.gmra.mxu0 %v2791
    %v2793 = vpop.f32.mrf.mxu0
    %v2794 = vadd.f32 %v2252, %v2793
    %v2795 = vpop.f32.mrf.mxu0
    %2796 = vmatprep.mubr.f32.mxu0 0.0
    %v2797 = vand.u32 %v158, 4294901760
    %2798 = vmatmul.mubr.f32.gmra.mxu0 %v2797
    %v2799 = vpop.f32.mrf.mxu0
    %v2800 = vadd.f32 %v2260, %v2799
    %v2801 = vpop.f32.mrf.mxu0
    %2802 = vmatprep.mubr.f32.mxu0 0.0
    %v2803 = vand.u32 %v161, 4294901760
    %2804 = vmatmul.mubr.f32.gmra.mxu0 %v2803
    %v2805 = vpop.f32.mrf.mxu0
    %v2806 = vadd.f32 %v2268, %v2805
    %v2807 = vpop.f32.mrf.mxu0
    %2808 = vmatprep.mubr.f32.mxu0 0.0
    %v2809 = vand.u32 %v164, 4294901760
    %2810 = vmatmul.mubr.f32.gmra.mxu0 %v2809
    %v2811 = vpop.f32.mrf.mxu0
    %v2812 = vadd.f32 %v2276, %v2811
    %v2813 = vpop.f32.mrf.mxu0
    %2814 = vmatprep.mubr.f32.mxu0 0.0
    %v2815 = vand.u32 %v167, 4294901760
    %2816 = vmatmul.mubr.f32.gmra.mxu0 %v2815
    %v2817 = vpop.f32.mrf.mxu0
    %v2818 = vadd.f32 %v2284, %v2817
    %v2819 = vpop.f32.mrf.mxu0
    %2820 = vmatprep.mubr.f32.mxu0 0.0
    %v2821 = vand.u32 %v170, 4294901760
    %2822 = vmatmul.mubr.f32.gmra.mxu0 %v2821
    %v2823 = vpop.f32.mrf.mxu0
    %v2824 = vadd.f32 %v2292, %v2823
    %v2825 = vpop.f32.mrf.mxu0
    %2826 = vmatprep.mubr.f32.mxu0 0.0
    %v2827 = vand.u32 %v173, 4294901760
    %2828 = vmatmul.mubr.f32.gmra.mxu0 %v2827
    %v2829 = vpop.f32.mrf.mxu0
    %v2830 = vadd.f32 %v2300, %v2829
    %v2831 = vpop.f32.mrf.mxu0
    %2832 = vmatprep.mubr.f32.mxu0 0.0
    %v2833 = vand.u32 %v176, 4294901760
    %2834 = vmatmul.mubr.f32.gmra.mxu0 %v2833
    %v2835 = vpop.f32.mrf.mxu0
    %v2836 = vadd.f32 %v2308, %v2835
    %v2837 = vpop.f32.mrf.mxu0
    %2838 = vmatprep.mubr.f32.mxu0 0.0
    %v2839 = vand.u32 %v179, 4294901760
    %2840 = vmatmul.mubr.f32.gmra.mxu0 %v2839
    %v2841 = vpop.f32.mrf.mxu0
    %v2842 = vadd.f32 %v2316, %v2841
    %v2843 = vpop.f32.mrf.mxu0
    %2844 = vmatprep.mubr.f32.mxu0 0.0
    %v2845 = vand.u32 %v182, 4294901760
    %2846 = vmatmul.mubr.f32.gmra.mxu0 %v2845
    %v2847 = vpop.f32.mrf.mxu0
    %v2848 = vadd.f32 %v2324, %v2847
    %v2849 = vpop.f32.mrf.mxu0
    %2850 = vmatprep.mubr.f32.mxu0 0.0
    %v2851 = vand.u32 %v185, 4294901760
    %2852 = vmatmul.mubr.f32.gmra.mxu0 %v2851
    %v2853 = vpop.f32.mrf.mxu0
    %v2854 = vadd.f32 %v2332, %v2853
    %v2855 = vpop.f32.mrf.mxu0
    %2856 = vmatprep.mubr.f32.mxu0 0.0
    %v2857 = vand.u32 %v188, 4294901760
    %2858 = vmatmul.mubr.f32.gmra.mxu0 %v2857
    %v2859 = vpop.f32.mrf.mxu0
    %v2860 = vadd.f32 %v2340, %v2859
    %v2861 = vpop.f32.mrf.mxu0
    %2862 = vmatprep.mubr.f32.mxu0 0.0
    %v2863 = vand.u32 %v191, 4294901760
    %2864 = vmatmul.mubr.f32.gmra.mxu0 %v2863
    %v2865 = vpop.f32.mrf.mxu0
    %v2866 = vadd.f32 %v2348, %v2865
    %v2867 = vpop.f32.mrf.mxu0
    %2868 = vmatprep.mubr.f32.mxu0 0.0
    %v2869 = vand.u32 %v194, 4294901760
    %2870 = vmatmul.mubr.f32.gmra.mxu0 %v2869
    %v2871 = vpop.f32.mrf.mxu0
    %v2872 = vadd.f32 %v2356, %v2871
    %v2873 = vpop.f32.mrf.mxu0
    %2874 = vmatprep.mubr.f32.mxu0 0.0
    %v2875 = vand.u32 %v197, 4294901760
    %2876 = vmatmul.mubr.f32.gmra.mxu0 %v2875
    %v2877 = vpop.f32.mrf.mxu0
    %v2878 = vadd.f32 %v2364, %v2877
    %v2879 = vpop.f32.mrf.mxu0
    %2880 = vmatprep.mubr.f32.mxu0 0.0
    %v2881 = vand.u32 %v200, 4294901760
    %2882 = vmatmul.mubr.f32.gmra.mxu0 %v2881
    %v2883 = vpop.f32.mrf.mxu0
    %v2884 = vadd.f32 %v2372, %v2883
    %v2885 = vpop.f32.mrf.mxu0
    %2886 = vmatprep.mubr.f32.mxu0 0.0
    %v2887 = vand.u32 %v203, 4294901760
    %2888 = vmatmul.mubr.f32.gmra.mxu0 %v2887
    %v2889 = vpop.f32.mrf.mxu0
    %v2890 = vadd.f32 %v2380, %v2889
    %v2891 = vpop.f32.mrf.mxu0
    %2892 = vmatprep.mubr.f32.mxu0 0.0
    %v2893 = vand.u32 %v206, 4294901760
    %2894 = vmatmul.mubr.f32.gmra.mxu0 %v2893
    %v2895 = vpop.f32.mrf.mxu0
    %v2896 = vadd.f32 %v2388, %v2895
    %v2897 = vpop.f32.mrf.mxu0
    %2898 = vmatprep.mubr.f32.mxu0 0.0
    %v2899 = vand.u32 %v209, 4294901760
    %2900 = vmatmul.mubr.f32.gmra.mxu0 %v2899
    %v2901 = vpop.f32.mrf.mxu0
    %v2902 = vadd.f32 %v2396, %v2901
    %v2903 = vpop.f32.mrf.mxu0
    %2904 = vmatprep.mubr.f32.mxu0 0.0
    %v2905 = vand.u32 %v212, 4294901760
    %2906 = vmatmul.mubr.f32.gmra.mxu0 %v2905
    %v2907 = vpop.f32.mrf.mxu0
    %v2908 = vadd.f32 %v2404, %v2907
    %v2909 = vpop.f32.mrf.mxu0
    %2910 = vmatprep.mubr.f32.mxu0 0.0
    %v2911 = vand.u32 %v215, 4294901760
    %2912 = vmatmul.mubr.f32.gmra.mxu0 %v2911
    %v2913 = vpop.f32.mrf.mxu0
    %v2914 = vadd.f32 %v2412, %v2913
    %v2915 = vpop.f32.mrf.mxu0
    %2916 = vmatprep.mubr.f32.mxu0 0.0
    %v2917 = vand.u32 %v218, 4294901760
    %2918 = vmatmul.mubr.f32.gmra.mxu0 %v2917
    %v2919 = vpop.f32.mrf.mxu0
    %v2920 = vadd.f32 %v2420, %v2919
    %v2921 = vpop.f32.mrf.mxu0
    %2922 = vmatprep.mubr.f32.mxu0 0.0
    %v2923 = vand.u32 %v221, 4294901760
    %2924 = vmatmul.mubr.f32.gmra.mxu0 %v2923
    %v2925 = vpop.f32.mrf.mxu0
    %v2926 = vadd.f32 %v2428, %v2925
    %v2927 = vpop.f32.mrf.mxu0
    %2928 = vmatprep.mubr.f32.mxu0 0.0
    %v2929 = vand.u32 %v224, 4294901760
    %2930 = vmatmul.mubr.f32.gmra.mxu0 %v2929
    %v2931 = vpop.f32.mrf.mxu0
    %v2932 = vadd.f32 %v2436, %v2931
    %v2933 = vpop.f32.mrf.mxu0
    %2934 = vmatprep.mubr.f32.mxu0 0.0
    %v2935 = vand.u32 %v227, 4294901760
    %2936 = vmatmul.mubr.f32.gmra.mxu0 %v2935
    %v2937 = vpop.f32.mrf.mxu0
    %v2938 = vadd.f32 %v2444, %v2937
    %v2939 = vpop.f32.mrf.mxu0
    %2940 = vmatprep.mubr.f32.mxu0 0.0
    %v2941 = vand.u32 %v230, 4294901760
    %2942 = vmatmul.mubr.f32.gmra.mxu0 %v2941
    %v2943 = vpop.f32.mrf.mxu0
    %v2944 = vadd.f32 %v2452, %v2943
    %v2945 = vpop.f32.mrf.mxu0
    %2946 = vmatprep.mubr.f32.mxu0 0.0
    %v2947 = vand.u32 %v233, 4294901760
    %2948 = vmatmul.mubr.f32.gmra.mxu0 %v2947
    %v2949 = vpop.f32.mrf.mxu0
    %v2950 = vadd.f32 %v2460, %v2949
    %v2951 = vpop.f32.mrf.mxu0
    %2952 = vmatprep.mubr.f32.mxu0 0.0
    %v2953 = vand.u32 %v236, 4294901760
    %2954 = vmatmul.mubr.f32.gmra.mxu0 %v2953
    %v2955 = vpop.f32.mrf.mxu0
    %v2956 = vadd.f32 %v2468, %v2955
    %v2957 = vpop.f32.mrf.mxu0
    %2958 = vmatprep.mubr.f32.mxu0 0.0
    %v2959 = vand.u32 %v239, 4294901760
    %2960 = vmatmul.mubr.f32.gmra.mxu0 %v2959
    %v2961 = vpop.f32.mrf.mxu0
    %v2962 = vadd.f32 %v2476, %v2961
    %v2963 = vpop.f32.mrf.mxu0
    %2964 = vmatprep.mubr.f32.mxu0 0.0
    %v2965 = vand.u32 %v242, 4294901760
    %2966 = vmatmul.mubr.f32.gmra.mxu0 %v2965
    %v2967 = vpop.f32.mrf.mxu0
    %v2968 = vadd.f32 %v2484, %v2967
    %v2969 = vpop.f32.mrf.mxu0
    %2970 = vmatprep.mubr.f32.mxu0 0.0
    %v2971 = vand.u32 %v245, 4294901760
    %2972 = vmatmul.mubr.f32.gmra.mxu0 %v2971
    %v2973 = vpop.f32.mrf.mxu0
    %v2974 = vadd.f32 %v2492, %v2973
    %v2975 = vpop.f32.mrf.mxu0
    %2976 = vmatprep.mubr.f32.mxu0 0.0
    %v2977 = vand.u32 %v248, 4294901760
    %2978 = vmatmul.mubr.f32.gmra.mxu0 %v2977
    %v2979 = vpop.f32.mrf.mxu0
    %v2980 = vadd.f32 %v2500, %v2979
    %v2981 = vpop.f32.mrf.mxu0
    %2982 = vmatprep.mubr.f32.mxu0 0.0
    %v2983 = vand.u32 %v251, 4294901760
    %2984 = vmatmul.mubr.f32.gmra.mxu0 %v2983
    %v2985 = vpop.f32.mrf.mxu0
    %v2986 = vadd.f32 %v2508, %v2985
    %v2987 = vpop.f32.mrf.mxu0
    %2988 = vmatprep.mubr.f32.mxu0 0.0
    %v2989 = vand.u32 %v254, 4294901760
    %2990 = vmatmul.mubr.f32.gmra.mxu0 %v2989
    %v2991 = vpop.f32.mrf.mxu0
    %v2992 = vadd.f32 %v2516, %v2991
    %v2993 = vpop.f32.mrf.mxu0
    %2994 = vmatprep.mubr.f32.mxu0 0.0
    %v2995 = vand.u32 %v257, 4294901760
    %2996 = vmatmul.mubr.f32.gmra.mxu0 %v2995
    %v2997 = vpop.f32.mrf.mxu0
    %v2998 = vadd.f32 %v2524, %v2997
    %v2999 = vpop.f32.mrf.mxu0
    %3000 = vmatprep.mubr.f32.mxu0 0.0
    %v3001 = vand.u32 %v260, 4294901760
    %3002 = vmatmul.mubr.f32.gmra.mxu0 %v3001
    %v3003 = vpop.f32.mrf.mxu0
    %v3004 = vadd.f32 %v2532, %v3003
    %v3005 = vpop.f32.mrf.mxu0
    %3006 = vmatprep.mubr.f32.mxu0 0.0
    %v3007 = vand.u32 %v263, 4294901760
    %3008 = vmatmul.mubr.f32.gmra.mxu0 %v3007
    %v3009 = vpop.f32.mrf.mxu0
    %v3010 = vadd.f32 %v2540, %v3009
    %v3011 = vpop.f32.mrf.mxu0
    %3012 = vmatprep.mubr.f32.mxu0 0.0
    %v3013 = vand.u32 %v266, 4294901760
    %3014 = vmatmul.mubr.f32.gmra.mxu0 %v3013
    %v3015 = vpop.f32.mrf.mxu0
    %v3016 = vadd.f32 %v2548, %v3015
    %v3017 = vpop.f32.mrf.mxu0
    %3018 = vmatprep.mubr.f32.mxu0 0.0
    %v3019 = vand.u32 %v269, 4294901760
    %3020 = vmatmul.mubr.f32.gmra.mxu0 %v3019
    %v3021 = vpop.f32.mrf.mxu0
    %v3022 = vadd.f32 %v2556, %v3021
    %v3023 = vpop.f32.mrf.mxu0
    %3024 = vmatprep.mubr.f32.mxu0 0.0
    %v3025 = vand.u32 %v272, 4294901760
    %3026 = vmatmul.mubr.f32.gmra.mxu0 %v3025
    %v3027 = vpop.f32.mrf.mxu0
    %v3028 = vadd.f32 %v2564, %v3027
    %v3029 = vpop.f32.mrf.mxu0
    %3030 = vdwg.mxu0
    %3031 = vmatprep.subr.mxu0 0.0
    %3032 = vmatpush1.msra.mxu0 0.0
    %3033 = vmatprep.subr.mxu0 0.0
    %3034 = vmatpush1.msra.mxu0 0.0
    %3035 = vmatprep.subr.mxu0 0.0
    %3036 = vmatpush1.msra.mxu0 0.0
    %3037 = vmatprep.subr.mxu0 0.0
    %3038 = vmatpush1.msra.mxu0 0.0
    %3039 = vmatprep.subr.mxu0 0.0
    %3040 = vmatpush1.msra.mxu0 0.0
    %3041 = vmatprep.subr.mxu0 0.0
    %3042 = vmatpush1.msra.mxu0 0.0
    %3043 = vmatprep.subr.mxu0 0.0
    %3044 = vmatpush1.msra.mxu0 0.0
    %3045 = vmatprep.subr.mxu0 0.0
    %3046 = vmatpush1.msra.mxu0 0.0
    %3047 = vmatprep.subr.mxu0 0.0
    %3048 = vmatpush1.msra.mxu0 0.0
    %3049 = vmatprep.subr.mxu0 0.0
    %3050 = vmatpush1.msra.mxu0 0.0
    %3051 = vmatprep.subr.mxu0 0.0
    %3052 = vmatpush1.msra.mxu0 0.0
    %3053 = vmatprep.subr.mxu0 0.0
    %v3054 = vand.u32 %v276, 4294901760
    %3055 = vmatpush1.msra.mxu0 %v3054
    %3056 = vmatprep.subr.mxu0 0.0
    %v3057 = vand.u32 %v79, 4294901760
    %3058 = vmatpush1.msra.mxu0 %v3057
    %3059 = vmatprep.subr.mxu0 0.0
    %v3060 = vand.u32 %v78, 4294901760
    %3061 = vmatpush1.msra.mxu0 %v3060
    %3062 = vmatprep.subr.mxu0 0.0
    %v3063 = vand.u32 %v77, 4294901760
    %3064 = vmatpush1.msra.mxu0 %v3063
    %3065 = vmatprep.subr.mxu0 0.0
    %v3066 = vand.u32 %v76, 4294901760
    %3067 = vmatpush1.msra.mxu0 %v3066
    %3068 = vmatprep.subr.mxu0 0.0
    %3069 = vmatpush2.msra.mxu0 0.0
    %3070 = vmatprep.subr.mxu0 0.0
    %3071 = vmatpush2.msra.mxu0 0.0
    %3072 = vmatprep.subr.mxu0 0.0
    %3073 = vmatpush2.msra.mxu0 0.0
    %3074 = vmatprep.subr.mxu0 0.0
    %3075 = vmatpush2.msra.mxu0 0.0
    %3076 = vmatprep.subr.mxu0 0.0
    %3077 = vmatpush2.msra.mxu0 0.0
    %3078 = vmatprep.subr.mxu0 0.0
    %3079 = vmatpush2.msra.mxu0 0.0
    %3080 = vmatprep.subr.mxu0 0.0
    %3081 = vmatpush2.msra.mxu0 0.0
    %3082 = vmatprep.subr.mxu0 0.0
    %3083 = vmatpush2.msra.mxu0 0.0
    %3084 = vmatprep.subr.mxu0 0.0
    %3085 = vmatpush2.msra.mxu0 0.0
    %3086 = vmatprep.subr.mxu0 0.0
    %3087 = vmatpush2.msra.mxu0 0.0
    %3088 = vmatprep.subr.mxu0 0.0
    %3089 = vmatpush2.msra.mxu0 0.0
    %3090 = vmatprep.subr.mxu0 0.0
    %3091 = vmatpush2.msra.mxu0 0.0
    %3092 = vmatprep.subr.mxu0 0.0
    %3093 = vmatpush2.msra.mxu0 0.0
    %3094 = vmatprep.subr.mxu0 0.0
    %3095 = vmatpush2.msra.mxu0 0.0
    %3096 = vmatprep.subr.mxu0 0.0
    %3097 = vmatpush2.msra.mxu0 0.0
    %3098 = vmatprep.subr.mxu0 0.0
    %3099 = vmatpush2.msra.mxu0 0.0
    %3100 = vmatprep.mubr.f32.mxu0 0.0
    %v3101 = vand.u32 %v83, 4294901760
    %3102 = vmatmul.mubr.f32.gmra.mxu0 %v3101
    %v3103 = vpop.f32.mrf.mxu0
    %v3104 = vadd.f32 %v2650, %v3103
    %v3105 = vpop.f32.mrf.mxu0
    %3106 = vmatprep.mubr.f32.mxu0 0.0
    %v3107 = vand.u32 %v86, 4294901760
    %3108 = vmatmul.mubr.f32.gmra.mxu0 %v3107
    %v3109 = vpop.f32.mrf.mxu0
    %v3110 = vadd.f32 %v2656, %v3109
    %v3111 = vpop.f32.mrf.mxu0
    %3112 = vmatprep.mubr.f32.mxu0 0.0
    %v3113 = vand.u32 %v89, 4294901760
    %3114 = vmatmul.mubr.f32.gmra.mxu0 %v3113
    %v3115 = vpop.f32.mrf.mxu0
    %v3116 = vadd.f32 %v2662, %v3115
    %v3117 = vpop.f32.mrf.mxu0
    %3118 = vmatprep.mubr.f32.mxu0 0.0
    %v3119 = vand.u32 %v92, 4294901760
    %3120 = vmatmul.mubr.f32.gmra.mxu0 %v3119
    %v3121 = vpop.f32.mrf.mxu0
    %v3122 = vadd.f32 %v2668, %v3121
    %v3123 = vpop.f32.mrf.mxu0
    %3124 = vmatprep.mubr.f32.mxu0 0.0
    %v3125 = vand.u32 %v95, 4294901760
    %3126 = vmatmul.mubr.f32.gmra.mxu0 %v3125
    %v3127 = vpop.f32.mrf.mxu0
    %v3128 = vadd.f32 %v2674, %v3127
    %v3129 = vpop.f32.mrf.mxu0
    %3130 = vmatprep.mubr.f32.mxu0 0.0
    %v3131 = vand.u32 %v98, 4294901760
    %3132 = vmatmul.mubr.f32.gmra.mxu0 %v3131
    %v3133 = vpop.f32.mrf.mxu0
    %v3134 = vadd.f32 %v2680, %v3133
    %v3135 = vpop.f32.mrf.mxu0
    %3136 = vmatprep.mubr.f32.mxu0 0.0
    %v3137 = vand.u32 %v101, 4294901760
    %3138 = vmatmul.mubr.f32.gmra.mxu0 %v3137
    %v3139 = vpop.f32.mrf.mxu0
    %v3140 = vadd.f32 %v2686, %v3139
    %v3141 = vpop.f32.mrf.mxu0
    %3142 = vmatprep.mubr.f32.mxu0 0.0
    %v3143 = vand.u32 %v104, 4294901760
    %3144 = vmatmul.mubr.f32.gmra.mxu0 %v3143
    %v3145 = vpop.f32.mrf.mxu0
    %v3146 = vadd.f32 %v2692, %v3145
    %v3147 = vpop.f32.mrf.mxu0
    %3148 = vmatprep.mubr.f32.mxu0 0.0
    %v3149 = vand.u32 %v107, 4294901760
    %3150 = vmatmul.mubr.f32.gmra.mxu0 %v3149
    %v3151 = vpop.f32.mrf.mxu0
    %v3152 = vadd.f32 %v2698, %v3151
    %v3153 = vpop.f32.mrf.mxu0
    %3154 = vmatprep.mubr.f32.mxu0 0.0
    %v3155 = vand.u32 %v110, 4294901760
    %3156 = vmatmul.mubr.f32.gmra.mxu0 %v3155
    %v3157 = vpop.f32.mrf.mxu0
    %v3158 = vadd.f32 %v2704, %v3157
    %v3159 = vpop.f32.mrf.mxu0
    %3160 = vmatprep.mubr.f32.mxu0 0.0
    %v3161 = vand.u32 %v113, 4294901760
    %3162 = vmatmul.mubr.f32.gmra.mxu0 %v3161
    %v3163 = vpop.f32.mrf.mxu0
    %v3164 = vadd.f32 %v2710, %v3163
    %v3165 = vpop.f32.mrf.mxu0
    %3166 = vmatprep.mubr.f32.mxu0 0.0
    %v3167 = vand.u32 %v116, 4294901760
    %3168 = vmatmul.mubr.f32.gmra.mxu0 %v3167
    %v3169 = vpop.f32.mrf.mxu0
    %v3170 = vadd.f32 %v2716, %v3169
    %v3171 = vpop.f32.mrf.mxu0
    %3172 = vmatprep.mubr.f32.mxu0 0.0
    %v3173 = vand.u32 %v119, 4294901760
    %3174 = vmatmul.mubr.f32.gmra.mxu0 %v3173
    %v3175 = vpop.f32.mrf.mxu0
    %v3176 = vadd.f32 %v2722, %v3175
    %v3177 = vpop.f32.mrf.mxu0
    %3178 = vmatprep.mubr.f32.mxu0 0.0
    %v3179 = vand.u32 %v122, 4294901760
    %3180 = vmatmul.mubr.f32.gmra.mxu0 %v3179
    %v3181 = vpop.f32.mrf.mxu0
    %v3182 = vadd.f32 %v2728, %v3181
    %v3183 = vpop.f32.mrf.mxu0
    %3184 = vmatprep.mubr.f32.mxu0 0.0
    %v3185 = vand.u32 %v125, 4294901760
    %3186 = vmatmul.mubr.f32.gmra.mxu0 %v3185
    %v3187 = vpop.f32.mrf.mxu0
    %v3188 = vadd.f32 %v2734, %v3187
    %v3189 = vpop.f32.mrf.mxu0
    %3190 = vmatprep.mubr.f32.mxu0 0.0
    %v3191 = vand.u32 %v128, 4294901760
    %3192 = vmatmul.mubr.f32.gmra.mxu0 %v3191
    %v3193 = vpop.f32.mrf.mxu0
    %v3194 = vadd.f32 %v2740, %v3193
    %v3195 = vpop.f32.mrf.mxu0
    %3196 = vmatprep.mubr.f32.mxu0 0.0
    %v3197 = vand.u32 %v131, 4294901760
    %3198 = vmatmul.mubr.f32.gmra.mxu0 %v3197
    %v3199 = vpop.f32.mrf.mxu0
    %v3200 = vadd.f32 %v2746, %v3199
    %v3201 = vpop.f32.mrf.mxu0
    %3202 = vmatprep.mubr.f32.mxu0 0.0
    %v3203 = vand.u32 %v134, 4294901760
    %3204 = vmatmul.mubr.f32.gmra.mxu0 %v3203
    %v3205 = vpop.f32.mrf.mxu0
    %v3206 = vadd.f32 %v2752, %v3205
    %v3207 = vpop.f32.mrf.mxu0
    %3208 = vmatprep.mubr.f32.mxu0 0.0
    %v3209 = vand.u32 %v137, 4294901760
    %3210 = vmatmul.mubr.f32.gmra.mxu0 %v3209
    %v3211 = vpop.f32.mrf.mxu0
    %v3212 = vadd.f32 %v2758, %v3211
    %v3213 = vpop.f32.mrf.mxu0
    %3214 = vmatprep.mubr.f32.mxu0 0.0
    %v3215 = vand.u32 %v140, 4294901760
    %3216 = vmatmul.mubr.f32.gmra.mxu0 %v3215
    %v3217 = vpop.f32.mrf.mxu0
    %v3218 = vadd.f32 %v2764, %v3217
    %v3219 = vpop.f32.mrf.mxu0
    %3220 = vmatprep.mubr.f32.mxu0 0.0
    %v3221 = vand.u32 %v143, 4294901760
    %3222 = vmatmul.mubr.f32.gmra.mxu0 %v3221
    %v3223 = vpop.f32.mrf.mxu0
    %v3224 = vadd.f32 %v2770, %v3223
    %v3225 = vpop.f32.mrf.mxu0
    %3226 = vmatprep.mubr.f32.mxu0 0.0
    %v3227 = vand.u32 %v146, 4294901760
    %3228 = vmatmul.mubr.f32.gmra.mxu0 %v3227
    %v3229 = vpop.f32.mrf.mxu0
    %v3230 = vadd.f32 %v2776, %v3229
    %v3231 = vpop.f32.mrf.mxu0
    %3232 = vmatprep.mubr.f32.mxu0 0.0
    %v3233 = vand.u32 %v149, 4294901760
    %3234 = vmatmul.mubr.f32.gmra.mxu0 %v3233
    %v3235 = vpop.f32.mrf.mxu0
    %v3236 = vadd.f32 %v2782, %v3235
    %v3237 = vpop.f32.mrf.mxu0
    %3238 = vmatprep.mubr.f32.mxu0 0.0
    %v3239 = vand.u32 %v152, 4294901760
    %3240 = vmatmul.mubr.f32.gmra.mxu0 %v3239
    %v3241 = vpop.f32.mrf.mxu0
    %v3242 = vadd.f32 %v2788, %v3241
    %v3243 = vpop.f32.mrf.mxu0
    %3244 = vmatprep.mubr.f32.mxu0 0.0
    %v3245 = vand.u32 %v155, 4294901760
    %3246 = vmatmul.mubr.f32.gmra.mxu0 %v3245
    %v3247 = vpop.f32.mrf.mxu0
    %v3248 = vadd.f32 %v2794, %v3247
    %v3249 = vpop.f32.mrf.mxu0
    %3250 = vmatprep.mubr.f32.mxu0 0.0
    %v3251 = vand.u32 %v158, 4294901760
    %3252 = vmatmul.mubr.f32.gmra.mxu0 %v3251
    %v3253 = vpop.f32.mrf.mxu0
    %v3254 = vadd.f32 %v2800, %v3253
    %v3255 = vpop.f32.mrf.mxu0
    %3256 = vmatprep.mubr.f32.mxu0 0.0
    %v3257 = vand.u32 %v161, 4294901760
    %3258 = vmatmul.mubr.f32.gmra.mxu0 %v3257
    %v3259 = vpop.f32.mrf.mxu0
    %v3260 = vadd.f32 %v2806, %v3259
    %v3261 = vpop.f32.mrf.mxu0
    %3262 = vmatprep.mubr.f32.mxu0 0.0
    %v3263 = vand.u32 %v164, 4294901760
    %3264 = vmatmul.mubr.f32.gmra.mxu0 %v3263
    %v3265 = vpop.f32.mrf.mxu0
    %v3266 = vadd.f32 %v2812, %v3265
    %v3267 = vpop.f32.mrf.mxu0
    %3268 = vmatprep.mubr.f32.mxu0 0.0
    %v3269 = vand.u32 %v167, 4294901760
    %3270 = vmatmul.mubr.f32.gmra.mxu0 %v3269
    %v3271 = vpop.f32.mrf.mxu0
    %v3272 = vadd.f32 %v2818, %v3271
    %v3273 = vpop.f32.mrf.mxu0
    %3274 = vmatprep.mubr.f32.mxu0 0.0
    %v3275 = vand.u32 %v170, 4294901760
    %3276 = vmatmul.mubr.f32.gmra.mxu0 %v3275
    %v3277 = vpop.f32.mrf.mxu0
    %v3278 = vadd.f32 %v2824, %v3277
    %v3279 = vpop.f32.mrf.mxu0
    %3280 = vmatprep.mubr.f32.mxu0 0.0
    %v3281 = vand.u32 %v173, 4294901760
    %3282 = vmatmul.mubr.f32.gmra.mxu0 %v3281
    %v3283 = vpop.f32.mrf.mxu0
    %v3284 = vadd.f32 %v2830, %v3283
    %v3285 = vpop.f32.mrf.mxu0
    %3286 = vmatprep.mubr.f32.mxu0 0.0
    %v3287 = vand.u32 %v176, 4294901760
    %3288 = vmatmul.mubr.f32.gmra.mxu0 %v3287
    %v3289 = vpop.f32.mrf.mxu0
    %v3290 = vadd.f32 %v2836, %v3289
    %v3291 = vpop.f32.mrf.mxu0
    %3292 = vmatprep.mubr.f32.mxu0 0.0
    %v3293 = vand.u32 %v179, 4294901760
    %3294 = vmatmul.mubr.f32.gmra.mxu0 %v3293
    %v3295 = vpop.f32.mrf.mxu0
    %v3296 = vadd.f32 %v2842, %v3295
    %v3297 = vpop.f32.mrf.mxu0
    %3298 = vmatprep.mubr.f32.mxu0 0.0
    %v3299 = vand.u32 %v182, 4294901760
    %3300 = vmatmul.mubr.f32.gmra.mxu0 %v3299
    %v3301 = vpop.f32.mrf.mxu0
    %v3302 = vadd.f32 %v2848, %v3301
    %v3303 = vpop.f32.mrf.mxu0
    %3304 = vmatprep.mubr.f32.mxu0 0.0
    %v3305 = vand.u32 %v185, 4294901760
    %3306 = vmatmul.mubr.f32.gmra.mxu0 %v3305
    %v3307 = vpop.f32.mrf.mxu0
    %v3308 = vadd.f32 %v2854, %v3307
    %v3309 = vpop.f32.mrf.mxu0
    %3310 = vmatprep.mubr.f32.mxu0 0.0
    %v3311 = vand.u32 %v188, 4294901760
    %3312 = vmatmul.mubr.f32.gmra.mxu0 %v3311
    %v3313 = vpop.f32.mrf.mxu0
    %v3314 = vadd.f32 %v2860, %v3313
    %v3315 = vpop.f32.mrf.mxu0
    %3316 = vmatprep.mubr.f32.mxu0 0.0
    %v3317 = vand.u32 %v191, 4294901760
    %3318 = vmatmul.mubr.f32.gmra.mxu0 %v3317
    %v3319 = vpop.f32.mrf.mxu0
    %v3320 = vadd.f32 %v2866, %v3319
    %v3321 = vpop.f32.mrf.mxu0
    %3322 = vmatprep.mubr.f32.mxu0 0.0
    %v3323 = vand.u32 %v194, 4294901760
    %3324 = vmatmul.mubr.f32.gmra.mxu0 %v3323
    %v3325 = vpop.f32.mrf.mxu0
    %v3326 = vadd.f32 %v2872, %v3325
    %v3327 = vpop.f32.mrf.mxu0
    %3328 = vmatprep.mubr.f32.mxu0 0.0
    %v3329 = vand.u32 %v197, 4294901760
    %3330 = vmatmul.mubr.f32.gmra.mxu0 %v3329
    %v3331 = vpop.f32.mrf.mxu0
    %v3332 = vadd.f32 %v2878, %v3331
    %v3333 = vpop.f32.mrf.mxu0
    %3334 = vmatprep.mubr.f32.mxu0 0.0
    %v3335 = vand.u32 %v200, 4294901760
    %3336 = vmatmul.mubr.f32.gmra.mxu0 %v3335
    %v3337 = vpop.f32.mrf.mxu0
    %v3338 = vadd.f32 %v2884, %v3337
    %v3339 = vpop.f32.mrf.mxu0
    %3340 = vmatprep.mubr.f32.mxu0 0.0
    %v3341 = vand.u32 %v203, 4294901760
    %3342 = vmatmul.mubr.f32.gmra.mxu0 %v3341
    %v3343 = vpop.f32.mrf.mxu0
    %v3344 = vadd.f32 %v2890, %v3343
    %v3345 = vpop.f32.mrf.mxu0
    %3346 = vmatprep.mubr.f32.mxu0 0.0
    %v3347 = vand.u32 %v206, 4294901760
    %3348 = vmatmul.mubr.f32.gmra.mxu0 %v3347
    %v3349 = vpop.f32.mrf.mxu0
    %v3350 = vadd.f32 %v2896, %v3349
    %v3351 = vpop.f32.mrf.mxu0
    %3352 = vmatprep.mubr.f32.mxu0 0.0
    %v3353 = vand.u32 %v209, 4294901760
    %3354 = vmatmul.mubr.f32.gmra.mxu0 %v3353
    %v3355 = vpop.f32.mrf.mxu0
    %v3356 = vadd.f32 %v2902, %v3355
    %v3357 = vpop.f32.mrf.mxu0
    %3358 = vmatprep.mubr.f32.mxu0 0.0
    %v3359 = vand.u32 %v212, 4294901760
    %3360 = vmatmul.mubr.f32.gmra.mxu0 %v3359
    %v3361 = vpop.f32.mrf.mxu0
    %v3362 = vadd.f32 %v2908, %v3361
    %v3363 = vpop.f32.mrf.mxu0
    %3364 = vmatprep.mubr.f32.mxu0 0.0
    %v3365 = vand.u32 %v215, 4294901760
    %3366 = vmatmul.mubr.f32.gmra.mxu0 %v3365
    %v3367 = vpop.f32.mrf.mxu0
    %v3368 = vadd.f32 %v2914, %v3367
    %v3369 = vpop.f32.mrf.mxu0
    %3370 = vmatprep.mubr.f32.mxu0 0.0
    %v3371 = vand.u32 %v218, 4294901760
    %3372 = vmatmul.mubr.f32.gmra.mxu0 %v3371
    %v3373 = vpop.f32.mrf.mxu0
    %v3374 = vadd.f32 %v2920, %v3373
    %v3375 = vpop.f32.mrf.mxu0
    %3376 = vmatprep.mubr.f32.mxu0 0.0
    %v3377 = vand.u32 %v221, 4294901760
    %3378 = vmatmul.mubr.f32.gmra.mxu0 %v3377
    %v3379 = vpop.f32.mrf.mxu0
    %v3380 = vadd.f32 %v2926, %v3379
    %v3381 = vpop.f32.mrf.mxu0
    %3382 = vmatprep.mubr.f32.mxu0 0.0
    %v3383 = vand.u32 %v224, 4294901760
    %3384 = vmatmul.mubr.f32.gmra.mxu0 %v3383
    %v3385 = vpop.f32.mrf.mxu0
    %v3386 = vadd.f32 %v2932, %v3385
    %v3387 = vpop.f32.mrf.mxu0
    %3388 = vmatprep.mubr.f32.mxu0 0.0
    %v3389 = vand.u32 %v227, 4294901760
    %3390 = vmatmul.mubr.f32.gmra.mxu0 %v3389
    %v3391 = vpop.f32.mrf.mxu0
    %v3392 = vadd.f32 %v2938, %v3391
    %v3393 = vpop.f32.mrf.mxu0
    %3394 = vmatprep.mubr.f32.mxu0 0.0
    %v3395 = vand.u32 %v230, 4294901760
    %3396 = vmatmul.mubr.f32.gmra.mxu0 %v3395
    %v3397 = vpop.f32.mrf.mxu0
    %v3398 = vadd.f32 %v2944, %v3397
    %v3399 = vpop.f32.mrf.mxu0
    %3400 = vmatprep.mubr.f32.mxu0 0.0
    %v3401 = vand.u32 %v233, 4294901760
    %3402 = vmatmul.mubr.f32.gmra.mxu0 %v3401
    %v3403 = vpop.f32.mrf.mxu0
    %v3404 = vadd.f32 %v2950, %v3403
    %v3405 = vpop.f32.mrf.mxu0
    %3406 = vmatprep.mubr.f32.mxu0 0.0
    %v3407 = vand.u32 %v236, 4294901760
    %3408 = vmatmul.mubr.f32.gmra.mxu0 %v3407
    %v3409 = vpop.f32.mrf.mxu0
    %v3410 = vadd.f32 %v2956, %v3409
    %v3411 = vpop.f32.mrf.mxu0
    %3412 = vmatprep.mubr.f32.mxu0 0.0
    %v3413 = vand.u32 %v239, 4294901760
    %3414 = vmatmul.mubr.f32.gmra.mxu0 %v3413
    %v3415 = vpop.f32.mrf.mxu0
    %v3416 = vadd.f32 %v2962, %v3415
    %v3417 = vpop.f32.mrf.mxu0
    %3418 = vmatprep.mubr.f32.mxu0 0.0
    %v3419 = vand.u32 %v242, 4294901760
    %3420 = vmatmul.mubr.f32.gmra.mxu0 %v3419
    %v3421 = vpop.f32.mrf.mxu0
    %v3422 = vadd.f32 %v2968, %v3421
    %v3423 = vpop.f32.mrf.mxu0
    %3424 = vmatprep.mubr.f32.mxu0 0.0
    %v3425 = vand.u32 %v245, 4294901760
    %3426 = vmatmul.mubr.f32.gmra.mxu0 %v3425
    %v3427 = vpop.f32.mrf.mxu0
    %v3428 = vadd.f32 %v2974, %v3427
    %v3429 = vpop.f32.mrf.mxu0
    %3430 = vmatprep.mubr.f32.mxu0 0.0
    %v3431 = vand.u32 %v248, 4294901760
    %3432 = vmatmul.mubr.f32.gmra.mxu0 %v3431
    %v3433 = vpop.f32.mrf.mxu0
    %v3434 = vadd.f32 %v2980, %v3433
    %v3435 = vpop.f32.mrf.mxu0
    %3436 = vmatprep.mubr.f32.mxu0 0.0
    %v3437 = vand.u32 %v251, 4294901760
    %3438 = vmatmul.mubr.f32.gmra.mxu0 %v3437
    %v3439 = vpop.f32.mrf.mxu0
    %v3440 = vadd.f32 %v2986, %v3439
    %v3441 = vpop.f32.mrf.mxu0
    %3442 = vmatprep.mubr.f32.mxu0 0.0
    %v3443 = vand.u32 %v254, 4294901760
    %3444 = vmatmul.mubr.f32.gmra.mxu0 %v3443
    %v3445 = vpop.f32.mrf.mxu0
    %v3446 = vadd.f32 %v2992, %v3445
    %v3447 = vpop.f32.mrf.mxu0
    %3448 = vmatprep.mubr.f32.mxu0 0.0
    %v3449 = vand.u32 %v257, 4294901760
    %3450 = vmatmul.mubr.f32.gmra.mxu0 %v3449
    %v3451 = vpop.f32.mrf.mxu0
    %v3452 = vadd.f32 %v2998, %v3451
    %v3453 = vpop.f32.mrf.mxu0
    %3454 = vmatprep.mubr.f32.mxu0 0.0
    %v3455 = vand.u32 %v260, 4294901760
    %3456 = vmatmul.mubr.f32.gmra.mxu0 %v3455
    %v3457 = vpop.f32.mrf.mxu0
    %v3458 = vadd.f32 %v3004, %v3457
    %v3459 = vpop.f32.mrf.mxu0
    %3460 = vmatprep.mubr.f32.mxu0 0.0
    %v3461 = vand.u32 %v263, 4294901760
    %3462 = vmatmul.mubr.f32.gmra.mxu0 %v3461
    %v3463 = vpop.f32.mrf.mxu0
    %v3464 = vadd.f32 %v3010, %v3463
    %v3465 = vpop.f32.mrf.mxu0
    %3466 = vmatprep.mubr.f32.mxu0 0.0
    %v3467 = vand.u32 %v266, 4294901760
    %3468 = vmatmul.mubr.f32.gmra.mxu0 %v3467
    %v3469 = vpop.f32.mrf.mxu0
    %v3470 = vadd.f32 %v3016, %v3469
    %v3471 = vpop.f32.mrf.mxu0
    %3472 = vmatprep.mubr.f32.mxu0 0.0
    %v3473 = vand.u32 %v269, 4294901760
    %3474 = vmatmul.mubr.f32.gmra.mxu0 %v3473
    %v3475 = vpop.f32.mrf.mxu0
    %v3476 = vadd.f32 %v3022, %v3475
    %v3477 = vpop.f32.mrf.mxu0
    %3478 = vmatprep.mubr.f32.mxu0 0.0
    %v3479 = vand.u32 %v272, 4294901760
    %3480 = vmatmul.mubr.f32.gmra.mxu0 %v3479
    %v3481 = vpop.f32.mrf.mxu0
    %v3482 = vadd.f32 %v3028, %v3481
    %v3483 = vpop.f32.mrf.mxu0
    %3484 = vdwg.mxu0
    %vm3485 = vcmask 130048
    %3486 = vst.msk [vmem:[#allocation2] sm:$0xff] %vm3485, %v3104
    %3487 = vst.msk [vmem:[#allocation2 + $0x8] sm:$0xff] %vm3485, %v3110
    %3488 = vst.msk [vmem:[#allocation2 + $0x10] sm:$0xff] %vm3485, %v3116
    %3489 = vst.msk [vmem:[#allocation2 + $0x18] sm:$0xff] %vm3485, %v3122
    %3490 = vst.msk [vmem:[#allocation2 + $0x20] sm:$0xff] %vm3485, %v3128
    %3491 = vst.msk [vmem:[#allocation2 + $0x28] sm:$0xff] %vm3485, %v3134
    %3492 = vst.msk [vmem:[#allocation2 + $0x30] sm:$0xff] %vm3485, %v3140
    %3493 = vst.msk [vmem:[#allocation2 + $0x38] sm:$0xff] %vm3485, %v3146
    %3494 = vst.msk [vmem:[#allocation2 + $0x40] sm:$0xff] %vm3485, %v3152
    %3495 = vst.msk [vmem:[#allocation2 + $0x48] sm:$0xff] %vm3485, %v3158
    %3496 = vst.msk [vmem:[#allocation2 + $0x50] sm:$0xff] %vm3485, %v3164
    %3497 = vst.msk [vmem:[#allocation2 + $0x58] sm:$0xff] %vm3485, %v3170
    %3498 = vst.msk [vmem:[#allocation2 + $0x60] sm:$0xff] %vm3485, %v3176
    %3499 = vst.msk [vmem:[#allocation2 + $0x68] sm:$0xff] %vm3485, %v3182
    %3500 = vst.msk [vmem:[#allocation2 + $0x70] sm:$0xff] %vm3485, %v3188
    %3501 = vst.msk [vmem:[#allocation2 + $0x78] sm:$0xff] %vm3485, %v3194
    %3502 = vst.msk [vmem:[#allocation2 + $0x80] sm:$0xff] %vm3485, %v3200
    %3503 = vst.msk [vmem:[#allocation2 + $0x88] sm:$0xff] %vm3485, %v3206
    %3504 = vst.msk [vmem:[#allocation2 + $0x90] sm:$0xff] %vm3485, %v3212
    %3505 = vst.msk [vmem:[#allocation2 + $0x98] sm:$0xff] %vm3485, %v3218
    %3506 = vst.msk [vmem:[#allocation2 + $0xa0] sm:$0xff] %vm3485, %v3224
    %3507 = vst.msk [vmem:[#allocation2 + $0xa8] sm:$0xff] %vm3485, %v3230
    %3508 = vst.msk [vmem:[#allocation2 + $0xb0] sm:$0xff] %vm3485, %v3236
    %3509 = vst.msk [vmem:[#allocation2 + $0xb8] sm:$0xff] %vm3485, %v3242
    %3510 = vst.msk [vmem:[#allocation2 + $0xc0] sm:$0xff] %vm3485, %v3248
    %3511 = vst.msk [vmem:[#allocation2 + $0xc8] sm:$0xff] %vm3485, %v3254
    %3512 = vst.msk [vmem:[#allocation2 + $0xd0] sm:$0xff] %vm3485, %v3260
    %3513 = vst.msk [vmem:[#allocation2 + $0xd8] sm:$0xff] %vm3485, %v3266
    %3514 = vst.msk [vmem:[#allocation2 + $0xe0] sm:$0xff] %vm3485, %v3272
    %3515 = vst.msk [vmem:[#allocation2 + $0xe8] sm:$0xff] %vm3485, %v3278
    %3516 = vst.msk [vmem:[#allocation2 + $0xf0] sm:$0xff] %vm3485, %v3284
    %3517 = vst.msk [vmem:[#allocation2 + $0xf8] sm:$0xff] %vm3485, %v3290
    %3518 = vst.msk [vmem:[#allocation2 + $0x100] sm:$0xff] %vm3485, %v3296
    %3519 = vst.msk [vmem:[#allocation2 + $0x108] sm:$0xff] %vm3485, %v3302
    %3520 = vst.msk [vmem:[#allocation2 + $0x110] sm:$0xff] %vm3485, %v3308
    %3521 = vst.msk [vmem:[#allocation2 + $0x118] sm:$0xff] %vm3485, %v3314
    %3522 = vst.msk [vmem:[#allocation2 + $0x120] sm:$0xff] %vm3485, %v3320
    %3523 = vst.msk [vmem:[#allocation2 + $0x128] sm:$0xff] %vm3485, %v3326
    %3524 = vst.msk [vmem:[#allocation2 + $0x130] sm:$0xff] %vm3485, %v3332
    %3525 = vst.msk [vmem:[#allocation2 + $0x138] sm:$0xff] %vm3485, %v3338
    %3526 = vst.msk [vmem:[#allocation2 + $0x140] sm:$0xff] %vm3485, %v3344
    %3527 = vst.msk [vmem:[#allocation2 + $0x148] sm:$0xff] %vm3485, %v3350
    %3528 = vst.msk [vmem:[#allocation2 + $0x150] sm:$0xff] %vm3485, %v3356
    %3529 = vst.msk [vmem:[#allocation2 + $0x158] sm:$0xff] %vm3485, %v3362
    %3530 = vst.msk [vmem:[#allocation2 + $0x160] sm:$0xff] %vm3485, %v3368
    %3531 = vst.msk [vmem:[#allocation2 + $0x168] sm:$0xff] %vm3485, %v3374
    %3532 = vst.msk [vmem:[#allocation2 + $0x170] sm:$0xff] %vm3485, %v3380
    %3533 = vst.msk [vmem:[#allocation2 + $0x178] sm:$0xff] %vm3485, %v3386
    %3534 = vst.msk [vmem:[#allocation2 + $0x180] sm:$0xff] %vm3485, %v3392
    %3535 = vst.msk [vmem:[#allocation2 + $0x188] sm:$0xff] %vm3485, %v3398
    %3536 = vst.msk [vmem:[#allocation2 + $0x190] sm:$0xff] %vm3485, %v3404
    %3537 = vst.msk [vmem:[#allocation2 + $0x198] sm:$0xff] %vm3485, %v3410
    %3538 = vst.msk [vmem:[#allocation2 + $0x1a0] sm:$0xff] %vm3485, %v3416
    %3539 = vst.msk [vmem:[#allocation2 + $0x1a8] sm:$0xff] %vm3485, %v3422
    %3540 = vst.msk [vmem:[#allocation2 + $0x1b0] sm:$0xff] %vm3485, %v3428
    %3541 = vst.msk [vmem:[#allocation2 + $0x1b8] sm:$0xff] %vm3485, %v3434
    %3542 = vst.msk [vmem:[#allocation2 + $0x1c0] sm:$0xff] %vm3485, %v3440
    %3543 = vst.msk [vmem:[#allocation2 + $0x1c8] sm:$0xff] %vm3485, %v3446
    %3544 = vst.msk [vmem:[#allocation2 + $0x1d0] sm:$0xff] %vm3485, %v3452
    %3545 = vst.msk [vmem:[#allocation2 + $0x1d8] sm:$0xff] %vm3485, %v3458
    %3546 = vst.msk [vmem:[#allocation2 + $0x1e0] sm:$0xff] %vm3485, %v3464
    %3547 = vst.msk [vmem:[#allocation2 + $0x1e8] sm:$0xff] %vm3485, %v3470
    %3548 = vst.msk [vmem:[#allocation2 + $0x1f0] sm:$0xff] %vm3485, %v3476
    %3549 = vst.msk [vmem:[#allocation2 + $0x1f8] sm:$0xff] %vm3485, %v3482
    // Predicated region
    $region10: #{split_and_merge.1} parent=1 // pred_check
      _
    $region11: #{split_and_merge.1} parent=1 // pred_check_branch
      %3551 = sbr.rel (0) target = $region13
    $region12: #{split_and_merge.1} parent=1 // pred_region
      %s3553 = ssub.s32 8192, 8192
      %3554 = vsyncadd [#allocation3], %s3553
      %s3555 = sshll.u32 [#allocation2], 4
      %s3556 = int_to_ptr.vmem [resolvable:$true] %s3555
      %3561 = dma.vmem_to_hbm [thread:$0]  %s3556, 8192, %s2, [#allocation3], 128, 128, 8
    $region13: #{split_and_merge.1} parent=1 // pred_fallthru
      _
    // Predicated region
    $region14: #{split_and_merge.1} parent=1 // pred_check
      _
    $region15: #{split_and_merge.1} parent=1 // pred_check_branch
      %3563 = sbr.rel (0) target = $region17
    $region16: #{split_and_merge.1} parent=1 // pred_region
      %3564 = dma.done [#allocation3], 8192
    $region17: #{split_and_merge.1} parent=1 // pred_fallthru
      _
    %3565 = vsyncpa [#allocation3], 1

</llo_original>
